<compile_context>
chip_gen: v7x
topology: tpu7x:2x2x1
jax: 0.10.0
libtpu: 0.0.40
codegen_flags: <defaults>
</compile_context>

<pallas_src>
import jax
import jax.numpy as jnp
from jax.experimental import pallas as pl
from jax.experimental.pallas import tpu as pltpu

LANE = 128  # pad width for the final lane-dense output layer


def _round_up(x, m):
    return ((x + m - 1) // m) * m


def _leaky_relu(x, negative_slope=0.2):
    # single vmax instead of cmp+select (valid because slope < 1)
    return jnp.maximum(x, negative_slope * x)


def _sigmoid(x):
    # stable sigmoid via tanh (goes to the EUP slot)
    return 0.5 * (jnp.tanh(0.5 * x) + 1.0)


def discriminator_kernel(x_ref,
                         w1_ref, b1_ref,
                         w2_ref, b2_ref,
                         w3_ref, b3_ref,
                         w4_ref, b4_ref,
                         o_ref):
    """Fused 4-layer MLP + LeakyReLU + Sigmoid for one batch tile.

    Weights are bf16 and VMEM-resident (single-buffered) across the grid;
    activations stay f32 and are cast to bf16 only at each MXU input.
    """
    h = x_ref[...].astype(jnp.bfloat16)  # no-op if x is already bf16

    # Layer 1: Linear -> LeakyReLU   (Dropout(0.3) == identity at inference)
    h = jnp.dot(h, w1_ref[...], preferred_element_type=jnp.float32) + b1_ref[...]
    h = _leaky_relu(h)
    # TODO(synk): training-mode Dropout(0.3) not implemented (would use
    # pltpu.prng_seed + pltpu.prng_random_bits in-kernel); eval-mode identity.

    # Layer 2
    h = jnp.dot(h.astype(jnp.bfloat16), w2_ref[...],
                preferred_element_type=jnp.float32) + b2_ref[...]
    h = _leaky_relu(h)

    # Layer 3
    h = jnp.dot(h.astype(jnp.bfloat16), w3_ref[...],
                preferred_element_type=jnp.float32) + b3_ref[...]
    h = _leaky_relu(h)

    # Output layer (zero-padded to LANE columns; real logit is column 0)
    logits = jnp.dot(h.astype(jnp.bfloat16), w4_ref[...],
                     preferred_element_type=jnp.float32) + b4_ref[...]
    o_ref[...] = _sigmoid(logits).astype(o_ref.dtype)


def init_discriminator_params(key, input_dim=512, hidden_dims=(1024, 512, 256)):
    """PyTorch-nn.Linear-style init (U(-k, k), k = 1/sqrt(fan_in)).

    Weights in (in_features, out_features) layout, f32.  Biases (1, out), f32.
    """
    dims = [input_dim] + list(hidden_dims) + [1]
    params = []
    for i in range(len(dims) - 1):
        fan_in, fan_out = dims[i], dims[i + 1]
        key, kw, kb = jax.random.split(key, 3)
        bound = 1.0 / jnp.sqrt(jnp.float32(fan_in))
        w = jax.random.uniform(kw, (fan_in, fan_out), jnp.float32, -bound, bound)
        b = jax.random.uniform(kb, (1, fan_out), jnp.float32, -bound, bound)
        params.append((w, b))
    return params


def prepare_discriminator_params(params):
    """ONE-TIME prep (do this at model init, NOT per forward call):
       * cast weights to bf16 (MXU bf16 x bf16 -> f32 accumulate),
       * zero-pad the final (256,1) layer to (256,128) so the output store is
         an unmasked full-lane vst.
    Biases stay f32."""
    (w1, b1), (w2, b2), (w3, b3), (w4, b4) = params
    w4p = jnp.pad(w4, ((0, 0), (0, LANE - w4.shape[1])))
    b4p = jnp.pad(b4, ((0, 0), (0, LANE - b4.shape[1])))
    return (
        (w1.astype(jnp.bfloat16), b1.astype(jnp.float32)),
        (w2.astype(jnp.bfloat16), b2.astype(jnp.float32)),
        (w3.astype(jnp.bfloat16), b3.astype(jnp.float32)),
        (w4p.astype(jnp.bfloat16), b4p.astype(jnp.float32)),
    )


def _pick_tile(batch):
    """Batch tile (rows per grid step).

    Small batches: a single tile of round_up(batch, 8) rows (the (8,128) rule
    only needs the sublane dim to be a multiple of 8) — no 16x padding waste.
    Large batches: big tiles (512-1024) to amortize the ~0.35us per-grid-step
    overhead, but keep >= 2 grid steps so v7x's two TensorCores both get work
    via the "parallel" batch axis.  VMEM at tm=1024 is ~10 MiB — well under
    the 32 MiB scoped default on every generation.
    """
    if batch <= 256:
        return _round_up(batch, 8)
    return min(1024, _round_up(pl.cdiv(batch, 2), 128))


def discriminator_forward(x, prepared_params, *, tm=None):
    """Run the fused discriminator kernel.

    x:               (batch, input_dim) f32 or bf16
    prepared_params: output of prepare_discriminator_params (bf16 weights,
                     (in, out) layout, final layer lane-padded).
    Returns (batch, 1) f32 probabilities.
    """
    batch, in_dim = x.shape
    (w1, b1), (w2, b2), (w3, b3), (w4, b4) = prepared_params

    if tm is None:
        tm = _pick_tile(batch)

    # Ragged last block instead of jnp.pad(x): rows are independent, Pallas
    # masks out-of-bounds rows on the output store.
    grid = (pl.cdiv(batch, tm),)

    def const_spec(arr):
        # Whole-array block, same block index for every grid step ->
        # VMEM-resident; single-buffered since it never changes.
        return pl.BlockSpec(arr.shape, lambda i: (0,) * arr.ndim,
                            pipeline_mode=pl.Buffered(1))

    in_specs = [
        pl.BlockSpec((tm, in_dim), lambda i: (i, 0)),   # x tile (pipelined)
        const_spec(w1), const_spec(b1),
        const_spec(w2), const_spec(b2),
        const_spec(w3), const_spec(b3),
        const_spec(w4), const_spec(b4),
    ]
    out_spec = pl.BlockSpec((tm, LANE), lambda i: (i, 0))

    out = pl.pallas_call(
        discriminator_kernel,
        out_shape=jax.ShapeDtypeStruct((batch, LANE), jnp.float32),
        grid=grid,
        in_specs=in_specs,
        out_specs=out_spec,
        compiler_params=pltpu.CompilerParams(
            dimension_semantics=("parallel",)),
    )(x, w1, b1, w2, b2, w3, b3, w4, b4)

    # Real logit lives in column 0 (padded columns hold sigmoid(0)=0.5).
    return out[:, :1]


def discriminator_reference(x, params):
    """Pure-JAX reference mirroring the kernel numerics (bf16 MXU inputs,
    f32 accumulation / bias / activations)."""
    h = x
    for i, (w, b) in enumerate(params):
        h = jnp.dot(h.astype(jnp.bfloat16), w.astype(jnp.bfloat16),
                    preferred_element_type=jnp.float32) + b
        if i < len(params) - 1:
            h = jnp.maximum(h, 0.2 * h)
    return 0.5 * (jnp.tanh(0.5 * h) + 1.0)


if __name__ == "__main__":
    key = jax.random.PRNGKey(0)
    k_params, k_x = jax.random.split(key)

    input_dim = 512
    hidden_dims = (1024, 512, 256)
    batch = 8

    params = init_discriminator_params(k_params, input_dim, hidden_dims)
    # One-time weight prep (hoisted out of the per-call path).
    prepared = jax.block_until_ready(prepare_discriminator_params(params))
    x = jax.random.normal(k_x, (batch, input_dim), jnp.float32)

    fwd = jax.jit(discriminator_forward, static_argnames=("tm",))
    out = jax.block_until_ready(fwd(x, prepared))

    ref = discriminator_reference(x, params)
    assert out.shape == (batch, 1), out.shape
    assert bool(jnp.all(jnp.isfinite(out)))
    assert jnp.allclose(out, ref, atol=2e-3, rtol=0.0), (
        f"max abs diff {jnp.max(jnp.abs(out - ref))}")

    print("KERNEL_OK")
</pallas_src>

<mosaic_0001>
module attributes {stable_mosaic.version = 11 : i64} {
  func.func @discriminator_kernel(%arg0: i32, %arg1: memref<8x512xf32, #tpu.memory_space<vmem>>, %arg2: memref<512x1024xbf16, #tpu.memory_space<vmem>>, %arg3: memref<1x1024xf32, #tpu.memory_space<vmem>>, %arg4: memref<1024x512xbf16, #tpu.memory_space<vmem>>, %arg5: memref<1x512xf32, #tpu.memory_space<vmem>>, %arg6: memref<512x256xbf16, #tpu.memory_space<vmem>>, %arg7: memref<1x256xf32, #tpu.memory_space<vmem>>, %arg8: memref<256x128xbf16, #tpu.memory_space<vmem>>, %arg9: memref<1x128xf32, #tpu.memory_space<vmem>>, %arg10: memref<8x128xf32, #tpu.memory_space<vmem>>) attributes {dimension_semantics = [#tpu.dimension_semantics<parallel>], iteration_bounds = array<i64: 1>, scalar_prefetch = 0 : i64, scratch_operands = 0 : i64, tpu.core_type = #tpu.core_type<tc>, window_params = [{transform_indices = @transform_0, window_bounds = array<i64: 8, 512>}, {pipeline_mode = #tpu.pipeline_mode<synchronous>, transform_indices = @transform_1, window_bounds = array<i64: 512, 1024>}, {pipeline_mode = #tpu.pipeline_mode<synchronous>, transform_indices = @transform_2, window_bounds = array<i64: 1, 1024>}, {pipeline_mode = #tpu.pipeline_mode<synchronous>, transform_indices = @transform_3, window_bounds = array<i64: 1024, 512>}, {pipeline_mode = #tpu.pipeline_mode<synchronous>, transform_indices = @transform_4, window_bounds = array<i64: 1, 512>}, {pipeline_mode = #tpu.pipeline_mode<synchronous>, transform_indices = @transform_5, window_bounds = array<i64: 512, 256>}, {pipeline_mode = #tpu.pipeline_mode<synchronous>, transform_indices = @transform_6, window_bounds = array<i64: 1, 256>}, {pipeline_mode = #tpu.pipeline_mode<synchronous>, transform_indices = @transform_7, window_bounds = array<i64: 256, 128>}, {pipeline_mode = #tpu.pipeline_mode<synchronous>, transform_indices = @transform_8, window_bounds = array<i64: 1, 128>}, {transform_indices = @transform_9, window_bounds = array<i64: 8, 128>}]} {
    %c0 = arith.constant 0 : index
    %c0_0 = arith.constant 0 : index
    %0 = vector.load %arg1[%c0, %c0_0] : memref<8x512xf32, #tpu.memory_space<vmem>>, vector<8x512xf32>
    %1 = arith.truncf %0 : vector<8x512xf32> to vector<8x512xbf16>
    %c0_1 = arith.constant 0 : index
    %c0_2 = arith.constant 0 : index
    %2 = vector.load %arg2[%c0_1, %c0_2] : memref<512x1024xbf16, #tpu.memory_space<vmem>>, vector<512x1024xbf16>
    %cst = arith.constant dense<0.000000e+00> : vector<8x1024xf32>
    %3 = tpu.matmul %1, %2, %cst {dimension_numbers = #tpu.dot_dimension_numbers<[1], [0], [0], [1], [0, 0, 1, 1], [], []>} : vector<8x512xbf16>, vector<512x1024xbf16>, vector<8x1024xf32> -> vector<8x1024xf32>
    %c0_3 = arith.constant 0 : index
    %c0_4 = arith.constant 0 : index
    %4 = vector.load %arg3[%c0_3, %c0_4] : memref<1x1024xf32, #tpu.memory_space<vmem>>, vector<1x1024xf32>
    %5 = vector.broadcast %4 : vector<1x1024xf32> to vector<8x1024xf32>
    %6 = arith.addf %3, %5 : vector<8x1024xf32>
    %cst_5 = arith.constant 2.000000e-01 : f32
    %7 = vector.broadcast %cst_5 : f32 to vector<8x1024xf32>
    %8 = arith.mulf %7, %6 : vector<8x1024xf32>
    %9 = arith.maximumf %6, %8 : vector<8x1024xf32>
    %10 = arith.truncf %9 : vector<8x1024xf32> to vector<8x1024xbf16>
    %c0_6 = arith.constant 0 : index
    %c0_7 = arith.constant 0 : index
    %11 = vector.load %arg4[%c0_6, %c0_7] : memref<1024x512xbf16, #tpu.memory_space<vmem>>, vector<1024x512xbf16>
    %cst_8 = arith.constant dense<0.000000e+00> : vector<8x512xf32>
    %12 = tpu.matmul %10, %11, %cst_8 {dimension_numbers = #tpu.dot_dimension_numbers<[1], [0], [0], [1], [0, 0, 1, 1], [], []>} : vector<8x1024xbf16>, vector<1024x512xbf16>, vector<8x512xf32> -> vector<8x512xf32>
    %c0_9 = arith.constant 0 : index
    %c0_10 = arith.constant 0 : index
    %13 = vector.load %arg5[%c0_9, %c0_10] : memref<1x512xf32, #tpu.memory_space<vmem>>, vector<1x512xf32>
    %14 = vector.broadcast %13 : vector<1x512xf32> to vector<8x512xf32>
    %15 = arith.addf %12, %14 : vector<8x512xf32>
    %cst_11 = arith.constant 2.000000e-01 : f32
    %16 = vector.broadcast %cst_11 : f32 to vector<8x512xf32>
    %17 = arith.mulf %16, %15 : vector<8x512xf32>
    %18 = arith.maximumf %15, %17 : vector<8x512xf32>
    %19 = arith.truncf %18 : vector<8x512xf32> to vector<8x512xbf16>
    %c0_12 = arith.constant 0 : index
    %c0_13 = arith.constant 0 : index
    %20 = vector.load %arg6[%c0_12, %c0_13] : memref<512x256xbf16, #tpu.memory_space<vmem>>, vector<512x256xbf16>
    %cst_14 = arith.constant dense<0.000000e+00> : vector<8x256xf32>
    %21 = tpu.matmul %19, %20, %cst_14 {dimension_numbers = #tpu.dot_dimension_numbers<[1], [0], [0], [1], [0, 0, 1, 1], [], []>} : vector<8x512xbf16>, vector<512x256xbf16>, vector<8x256xf32> -> vector<8x256xf32>
    %c0_15 = arith.constant 0 : index
    %c0_16 = arith.constant 0 : index
    %22 = vector.load %arg7[%c0_15, %c0_16] : memref<1x256xf32, #tpu.memory_space<vmem>>, vector<1x256xf32>
    %23 = vector.broadcast %22 : vector<1x256xf32> to vector<8x256xf32>
    %24 = arith.addf %21, %23 : vector<8x256xf32>
    %cst_17 = arith.constant 2.000000e-01 : f32
    %25 = vector.broadcast %cst_17 : f32 to vector<8x256xf32>
    %26 = arith.mulf %25, %24 : vector<8x256xf32>
    %27 = arith.maximumf %24, %26 : vector<8x256xf32>
    %28 = arith.truncf %27 : vector<8x256xf32> to vector<8x256xbf16>
    %c0_18 = arith.constant 0 : index
    %c0_19 = arith.constant 0 : index
    %29 = vector.load %arg8[%c0_18, %c0_19] : memref<256x128xbf16, #tpu.memory_space<vmem>>, vector<256x128xbf16>
    %cst_20 = arith.constant dense<0.000000e+00> : vector<8x128xf32>
    %30 = tpu.matmul %28, %29, %cst_20 {dimension_numbers = #tpu.dot_dimension_numbers<[1], [0], [0], [1], [0, 0, 1, 1], [], []>} : vector<8x256xbf16>, vector<256x128xbf16>, vector<8x128xf32> -> vector<8x128xf32>
    %c0_21 = arith.constant 0 : index
    %c0_22 = arith.constant 0 : index
    %31 = vector.load %arg9[%c0_21, %c0_22] : memref<1x128xf32, #tpu.memory_space<vmem>>, vector<1x128xf32>
    %32 = vector.broadcast %31 : vector<1x128xf32> to vector<8x128xf32>
    %33 = arith.addf %30, %32 : vector<8x128xf32>
    %cst_23 = arith.constant 5.000000e-01 : f32
    %34 = vector.broadcast %cst_23 : f32 to vector<8x128xf32>
    %35 = arith.mulf %34, %33 : vector<8x128xf32>
    %36 = math.tanh %35 : vector<8x128xf32>
    %cst_24 = arith.constant 1.000000e+00 : f32
    %37 = vector.broadcast %cst_24 : f32 to vector<8x128xf32>
    %38 = arith.addf %36, %37 : vector<8x128xf32>
    %cst_25 = arith.constant 5.000000e-01 : f32
    %39 = vector.broadcast %cst_25 : f32 to vector<8x128xf32>
    %40 = arith.mulf %39, %38 : vector<8x128xf32>
    %c0_26 = arith.constant 0 : index
    %c0_27 = arith.constant 0 : index
    %41 = vector.load %arg10[%c0_26, %c0_27] : memref<8x128xf32, #tpu.memory_space<vmem>>, vector<8x128xf32>
    tpu.vector_store %arg10[%c0_26, %c0_27], %40 {strides = array<i32>} : memref<8x128xf32, #tpu.memory_space<vmem>>, vector<8x128xf32>,
    return
  }
  func.func @transform_0(%arg0: i32) -> (i32, i32) {
    %c0_i32 = arith.constant 0 : i32
    %c0_i32_0 = arith.constant 0 : i32
    return %arg0, %c0_i32 : i32, i32
  }
  func.func @transform_1(%arg0: i32) -> (i32, i32) {
    %c0_i32 = arith.constant 0 : i32
    %c0_i32_0 = arith.constant 0 : i32
    %c0_i32_1 = arith.constant 0 : i32
    return %c0_i32, %c0_i32_0 : i32, i32
  }
  func.func @transform_2(%arg0: i32) -> (i32, i32) {
    %c0_i32 = arith.constant 0 : i32
    %c0_i32_0 = arith.constant 0 : i32
    %c0_i32_1 = arith.constant 0 : i32
    return %c0_i32, %c0_i32_0 : i32, i32
  }
  func.func @transform_3(%arg0: i32) -> (i32, i32) {
    %c0_i32 = arith.constant 0 : i32
    %c0_i32_0 = arith.constant 0 : i32
    %c0_i32_1 = arith.constant 0 : i32
    return %c0_i32, %c0_i32_0 : i32, i32
  }
  func.func @transform_4(%arg0: i32) -> (i32, i32) {
    %c0_i32 = arith.constant 0 : i32
    %c0_i32_0 = arith.constant 0 : i32
    %c0_i32_1 = arith.constant 0 : i32
    return %c0_i32, %c0_i32_0 : i32, i32
  }
  func.func @transform_5(%arg0: i32) -> (i32, i32) {
    %c0_i32 = arith.constant 0 : i32
    %c0_i32_0 = arith.constant 0 : i32
    %c0_i32_1 = arith.constant 0 : i32
    return %c0_i32, %c0_i32_0 : i32, i32
  }
  func.func @transform_6(%arg0: i32) -> (i32, i32) {
    %c0_i32 = arith.constant 0 : i32
    %c0_i32_0 = arith.constant 0 : i32
    %c0_i32_1 = arith.constant 0 : i32
    return %c0_i32, %c0_i32_0 : i32, i32
  }
  func.func @transform_7(%arg0: i32) -> (i32, i32) {
    %c0_i32 = arith.constant 0 : i32
    %c0_i32_0 = arith.constant 0 : i32
    %c0_i32_1 = arith.constant 0 : i32
    return %c0_i32, %c0_i32_0 : i32, i32
  }
  func.func @transform_8(%arg0: i32) -> (i32, i32) {
    %c0_i32 = arith.constant 0 : i32
    %c0_i32_0 = arith.constant 0 : i32
    %c0_i32_1 = arith.constant 0 : i32
    return %c0_i32, %c0_i32_0 : i32, i32
  }
  func.func @transform_9(%arg0: i32) -> (i32, i32) {
    %c0_i32 = arith.constant 0 : i32
    %c0_i32_0 = arith.constant 0 : i32
    return %arg0, %c0_i32 : i32, i32
  }
}

</mosaic_0001>

<llo_original>
// kernel: discriminator_forward.1
$region0: #{discriminator_forward.1}
  #allocation0 [shape = 'u32[]', space=smem, size = 0x4, offset = 0x4, fixed_abs, tag = 'smem constant byte address 0x4 - core index']
  #allocation1 [shape = 'u32[144,128]{1,0:T(1,128)}', space=vmem, size = 0x12000, scoped, tag = 'internal scratch']
  %s0 = inlined_call_operand.hbm [shape: f32[8,512], index: 0, kind: input, shape index: {}]
  %s1 = inlined_call_operand.hbm [shape: bf16[512,1024], index: 1, kind: input, shape index: {}]
  %s2 = inlined_call_operand.hbm [shape: f32[1,1024], index: 2, kind: input, shape index: {}]
  %s3 = inlined_call_operand.hbm [shape: bf16[1024,512], index: 3, kind: input, shape index: {}]
  %s4 = inlined_call_operand.vmem [shape: f32[1,512], index: 4, kind: input, shape index: {}]
  %s5 = inlined_call_operand.hbm [shape: bf16[512,256], index: 5, kind: input, shape index: {}]
  %s6 = inlined_call_operand.vmem [shape: f32[1,256], index: 6, kind: input, shape index: {}]
  %s7 = inlined_call_operand.hbm [shape: bf16[256,128], index: 7, kind: input, shape index: {}]
  %s8 = inlined_call_operand.vmem [shape: f32[1,128], index: 8, kind: input, shape index: {}]
  %s9 = inlined_call_operand.vmem [shape: f32[8,128], index: 9, kind: output, shape index: {}]
  %s10 = sld [smem:[#allocation0]]
  $region70: #{discriminator_forward.1} parent=0
    _
  %s12 = ssub.s32 1, %s10
  %s13 = scalar_select 0, %s12, %s10
  $region1: #{discriminator_forward.1} parent=0
    #allocation2 [shape = 'u8[16384]{0}', space=vmem, size = 0x4000, scoped, tag = 'input window, operand 0, single buffered']
    #allocation3 [shape = 's32[1]{0}', space=sflag, size = 0x4, scoped, tag = 'scoped memory for discriminator_forward.1']
    #allocation4 [shape = 'u8[1048576]{0}', space=vmem, size = 0x100000, scoped, tag = 'input window, operand 1, single buffered']
    #allocation5 [shape = 's32[1]{0}', space=sflag, size = 0x4, scoped, tag = 'scoped memory for discriminator_forward.1']
    #allocation6 [shape = 'u8[4096]{0}', space=vmem, size = 0x1000, scoped, tag = 'input window, operand 2, single buffered']
    #allocation7 [shape = 'u8[1048576]{0}', space=vmem, size = 0x100000, scoped, tag = 'input window, operand 3, single buffered']
    #allocation8 [shape = 's32[1]{0}', space=sflag, size = 0x4, scoped, tag = 'scoped memory for discriminator_forward.1']
    #allocation9 [shape = 'u8[262144]{0}', space=vmem, size = 0x40000, scoped, tag = 'input window, operand 5, single buffered']
    #allocation10 [shape = 'u8[65536]{0}', space=vmem, size = 0x10000, scoped, tag = 'input window, operand 7, single buffered']
    #allocation11 [shape = 's32[1]{0}', space=sflag, size = 0x4, scoped, tag = 'scoped memory for discriminator_forward.1']
    %14 = vsyncpa [#allocation3], 0
    %15 = vsyncpa [#allocation5], 0
    %16 = vsyncpa [#allocation8], 0
    %17 = vsyncpa [#allocation11], 0
    // Predicated region
    $region2: #{discriminator_forward.1} parent=1 // pred_check
      _
    $region3: #{discriminator_forward.1} parent=1 // pred_check_branch
      %19 = sbr.rel (0) target = $region5
    $region4: #{discriminator_forward.1} parent=1 // pred_region
      %s21 = ssub.s32 512, 512
      %22 = vsyncadd [#allocation3], %s21
      %s24 = sshll.u32 [#allocation2], 4
      %s25 = int_to_ptr.vmem [resolvable:$true] %s24
      %27 = dma.hbm_to_vmem [thread:$0]  %s0, 512, %s25, [#allocation3]
    $region5: #{discriminator_forward.1} parent=1 // pred_fallthru
      _
    // Predicated region
    $region6: #{discriminator_forward.1} parent=1 // pred_check
      _
    $region7: #{discriminator_forward.1} parent=1 // pred_check_branch
      %29 = sbr.rel (0) target = $region9
    $region8: #{discriminator_forward.1} parent=1 // pred_region
      %s31 = ssub.s32 32768, 32768
      %32 = vsyncadd [#allocation5], %s31
      %s33 = sshll.u32 [#allocation4], 4
      %s34 = int_to_ptr.vmem [resolvable:$true] %s33
      %39 = dma.hbm_to_vmem [thread:$0]  %s1, 32768, %s34, [#allocation5], 512, 512, 32
    $region9: #{discriminator_forward.1} parent=1 // pred_fallthru
      _
    // Predicated region
    $region10: #{discriminator_forward.1} parent=1 // pred_check
      _
    $region11: #{discriminator_forward.1} parent=1 // pred_check_branch
      %41 = sbr.rel (0) target = $region13
    $region12: #{discriminator_forward.1} parent=1 // pred_region
      %s43 = ssub.s32 128, 128
      %44 = vsyncadd [#allocation5], %s43
      %s46 = sshll.u32 [#allocation6], 4
      %s47 = int_to_ptr.vmem [resolvable:$true] %s46
      %49 = dma.hbm_to_vmem [thread:$0]  %s2, 128, %s47, [#allocation5]
    $region13: #{discriminator_forward.1} parent=1 // pred_fallthru
      _
    // Predicated region
    $region14: #{discriminator_forward.1} parent=1 // pred_check
      _
    $region15: #{discriminator_forward.1} parent=1 // pred_check_branch
      %51 = sbr.rel (0) target = $region17
    $region16: #{discriminator_forward.1} parent=1 // pred_region
      %s53 = ssub.s32 32768, 32768
      %54 = vsyncadd [#allocation8], %s53
      %s55 = sshll.u32 [#allocation7], 4
      %s56 = int_to_ptr.vmem [resolvable:$true] %s55
      %61 = dma.hbm_to_vmem [thread:$0]  %s3, 32768, %s56, [#allocation8], 256, 256, 16
    $region17: #{discriminator_forward.1} parent=1 // pred_fallthru
      _
    // Predicated region
    $region18: #{discriminator_forward.1} parent=1 // pred_check
      _
    $region19: #{discriminator_forward.1} parent=1 // pred_check_branch
      %63 = sbr.rel (0) target = $region21
    $region20: #{discriminator_forward.1} parent=1 // pred_region
      _
    $region21: #{discriminator_forward.1} parent=1 // pred_fallthru
      _
    // Predicated region
    $region22: #{discriminator_forward.1} parent=1 // pred_check
      _
    $region23: #{discriminator_forward.1} parent=1 // pred_check_branch
      %65 = sbr.rel (0) target = $region25
    $region24: #{discriminator_forward.1} parent=1 // pred_region
      %s67 = ssub.s32 8192, 8192
      %68 = vsyncadd [#allocation8], %s67
      %s69 = sshll.u32 [#allocation9], 4
      %s70 = int_to_ptr.vmem [resolvable:$true] %s69
      %75 = dma.hbm_to_vmem [thread:$0]  %s5, 8192, %s70, [#allocation8], 128, 128, 8
    $region25: #{discriminator_forward.1} parent=1 // pred_fallthru
      _
    // Predicated region
    $region26: #{discriminator_forward.1} parent=1 // pred_check
      _
    $region27: #{discriminator_forward.1} parent=1 // pred_check_branch
      %77 = sbr.rel (0) target = $region29
    $region28: #{discriminator_forward.1} parent=1 // pred_region
      _
    $region29: #{discriminator_forward.1} parent=1 // pred_fallthru
      _
    // Predicated region
    $region30: #{discriminator_forward.1} parent=1 // pred_check
      _
    $region31: #{discriminator_forward.1} parent=1 // pred_check_branch
      %79 = sbr.rel (0) target = $region33
    $region32: #{discriminator_forward.1} parent=1 // pred_region
      %s81 = ssub.s32 2048, 2048
      %82 = vsyncadd [#allocation11], %s81
      %s83 = sshll.u32 [#allocation10], 4
      %s84 = int_to_ptr.vmem [resolvable:$true] %s83
      %89 = dma.hbm_to_vmem [thread:$0]  %s7, 2048, %s84, [#allocation11], 64, 64, 4
    $region33: #{discriminator_forward.1} parent=1 // pred_fallthru
      _
    // Predicated region
    $region34: #{discriminator_forward.1} parent=1 // pred_check
      _
    $region35: #{discriminator_forward.1} parent=1 // pred_check_branch
      %91 = sbr.rel (0) target = $region37
    $region36: #{discriminator_forward.1} parent=1 // pred_region
      _
    $region37: #{discriminator_forward.1} parent=1 // pred_fallthru
      _
    // Predicated region
    $region38: #{discriminator_forward.1} parent=1 // pred_check
      _
    $region39: #{discriminator_forward.1} parent=1 // pred_check_branch
      %93 = sbr.rel (0) target = $region41
    $region40: #{discriminator_forward.1} parent=1 // pred_region
      %94 = dma.done [#allocation3], 512
    $region41: #{discriminator_forward.1} parent=1 // pred_fallthru
      _
    // Predicated region
    $region42: #{discriminator_forward.1} parent=1 // pred_check
      _
    $region43: #{discriminator_forward.1} parent=1 // pred_check_branch
      %96 = sbr.rel (0) target = $region45
    $region44: #{discriminator_forward.1} parent=1 // pred_region
      %97 = dma.done [#allocation5], 32768
    $region45: #{discriminator_forward.1} parent=1 // pred_fallthru
      _
    // Predicated region
    $region46: #{discriminator_forward.1} parent=1 // pred_check
      _
    $region47: #{discriminator_forward.1} parent=1 // pred_check_branch
      %99 = sbr.rel (0) target = $region49
    $region48: #{discriminator_forward.1} parent=1 // pred_region
      %100 = dma.done [#allocation5], 128
    $region49: #{discriminator_forward.1} parent=1 // pred_fallthru
      _
    // Predicated region
    $region50: #{discriminator_forward.1} parent=1 // pred_check
      _
    $region51: #{discriminator_forward.1} parent=1 // pred_check_branch
      %102 = sbr.rel (0) target = $region53
    $region52: #{discriminator_forward.1} parent=1 // pred_region
      %103 = dma.done [#allocation8], 32768
    $region53: #{discriminator_forward.1} parent=1 // pred_fallthru
      _
    // Predicated region
    $region54: #{discriminator_forward.1} parent=1 // pred_check
      _
    $region55: #{discriminator_forward.1} parent=1 // pred_check_branch
      %105 = sbr.rel (0) target = $region57
    $region56: #{discriminator_forward.1} parent=1 // pred_region
      %106 = dma.done [#allocation8], 8192
    $region57: #{discriminator_forward.1} parent=1 // pred_fallthru
      _
    // Predicated region
    $region58: #{discriminator_forward.1} parent=1 // pred_check
      _
    $region59: #{discriminator_forward.1} parent=1 // pred_check_branch
      %108 = sbr.rel (0) target = $region61
    $region60: #{discriminator_forward.1} parent=1 // pred_region
      %109 = dma.done [#allocation11], 2048
    $region61: #{discriminator_forward.1} parent=1 // pred_fallthru
      _
    %v111 = vld [vmem:[#allocation2] sm:$0xff]
    %v112 = vld [vmem:[#allocation2 + $0x8] sm:$0xff]
    %v113 = vld [vmem:[#allocation2 + $0x10] sm:$0xff]
    %v114 = vld [vmem:[#allocation2 + $0x18] sm:$0xff]
    %v115 = vpack.c.bf16 %v111, %v111
    %v116 = vpack.c.bf16 %v112, %v112
    %v117 = vpack.c.bf16 %v113, %v113
    %v118 = vpack.c.bf16 %v114, %v114
    %v119 = vld [vmem:[#allocation4] sm:$0xff]
    %v120 = vld [vmem:[#allocation4 + $0x8] sm:$0xff]
    %v121 = vld [vmem:[#allocation4 + $0x10] sm:$0xff]
    %v122 = vld [vmem:[#allocation4 + $0x18] sm:$0xff]
    %v123 = vld [vmem:[#allocation4 + $0x20] sm:$0xff]
    %v124 = vld [vmem:[#allocation4 + $0x28] sm:$0xff]
    %v125 = vld [vmem:[#allocation4 + $0x30] sm:$0xff]
    %v126 = vld [vmem:[#allocation4 + $0x38] sm:$0xff]
    %v127 = vld [vmem:[#allocation4 + $0x40] sm:$0xff]
    %v128 = vld [vmem:[#allocation4 + $0x48] sm:$0xff]
    %v129 = vld [vmem:[#allocation4 + $0x50] sm:$0xff]
    %v130 = vld [vmem:[#allocation4 + $0x58] sm:$0xff]
    %v131 = vld [vmem:[#allocation4 + $0x60] sm:$0xff]
    %v132 = vld [vmem:[#allocation4 + $0x68] sm:$0xff]
    %v133 = vld [vmem:[#allocation4 + $0x70] sm:$0xff]
    %v134 = vld [vmem:[#allocation4 + $0x78] sm:$0xff]
    %v135 = vld [vmem:[#allocation4 + $0x80] sm:$0xff]
    %v136 = vld [vmem:[#allocation4 + $0x88] sm:$0xff]
    %v137 = vld [vmem:[#allocation4 + $0x90] sm:$0xff]
    %v138 = vld [vmem:[#allocation4 + $0x98] sm:$0xff]
    %v139 = vld [vmem:[#allocation4 + $0xa0] sm:$0xff]
    %v140 = vld [vmem:[#allocation4 + $0xa8] sm:$0xff]
    %v141 = vld [vmem:[#allocation4 + $0xb0] sm:$0xff]
    %v142 = vld [vmem:[#allocation4 + $0xb8] sm:$0xff]
    %v143 = vld [vmem:[#allocation4 + $0xc0] sm:$0xff]
    %v144 = vld [vmem:[#allocation4 + $0xc8] sm:$0xff]
    %v145 = vld [vmem:[#allocation4 + $0xd0] sm:$0xff]
    %v146 = vld [vmem:[#allocation4 + $0xd8] sm:$0xff]
    %v147 = vld [vmem:[#allocation4 + $0xe0] sm:$0xff]
    %v148 = vld [vmem:[#allocation4 + $0xe8] sm:$0xff]
    %v149 = vld [vmem:[#allocation4 + $0xf0] sm:$0xff]
    %v150 = vld [vmem:[#allocation4 + $0xf8] sm:$0xff]
    %v151 = vld [vmem:[#allocation4 + $0x100] sm:$0xff]
    %v152 = vld [vmem:[#allocation4 + $0x108] sm:$0xff]
    %v153 = vld [vmem:[#allocation4 + $0x110] sm:$0xff]
    %v154 = vld [vmem:[#allocation4 + $0x118] sm:$0xff]
    %v155 = vld [vmem:[#allocation4 + $0x120] sm:$0xff]
    %v156 = vld [vmem:[#allocation4 + $0x128] sm:$0xff]
    %v157 = vld [vmem:[#allocation4 + $0x130] sm:$0xff]
    %v158 = vld [vmem:[#allocation4 + $0x138] sm:$0xff]
    %v159 = vld [vmem:[#allocation4 + $0x140] sm:$0xff]
    %v160 = vld [vmem:[#allocation4 + $0x148] sm:$0xff]
    %v161 = vld [vmem:[#allocation4 + $0x150] sm:$0xff]
    %v162 = vld [vmem:[#allocation4 + $0x158] sm:$0xff]
    %v163 = vld [vmem:[#allocation4 + $0x160] sm:$0xff]
    %v164 = vld [vmem:[#allocation4 + $0x168] sm:$0xff]
    %v165 = vld [vmem:[#allocation4 + $0x170] sm:$0xff]
    %v166 = vld [vmem:[#allocation4 + $0x178] sm:$0xff]
    %v167 = vld [vmem:[#allocation4 + $0x180] sm:$0xff]
    %v168 = vld [vmem:[#allocation4 + $0x188] sm:$0xff]
    %v169 = vld [vmem:[#allocation4 + $0x190] sm:$0xff]
    %v170 = vld [vmem:[#allocation4 + $0x198] sm:$0xff]
    %v171 = vld [vmem:[#allocation4 + $0x1a0] sm:$0xff]
    %v172 = vld [vmem:[#allocation4 + $0x1a8] sm:$0xff]
    %v173 = vld [vmem:[#allocation4 + $0x1b0] sm:$0xff]
    %v174 = vld [vmem:[#allocation4 + $0x1b8] sm:$0xff]
    %v175 = vld [vmem:[#allocation4 + $0x1c0] sm:$0xff]
    %v176 = vld [vmem:[#allocation4 + $0x1c8] sm:$0xff]
    %v177 = vld [vmem:[#allocation4 + $0x1d0] sm:$0xff]
    %v178 = vld [vmem:[#allocation4 + $0x1d8] sm:$0xff]
    %v179 = vld [vmem:[#allocation4 + $0x1e0] sm:$0xff]
    %v180 = vld [vmem:[#allocation4 + $0x1e8] sm:$0xff]
    %v181 = vld [vmem:[#allocation4 + $0x1f0] sm:$0xff]
    %v182 = vld [vmem:[#allocation4 + $0x1f8] sm:$0xff]
    %v183 = vld [vmem:[#allocation4 + $0x200] sm:$0xff]
    %v184 = vld [vmem:[#allocation4 + $0x208] sm:$0xff]
    %v185 = vld [vmem:[#allocation4 + $0x210] sm:$0xff]
    %v186 = vld [vmem:[#allocation4 + $0x218] sm:$0xff]
    %v187 = vld [vmem:[#allocation4 + $0x220] sm:$0xff]
    %v188 = vld [vmem:[#allocation4 + $0x228] sm:$0xff]
    %v189 = vld [vmem:[#allocation4 + $0x230] sm:$0xff]
    %v190 = vld [vmem:[#allocation4 + $0x238] sm:$0xff]
    %v191 = vld [vmem:[#allocation4 + $0x240] sm:$0xff]
    %v192 = vld [vmem:[#allocation4 + $0x248] sm:$0xff]
    %v193 = vld [vmem:[#allocation4 + $0x250] sm:$0xff]
    %v194 = vld [vmem:[#allocation4 + $0x258] sm:$0xff]
    %v195 = vld [vmem:[#allocation4 + $0x260] sm:$0xff]
    %v196 = vld [vmem:[#allocation4 + $0x268] sm:$0xff]
    %v197 = vld [vmem:[#allocation4 + $0x270] sm:$0xff]
    %v198 = vld [vmem:[#allocation4 + $0x278] sm:$0xff]
    %v199 = vld [vmem:[#allocation4 + $0x280] sm:$0xff]
    %v200 = vld [vmem:[#allocation4 + $0x288] sm:$0xff]
    %v201 = vld [vmem:[#allocation4 + $0x290] sm:$0xff]
    %v202 = vld [vmem:[#allocation4 + $0x298] sm:$0xff]
    %v203 = vld [vmem:[#allocation4 + $0x2a0] sm:$0xff]
    %v204 = vld [vmem:[#allocation4 + $0x2a8] sm:$0xff]
    %v205 = vld [vmem:[#allocation4 + $0x2b0] sm:$0xff]
    %v206 = vld [vmem:[#allocation4 + $0x2b8] sm:$0xff]
    %v207 = vld [vmem:[#allocation4 + $0x2c0] sm:$0xff]
    %v208 = vld [vmem:[#allocation4 + $0x2c8] sm:$0xff]
    %v209 = vld [vmem:[#allocation4 + $0x2d0] sm:$0xff]
    %v210 = vld [vmem:[#allocation4 + $0x2d8] sm:$0xff]
    %v211 = vld [vmem:[#allocation4 + $0x2e0] sm:$0xff]
    %v212 = vld [vmem:[#allocation4 + $0x2e8] sm:$0xff]
    %v213 = vld [vmem:[#allocation4 + $0x2f0] sm:$0xff]
    %v214 = vld [vmem:[#allocation4 + $0x2f8] sm:$0xff]
    %v215 = vld [vmem:[#allocation4 + $0x300] sm:$0xff]
    %v216 = vld [vmem:[#allocation4 + $0x308] sm:$0xff]
    %v217 = vld [vmem:[#allocation4 + $0x310] sm:$0xff]
    %v218 = vld [vmem:[#allocation4 + $0x318] sm:$0xff]
    %v219 = vld [vmem:[#allocation4 + $0x320] sm:$0xff]
    %v220 = vld [vmem:[#allocation4 + $0x328] sm:$0xff]
    %v221 = vld [vmem:[#allocation4 + $0x330] sm:$0xff]
    %v222 = vld [vmem:[#allocation4 + $0x338] sm:$0xff]
    %v223 = vld [vmem:[#allocation4 + $0x340] sm:$0xff]
    %v224 = vld [vmem:[#allocation4 + $0x348] sm:$0xff]
    %v225 = vld [vmem:[#allocation4 + $0x350] sm:$0xff]
    %v226 = vld [vmem:[#allocation4 + $0x358] sm:$0xff]
    %v227 = vld [vmem:[#allocation4 + $0x360] sm:$0xff]
    %v228 = vld [vmem:[#allocation4 + $0x368] sm:$0xff]
    %v229 = vld [vmem:[#allocation4 + $0x370] sm:$0xff]
    %v230 = vld [vmem:[#allocation4 + $0x378] sm:$0xff]
    %v231 = vld [vmem:[#allocation4 + $0x380] sm:$0xff]
    %v232 = vld [vmem:[#allocation4 + $0x388] sm:$0xff]
    %v233 = vld [vmem:[#allocation4 + $0x390] sm:$0xff]
    %v234 = vld [vmem:[#allocation4 + $0x398] sm:$0xff]
    %v235 = vld [vmem:[#allocation4 + $0x3a0] sm:$0xff]
    %v236 = vld [vmem:[#allocation4 + $0x3a8] sm:$0xff]
    %v237 = vld [vmem:[#allocation4 + $0x3b0] sm:$0xff]
    %v238 = vld [vmem:[#allocation4 + $0x3b8] sm:$0xff]
    %v239 = vld [vmem:[#allocation4 + $0x3c0] sm:$0xff]
    %v240 = vld [vmem:[#allocation4 + $0x3c8] sm:$0xff]
    %v241 = vld [vmem:[#allocation4 + $0x3d0] sm:$0xff]
    %v242 = vld [vmem:[#allocation4 + $0x3d8] sm:$0xff]
    %v243 = vld [vmem:[#allocation4 + $0x3e0] sm:$0xff]
    %v244 = vld [vmem:[#allocation4 + $0x3e8] sm:$0xff]
    %v245 = vld [vmem:[#allocation4 + $0x3f0] sm:$0xff]
    %v246 = vld [vmem:[#allocation4 + $0x3f8] sm:$0xff]
    %v247 = vld [vmem:[#allocation4 + $0x400] sm:$0xff]
    %v248 = vld [vmem:[#allocation4 + $0x408] sm:$0xff]
    %v249 = vld [vmem:[#allocation4 + $0x410] sm:$0xff]
    %v250 = vld [vmem:[#allocation4 + $0x418] sm:$0xff]
    %v251 = vld [vmem:[#allocation4 + $0x420] sm:$0xff]
    %v252 = vld [vmem:[#allocation4 + $0x428] sm:$0xff]
    %v253 = vld [vmem:[#allocation4 + $0x430] sm:$0xff]
    %v254 = vld [vmem:[#allocation4 + $0x438] sm:$0xff]
    %v255 = vld [vmem:[#allocation4 + $0x440] sm:$0xff]
    %v256 = vld [vmem:[#allocation4 + $0x448] sm:$0xff]
    %v257 = vld [vmem:[#allocation4 + $0x450] sm:$0xff]
    %v258 = vld [vmem:[#allocation4 + $0x458] sm:$0xff]
    %v259 = vld [vmem:[#allocation4 + $0x460] sm:$0xff]
    %v260 = vld [vmem:[#allocation4 + $0x468] sm:$0xff]
    %v261 = vld [vmem:[#allocation4 + $0x470] sm:$0xff]
    %v262 = vld [vmem:[#allocation4 + $0x478] sm:$0xff]
    %v263 = vld [vmem:[#allocation4 + $0x480] sm:$0xff]
    %v264 = vld [vmem:[#allocation4 + $0x488] sm:$0xff]
    %v265 = vld [vmem:[#allocation4 + $0x490] sm:$0xff]
    %v266 = vld [vmem:[#allocation4 + $0x498] sm:$0xff]
    %v267 = vld [vmem:[#allocation4 + $0x4a0] sm:$0xff]
    %v268 = vld [vmem:[#allocation4 + $0x4a8] sm:$0xff]
    %v269 = vld [vmem:[#allocation4 + $0x4b0] sm:$0xff]
    %v270 = vld [vmem:[#allocation4 + $0x4b8] sm:$0xff]
    %v271 = vld [vmem:[#allocation4 + $0x4c0] sm:$0xff]
    %v272 = vld [vmem:[#allocation4 + $0x4c8] sm:$0xff]
    %v273 = vld [vmem:[#allocation4 + $0x4d0] sm:$0xff]
    %v274 = vld [vmem:[#allocation4 + $0x4d8] sm:$0xff]
    %v275 = vld [vmem:[#allocation4 + $0x4e0] sm:$0xff]
    %v276 = vld [vmem:[#allocation4 + $0x4e8] sm:$0xff]
    %v277 = vld [vmem:[#allocation4 + $0x4f0] sm:$0xff]
    %v278 = vld [vmem:[#allocation4 + $0x4f8] sm:$0xff]
    %v279 = vld [vmem:[#allocation4 + $0x500] sm:$0xff]
    %v280 = vld [vmem:[#allocation4 + $0x508] sm:$0xff]
    %v281 = vld [vmem:[#allocation4 + $0x510] sm:$0xff]
    %v282 = vld [vmem:[#allocation4 + $0x518] sm:$0xff]
    %v283 = vld [vmem:[#allocation4 + $0x520] sm:$0xff]
    %v284 = vld [vmem:[#allocation4 + $0x528] sm:$0xff]
    %v285 = vld [vmem:[#allocation4 + $0x530] sm:$0xff]
    %v286 = vld [vmem:[#allocation4 + $0x538] sm:$0xff]
    %v287 = vld [vmem:[#allocation4 + $0x540] sm:$0xff]
    %v288 = vld [vmem:[#allocation4 + $0x548] sm:$0xff]
    %v289 = vld [vmem:[#allocation4 + $0x550] sm:$0xff]
    %v290 = vld [vmem:[#allocation4 + $0x558] sm:$0xff]
    %v291 = vld [vmem:[#allocation4 + $0x560] sm:$0xff]
    %v292 = vld [vmem:[#allocation4 + $0x568] sm:$0xff]
    %v293 = vld [vmem:[#allocation4 + $0x570] sm:$0xff]
    %v294 = vld [vmem:[#allocation4 + $0x578] sm:$0xff]
    %v295 = vld [vmem:[#allocation4 + $0x580] sm:$0xff]
    %v296 = vld [vmem:[#allocation4 + $0x588] sm:$0xff]
    %v297 = vld [vmem:[#allocation4 + $0x590] sm:$0xff]
    %v298 = vld [vmem:[#allocation4 + $0x598] sm:$0xff]
    %v299 = vld [vmem:[#allocation4 + $0x5a0] sm:$0xff]
    %v300 = vld [vmem:[#allocation4 + $0x5a8] sm:$0xff]
    %v301 = vld [vmem:[#allocation4 + $0x5b0] sm:$0xff]
    %v302 = vld [vmem:[#allocation4 + $0x5b8] sm:$0xff]
    %v303 = vld [vmem:[#allocation4 + $0x5c0] sm:$0xff]
    %v304 = vld [vmem:[#allocation4 + $0x5c8] sm:$0xff]
    %v305 = vld [vmem:[#allocation4 + $0x5d0] sm:$0xff]
    %v306 = vld [vmem:[#allocation4 + $0x5d8] sm:$0xff]
    %v307 = vld [vmem:[#allocation4 + $0x5e0] sm:$0xff]
    %v308 = vld [vmem:[#allocation4 + $0x5e8] sm:$0xff]
    %v309 = vld [vmem:[#allocation4 + $0x5f0] sm:$0xff]
    %v310 = vld [vmem:[#allocation4 + $0x5f8] sm:$0xff]
    %v311 = vld [vmem:[#allocation4 + $0x600] sm:$0xff]
    %v312 = vld [vmem:[#allocation4 + $0x608] sm:$0xff]
    %v313 = vld [vmem:[#allocation4 + $0x610] sm:$0xff]
    %v314 = vld [vmem:[#allocation4 + $0x618] sm:$0xff]
    %v315 = vld [vmem:[#allocation4 + $0x620] sm:$0xff]
    %v316 = vld [vmem:[#allocation4 + $0x628] sm:$0xff]
    %v317 = vld [vmem:[#allocation4 + $0x630] sm:$0xff]
    %v318 = vld [vmem:[#allocation4 + $0x638] sm:$0xff]
    %v319 = vld [vmem:[#allocation4 + $0x640] sm:$0xff]
    %v320 = vld [vmem:[#allocation4 + $0x648] sm:$0xff]
    %v321 = vld [vmem:[#allocation4 + $0x650] sm:$0xff]
    %v322 = vld [vmem:[#allocation4 + $0x658] sm:$0xff]
    %v323 = vld [vmem:[#allocation4 + $0x660] sm:$0xff]
    %v324 = vld [vmem:[#allocation4 + $0x668] sm:$0xff]
    %v325 = vld [vmem:[#allocation4 + $0x670] sm:$0xff]
    %v326 = vld [vmem:[#allocation4 + $0x678] sm:$0xff]
    %v327 = vld [vmem:[#allocation4 + $0x680] sm:$0xff]
    %v328 = vld [vmem:[#allocation4 + $0x688] sm:$0xff]
    %v329 = vld [vmem:[#allocation4 + $0x690] sm:$0xff]
    %v330 = vld [vmem:[#allocation4 + $0x698] sm:$0xff]
    %v331 = vld [vmem:[#allocation4 + $0x6a0] sm:$0xff]
    %v332 = vld [vmem:[#allocation4 + $0x6a8] sm:$0xff]
    %v333 = vld [vmem:[#allocation4 + $0x6b0] sm:$0xff]
    %v334 = vld [vmem:[#allocation4 + $0x6b8] sm:$0xff]
    %v335 = vld [vmem:[#allocation4 + $0x6c0] sm:$0xff]
    %v336 = vld [vmem:[#allocation4 + $0x6c8] sm:$0xff]
    %v337 = vld [vmem:[#allocation4 + $0x6d0] sm:$0xff]
    %v338 = vld [vmem:[#allocation4 + $0x6d8] sm:$0xff]
    %v339 = vld [vmem:[#allocation4 + $0x6e0] sm:$0xff]
    %v340 = vld [vmem:[#allocation4 + $0x6e8] sm:$0xff]
    %v341 = vld [vmem:[#allocation4 + $0x6f0] sm:$0xff]
    %v342 = vld [vmem:[#allocation4 + $0x6f8] sm:$0xff]
    %v343 = vld [vmem:[#allocation4 + $0x700] sm:$0xff]
    %v344 = vld [vmem:[#allocation4 + $0x708] sm:$0xff]
    %v345 = vld [vmem:[#allocation4 + $0x710] sm:$0xff]
    %v346 = vld [vmem:[#allocation4 + $0x718] sm:$0xff]
    %v347 = vld [vmem:[#allocation4 + $0x720] sm:$0xff]
    %v348 = vld [vmem:[#allocation4 + $0x728] sm:$0xff]
    %v349 = vld [vmem:[#allocation4 + $0x730] sm:$0xff]
    %v350 = vld [vmem:[#allocation4 + $0x738] sm:$0xff]
    %v351 = vld [vmem:[#allocation4 + $0x740] sm:$0xff]
    %v352 = vld [vmem:[#allocation4 + $0x748] sm:$0xff]
    %v353 = vld [vmem:[#allocation4 + $0x750] sm:$0xff]
    %v354 = vld [vmem:[#allocation4 + $0x758] sm:$0xff]
    %v355 = vld [vmem:[#allocation4 + $0x760] sm:$0xff]
    %v356 = vld [vmem:[#allocation4 + $0x768] sm:$0xff]
    %v357 = vld [vmem:[#allocation4 + $0x770] sm:$0xff]
    %v358 = vld [vmem:[#allocation4 + $0x778] sm:$0xff]
    %v359 = vld [vmem:[#allocation4 + $0x780] sm:$0xff]
    %v360 = vld [vmem:[#allocation4 + $0x788] sm:$0xff]
    %v361 = vld [vmem:[#allocation4 + $0x790] sm:$0xff]
    %v362 = vld [vmem:[#allocation4 + $0x798] sm:$0xff]
    %v363 = vld [vmem:[#allocation4 + $0x7a0] sm:$0xff]
    %v364 = vld [vmem:[#allocation4 + $0x7a8] sm:$0xff]
    %v365 = vld [vmem:[#allocation4 + $0x7b0] sm:$0xff]
    %v366 = vld [vmem:[#allocation4 + $0x7b8] sm:$0xff]
    %v367 = vld [vmem:[#allocation4 + $0x7c0] sm:$0xff]
    %v368 = vld [vmem:[#allocation4 + $0x7c8] sm:$0xff]
    %v369 = vld [vmem:[#allocation4 + $0x7d0] sm:$0xff]
    %v370 = vld [vmem:[#allocation4 + $0x7d8] sm:$0xff]
    %v371 = vld [vmem:[#allocation4 + $0x7e0] sm:$0xff]
    %v372 = vld [vmem:[#allocation4 + $0x7e8] sm:$0xff]
    %v373 = vld [vmem:[#allocation4 + $0x7f0] sm:$0xff]
    %v374 = vld [vmem:[#allocation4 + $0x7f8] sm:$0xff]
    %v375 = vld [vmem:[#allocation6] sm:$0xff]
    %v377 = vlaneseq
    %v378 = vshrl.u32 %v377, 7
    %v379 = vsub.s32 0, %v378
    %v380 = vrot.slane %v375, %v379
    %v381 = vlaneseq
    %v382 = vshrl.u32 %v381, 7
    %v383 = vsub.s32 1, %v382
    %v384 = vrot.slane %v375, %v383
    %v385 = vlaneseq
    %v386 = vshrl.u32 %v385, 7
    %v387 = vsub.s32 2, %v386
    %v388 = vrot.slane %v375, %v387
    %v389 = vlaneseq
    %v390 = vshrl.u32 %v389, 7
    %v391 = vsub.s32 3, %v390
    %v392 = vrot.slane %v375, %v391
    %v393 = vlaneseq
    %v394 = vshrl.u32 %v393, 7
    %v395 = vsub.s32 4, %v394
    %v396 = vrot.slane %v375, %v395
    %v397 = vlaneseq
    %v398 = vshrl.u32 %v397, 7
    %v399 = vsub.s32 5, %v398
    %v400 = vrot.slane %v375, %v399
    %v401 = vlaneseq
    %v402 = vshrl.u32 %v401, 7
    %v403 = vsub.s32 6, %v402
    %v404 = vrot.slane %v375, %v403
    %v405 = vlaneseq
    %v406 = vshrl.u32 %v405, 7
    %v407 = vsub.s32 7, %v406
    %v408 = vrot.slane %v375, %v407
    %v673 = vunpack.c.l.b16 %v119
    %v674 = vunpack.c.h.b16 %v119
    %v675 = vunpack.c.l.b16 %v120
    %v676 = vunpack.c.h.b16 %v120
    %v677 = vunpack.c.l.b16 %v121
    %v678 = vunpack.c.h.b16 %v121
    %v679 = vunpack.c.l.b16 %v122
    %v680 = vunpack.c.h.b16 %v122
    %v681 = vunpack.c.l.b16 %v123
    %v682 = vunpack.c.h.b16 %v123
    %v683 = vunpack.c.l.b16 %v124
    %v684 = vunpack.c.h.b16 %v124
    %v685 = vunpack.c.l.b16 %v125
    %v686 = vunpack.c.h.b16 %v125
    %v687 = vunpack.c.l.b16 %v126
    %v688 = vunpack.c.h.b16 %v126
    %v689 = vunpack.c.l.b16 %v127
    %v690 = vunpack.c.h.b16 %v127
    %v691 = vunpack.c.l.b16 %v128
    %v692 = vunpack.c.h.b16 %v128
    %v693 = vunpack.c.l.b16 %v129
    %v694 = vunpack.c.h.b16 %v129
    %v695 = vunpack.c.l.b16 %v130
    %v696 = vunpack.c.h.b16 %v130
    %v697 = vunpack.c.l.b16 %v131
    %v698 = vunpack.c.h.b16 %v131
    %v699 = vunpack.c.l.b16 %v132
    %v700 = vunpack.c.h.b16 %v132
    %v701 = vunpack.c.l.b16 %v133
    %v702 = vunpack.c.h.b16 %v133
    %v703 = vunpack.c.l.b16 %v134
    %v704 = vunpack.c.h.b16 %v134
    %v705 = vunpack.c.l.b16 %v135
    %v706 = vunpack.c.h.b16 %v135
    %v707 = vunpack.c.l.b16 %v136
    %v708 = vunpack.c.h.b16 %v136
    %v709 = vunpack.c.l.b16 %v137
    %v710 = vunpack.c.h.b16 %v137
    %v711 = vunpack.c.l.b16 %v138
    %v712 = vunpack.c.h.b16 %v138
    %v713 = vunpack.c.l.b16 %v139
    %v714 = vunpack.c.h.b16 %v139
    %v715 = vunpack.c.l.b16 %v140
    %v716 = vunpack.c.h.b16 %v140
    %v717 = vunpack.c.l.b16 %v141
    %v718 = vunpack.c.h.b16 %v141
    %v719 = vunpack.c.l.b16 %v142
    %v720 = vunpack.c.h.b16 %v142
    %v721 = vunpack.c.l.b16 %v143
    %v722 = vunpack.c.h.b16 %v143
    %v723 = vunpack.c.l.b16 %v144
    %v724 = vunpack.c.h.b16 %v144
    %v725 = vunpack.c.l.b16 %v145
    %v726 = vunpack.c.h.b16 %v145
    %v727 = vunpack.c.l.b16 %v146
    %v728 = vunpack.c.h.b16 %v146
    %v729 = vunpack.c.l.b16 %v147
    %v730 = vunpack.c.h.b16 %v147
    %v731 = vunpack.c.l.b16 %v148
    %v732 = vunpack.c.h.b16 %v148
    %v733 = vunpack.c.l.b16 %v149
    %v734 = vunpack.c.h.b16 %v149
    %v735 = vunpack.c.l.b16 %v150
    %v736 = vunpack.c.h.b16 %v150
    %v737 = vunpack.c.l.b16 %v151
    %v738 = vunpack.c.h.b16 %v151
    %v739 = vunpack.c.l.b16 %v152
    %v740 = vunpack.c.h.b16 %v152
    %v741 = vunpack.c.l.b16 %v153
    %v742 = vunpack.c.h.b16 %v153
    %v743 = vunpack.c.l.b16 %v154
    %v744 = vunpack.c.h.b16 %v154
    %v745 = vunpack.c.l.b16 %v155
    %v746 = vunpack.c.h.b16 %v155
    %v747 = vunpack.c.l.b16 %v156
    %v748 = vunpack.c.h.b16 %v156
    %v749 = vunpack.c.l.b16 %v157
    %v750 = vunpack.c.h.b16 %v157
    %v751 = vunpack.c.l.b16 %v158
    %v752 = vunpack.c.h.b16 %v158
    %v753 = vunpack.c.l.b16 %v159
    %v754 = vunpack.c.h.b16 %v159
    %v755 = vunpack.c.l.b16 %v160
    %v756 = vunpack.c.h.b16 %v160
    %v757 = vunpack.c.l.b16 %v161
    %v758 = vunpack.c.h.b16 %v161
    %v759 = vunpack.c.l.b16 %v162
    %v760 = vunpack.c.h.b16 %v162
    %v761 = vunpack.c.l.b16 %v163
    %v762 = vunpack.c.h.b16 %v163
    %v763 = vunpack.c.l.b16 %v164
    %v764 = vunpack.c.h.b16 %v164
    %v765 = vunpack.c.l.b16 %v165
    %v766 = vunpack.c.h.b16 %v165
    %v767 = vunpack.c.l.b16 %v166
    %v768 = vunpack.c.h.b16 %v166
    %v769 = vunpack.c.l.b16 %v167
    %v770 = vunpack.c.h.b16 %v167
    %v771 = vunpack.c.l.b16 %v168
    %v772 = vunpack.c.h.b16 %v168
    %v773 = vunpack.c.l.b16 %v169
    %v774 = vunpack.c.h.b16 %v169
    %v775 = vunpack.c.l.b16 %v170
    %v776 = vunpack.c.h.b16 %v170
    %v777 = vunpack.c.l.b16 %v171
    %v778 = vunpack.c.h.b16 %v171
    %v779 = vunpack.c.l.b16 %v172
    %v780 = vunpack.c.h.b16 %v172
    %v781 = vunpack.c.l.b16 %v173
    %v782 = vunpack.c.h.b16 %v173
    %v783 = vunpack.c.l.b16 %v174
    %v784 = vunpack.c.h.b16 %v174
    %v785 = vunpack.c.l.b16 %v175
    %v786 = vunpack.c.h.b16 %v175
    %v787 = vunpack.c.l.b16 %v176
    %v788 = vunpack.c.h.b16 %v176
    %v789 = vunpack.c.l.b16 %v177
    %v790 = vunpack.c.h.b16 %v177
    %v791 = vunpack.c.l.b16 %v178
    %v792 = vunpack.c.h.b16 %v178
    %v793 = vunpack.c.l.b16 %v179
    %v794 = vunpack.c.h.b16 %v179
    %v795 = vunpack.c.l.b16 %v180
    %v796 = vunpack.c.h.b16 %v180
    %v797 = vunpack.c.l.b16 %v181
    %v798 = vunpack.c.h.b16 %v181
    %v799 = vunpack.c.l.b16 %v182
    %v800 = vunpack.c.h.b16 %v182
    %v801 = vunpack.c.l.b16 %v183
    %v802 = vunpack.c.h.b16 %v183
    %v803 = vunpack.c.l.b16 %v184
    %v804 = vunpack.c.h.b16 %v184
    %v805 = vunpack.c.l.b16 %v185
    %v806 = vunpack.c.h.b16 %v185
    %v807 = vunpack.c.l.b16 %v186
    %v808 = vunpack.c.h.b16 %v186
    %v809 = vunpack.c.l.b16 %v187
    %v810 = vunpack.c.h.b16 %v187
    %v811 = vunpack.c.l.b16 %v188
    %v812 = vunpack.c.h.b16 %v188
    %v813 = vunpack.c.l.b16 %v189
    %v814 = vunpack.c.h.b16 %v189
    %v815 = vunpack.c.l.b16 %v190
    %v816 = vunpack.c.h.b16 %v190
    %v817 = vunpack.c.l.b16 %v191
    %v818 = vunpack.c.h.b16 %v191
    %v819 = vunpack.c.l.b16 %v192
    %v820 = vunpack.c.h.b16 %v192
    %v821 = vunpack.c.l.b16 %v193
    %v822 = vunpack.c.h.b16 %v193
    %v823 = vunpack.c.l.b16 %v194
    %v824 = vunpack.c.h.b16 %v194
    %v825 = vunpack.c.l.b16 %v195
    %v826 = vunpack.c.h.b16 %v195
    %v827 = vunpack.c.l.b16 %v196
    %v828 = vunpack.c.h.b16 %v196
    %v829 = vunpack.c.l.b16 %v197
    %v830 = vunpack.c.h.b16 %v197
    %v831 = vunpack.c.l.b16 %v198
    %v832 = vunpack.c.h.b16 %v198
    %v833 = vunpack.c.l.b16 %v199
    %v834 = vunpack.c.h.b16 %v199
    %v835 = vunpack.c.l.b16 %v200
    %v836 = vunpack.c.h.b16 %v200
    %v837 = vunpack.c.l.b16 %v201
    %v838 = vunpack.c.h.b16 %v201
    %v839 = vunpack.c.l.b16 %v202
    %v840 = vunpack.c.h.b16 %v202
    %v841 = vunpack.c.l.b16 %v203
    %v842 = vunpack.c.h.b16 %v203
    %v843 = vunpack.c.l.b16 %v204
    %v844 = vunpack.c.h.b16 %v204
    %v845 = vunpack.c.l.b16 %v205
    %v846 = vunpack.c.h.b16 %v205
    %v847 = vunpack.c.l.b16 %v206
    %v848 = vunpack.c.h.b16 %v206
    %v849 = vunpack.c.l.b16 %v207
    %v850 = vunpack.c.h.b16 %v207
    %v851 = vunpack.c.l.b16 %v208
    %v852 = vunpack.c.h.b16 %v208
    %v853 = vunpack.c.l.b16 %v209
    %v854 = vunpack.c.h.b16 %v209
    %v855 = vunpack.c.l.b16 %v210
    %v856 = vunpack.c.h.b16 %v210
    %v857 = vunpack.c.l.b16 %v211
    %v858 = vunpack.c.h.b16 %v211
    %v859 = vunpack.c.l.b16 %v212
    %v860 = vunpack.c.h.b16 %v212
    %v861 = vunpack.c.l.b16 %v213
    %v862 = vunpack.c.h.b16 %v213
    %v863 = vunpack.c.l.b16 %v214
    %v864 = vunpack.c.h.b16 %v214
    %v865 = vunpack.c.l.b16 %v215
    %v866 = vunpack.c.h.b16 %v215
    %v867 = vunpack.c.l.b16 %v216
    %v868 = vunpack.c.h.b16 %v216
    %v869 = vunpack.c.l.b16 %v217
    %v870 = vunpack.c.h.b16 %v217
    %v871 = vunpack.c.l.b16 %v218
    %v872 = vunpack.c.h.b16 %v218
    %v873 = vunpack.c.l.b16 %v219
    %v874 = vunpack.c.h.b16 %v219
    %v875 = vunpack.c.l.b16 %v220
    %v876 = vunpack.c.h.b16 %v220
    %v877 = vunpack.c.l.b16 %v221
    %v878 = vunpack.c.h.b16 %v221
    %v879 = vunpack.c.l.b16 %v222
    %v880 = vunpack.c.h.b16 %v222
    %v881 = vunpack.c.l.b16 %v223
    %v882 = vunpack.c.h.b16 %v223
    %v883 = vunpack.c.l.b16 %v224
    %v884 = vunpack.c.h.b16 %v224
    %v885 = vunpack.c.l.b16 %v225
    %v886 = vunpack.c.h.b16 %v225
    %v887 = vunpack.c.l.b16 %v226
    %v888 = vunpack.c.h.b16 %v226
    %v889 = vunpack.c.l.b16 %v227
    %v890 = vunpack.c.h.b16 %v227
    %v891 = vunpack.c.l.b16 %v228
    %v892 = vunpack.c.h.b16 %v228
    %v893 = vunpack.c.l.b16 %v229
    %v894 = vunpack.c.h.b16 %v229
    %v895 = vunpack.c.l.b16 %v230
    %v896 = vunpack.c.h.b16 %v230
    %v897 = vunpack.c.l.b16 %v231
    %v898 = vunpack.c.h.b16 %v231
    %v899 = vunpack.c.l.b16 %v232
    %v900 = vunpack.c.h.b16 %v232
    %v901 = vunpack.c.l.b16 %v233
    %v902 = vunpack.c.h.b16 %v233
    %v903 = vunpack.c.l.b16 %v234
    %v904 = vunpack.c.h.b16 %v234
    %v905 = vunpack.c.l.b16 %v235
    %v906 = vunpack.c.h.b16 %v235
    %v907 = vunpack.c.l.b16 %v236
    %v908 = vunpack.c.h.b16 %v236
    %v909 = vunpack.c.l.b16 %v237
    %v910 = vunpack.c.h.b16 %v237
    %v911 = vunpack.c.l.b16 %v238
    %v912 = vunpack.c.h.b16 %v238
    %v913 = vunpack.c.l.b16 %v239
    %v914 = vunpack.c.h.b16 %v239
    %v915 = vunpack.c.l.b16 %v240
    %v916 = vunpack.c.h.b16 %v240
    %v917 = vunpack.c.l.b16 %v241
    %v918 = vunpack.c.h.b16 %v241
    %v919 = vunpack.c.l.b16 %v242
    %v920 = vunpack.c.h.b16 %v242
    %v921 = vunpack.c.l.b16 %v243
    %v922 = vunpack.c.h.b16 %v243
    %v923 = vunpack.c.l.b16 %v244
    %v924 = vunpack.c.h.b16 %v244
    %v925 = vunpack.c.l.b16 %v245
    %v926 = vunpack.c.h.b16 %v245
    %v927 = vunpack.c.l.b16 %v246
    %v928 = vunpack.c.h.b16 %v246
    %v929 = vunpack.c.l.b16 %v247
    %v930 = vunpack.c.h.b16 %v247
    %v931 = vunpack.c.l.b16 %v248
    %v932 = vunpack.c.h.b16 %v248
    %v933 = vunpack.c.l.b16 %v249
    %v934 = vunpack.c.h.b16 %v249
    %v935 = vunpack.c.l.b16 %v250
    %v936 = vunpack.c.h.b16 %v250
    %v937 = vunpack.c.l.b16 %v251
    %v938 = vunpack.c.h.b16 %v251
    %v939 = vunpack.c.l.b16 %v252
    %v940 = vunpack.c.h.b16 %v252
    %v941 = vunpack.c.l.b16 %v253
    %v942 = vunpack.c.h.b16 %v253
    %v943 = vunpack.c.l.b16 %v254
    %v944 = vunpack.c.h.b16 %v254
    %v945 = vunpack.c.l.b16 %v255
    %v946 = vunpack.c.h.b16 %v255
    %v947 = vunpack.c.l.b16 %v256
    %v948 = vunpack.c.h.b16 %v256
    %v949 = vunpack.c.l.b16 %v257
    %v950 = vunpack.c.h.b16 %v257
    %v951 = vunpack.c.l.b16 %v258
    %v952 = vunpack.c.h.b16 %v258
    %v953 = vunpack.c.l.b16 %v259
    %v954 = vunpack.c.h.b16 %v259
    %v955 = vunpack.c.l.b16 %v260
    %v956 = vunpack.c.h.b16 %v260
    %v957 = vunpack.c.l.b16 %v261
    %v958 = vunpack.c.h.b16 %v261
    %v959 = vunpack.c.l.b16 %v262
    %v960 = vunpack.c.h.b16 %v262
    %v961 = vunpack.c.l.b16 %v263
    %v962 = vunpack.c.h.b16 %v263
    %v963 = vunpack.c.l.b16 %v264
    %v964 = vunpack.c.h.b16 %v264
    %v965 = vunpack.c.l.b16 %v265
    %v966 = vunpack.c.h.b16 %v265
    %v967 = vunpack.c.l.b16 %v266
    %v968 = vunpack.c.h.b16 %v266
    %v969 = vunpack.c.l.b16 %v267
    %v970 = vunpack.c.h.b16 %v267
    %v971 = vunpack.c.l.b16 %v268
    %v972 = vunpack.c.h.b16 %v268
    %v973 = vunpack.c.l.b16 %v269
    %v974 = vunpack.c.h.b16 %v269
    %v975 = vunpack.c.l.b16 %v270
    %v976 = vunpack.c.h.b16 %v270
    %v977 = vunpack.c.l.b16 %v271
    %v978 = vunpack.c.h.b16 %v271
    %v979 = vunpack.c.l.b16 %v272
    %v980 = vunpack.c.h.b16 %v272
    %v981 = vunpack.c.l.b16 %v273
    %v982 = vunpack.c.h.b16 %v273
    %v983 = vunpack.c.l.b16 %v274
    %v984 = vunpack.c.h.b16 %v274
    %v985 = vunpack.c.l.b16 %v275
    %v986 = vunpack.c.h.b16 %v275
    %v987 = vunpack.c.l.b16 %v276
    %v988 = vunpack.c.h.b16 %v276
    %v989 = vunpack.c.l.b16 %v277
    %v990 = vunpack.c.h.b16 %v277
    %v991 = vunpack.c.l.b16 %v278
    %v992 = vunpack.c.h.b16 %v278
    %v993 = vunpack.c.l.b16 %v279
    %v994 = vunpack.c.h.b16 %v279
    %v995 = vunpack.c.l.b16 %v280
    %v996 = vunpack.c.h.b16 %v280
    %v997 = vunpack.c.l.b16 %v281
    %v998 = vunpack.c.h.b16 %v281
    %v999 = vunpack.c.l.b16 %v282
    %v1000 = vunpack.c.h.b16 %v282
    %v1001 = vunpack.c.l.b16 %v283
    %v1002 = vunpack.c.h.b16 %v283
    %v1003 = vunpack.c.l.b16 %v284
    %v1004 = vunpack.c.h.b16 %v284
    %v1005 = vunpack.c.l.b16 %v285
    %v1006 = vunpack.c.h.b16 %v285
    %v1007 = vunpack.c.l.b16 %v286
    %v1008 = vunpack.c.h.b16 %v286
    %v1009 = vunpack.c.l.b16 %v287
    %v1010 = vunpack.c.h.b16 %v287
    %v1011 = vunpack.c.l.b16 %v288
    %v1012 = vunpack.c.h.b16 %v288
    %v1013 = vunpack.c.l.b16 %v289
    %v1014 = vunpack.c.h.b16 %v289
    %v1015 = vunpack.c.l.b16 %v290
    %v1016 = vunpack.c.h.b16 %v290
    %v1017 = vunpack.c.l.b16 %v291
    %v1018 = vunpack.c.h.b16 %v291
    %v1019 = vunpack.c.l.b16 %v292
    %v1020 = vunpack.c.h.b16 %v292
    %v1021 = vunpack.c.l.b16 %v293
    %v1022 = vunpack.c.h.b16 %v293
    %v1023 = vunpack.c.l.b16 %v294
    %v1024 = vunpack.c.h.b16 %v294
    %v1025 = vunpack.c.l.b16 %v295
    %v1026 = vunpack.c.h.b16 %v295
    %v1027 = vunpack.c.l.b16 %v296
    %v1028 = vunpack.c.h.b16 %v296
    %v1029 = vunpack.c.l.b16 %v297
    %v1030 = vunpack.c.h.b16 %v297
    %v1031 = vunpack.c.l.b16 %v298
    %v1032 = vunpack.c.h.b16 %v298
    %v1033 = vunpack.c.l.b16 %v299
    %v1034 = vunpack.c.h.b16 %v299
    %v1035 = vunpack.c.l.b16 %v300
    %v1036 = vunpack.c.h.b16 %v300
    %v1037 = vunpack.c.l.b16 %v301
    %v1038 = vunpack.c.h.b16 %v301
    %v1039 = vunpack.c.l.b16 %v302
    %v1040 = vunpack.c.h.b16 %v302
    %v1041 = vunpack.c.l.b16 %v303
    %v1042 = vunpack.c.h.b16 %v303
    %v1043 = vunpack.c.l.b16 %v304
    %v1044 = vunpack.c.h.b16 %v304
    %v1045 = vunpack.c.l.b16 %v305
    %v1046 = vunpack.c.h.b16 %v305
    %v1047 = vunpack.c.l.b16 %v306
    %v1048 = vunpack.c.h.b16 %v306
    %v1049 = vunpack.c.l.b16 %v307
    %v1050 = vunpack.c.h.b16 %v307
    %v1051 = vunpack.c.l.b16 %v308
    %v1052 = vunpack.c.h.b16 %v308
    %v1053 = vunpack.c.l.b16 %v309
    %v1054 = vunpack.c.h.b16 %v309
    %v1055 = vunpack.c.l.b16 %v310
    %v1056 = vunpack.c.h.b16 %v310
    %v1057 = vunpack.c.l.b16 %v311
    %v1058 = vunpack.c.h.b16 %v311
    %v1059 = vunpack.c.l.b16 %v312
    %v1060 = vunpack.c.h.b16 %v312
    %v1061 = vunpack.c.l.b16 %v313
    %v1062 = vunpack.c.h.b16 %v313
    %v1063 = vunpack.c.l.b16 %v314
    %v1064 = vunpack.c.h.b16 %v314
    %v1065 = vunpack.c.l.b16 %v315
    %v1066 = vunpack.c.h.b16 %v315
    %v1067 = vunpack.c.l.b16 %v316
    %v1068 = vunpack.c.h.b16 %v316
    %v1069 = vunpack.c.l.b16 %v317
    %v1070 = vunpack.c.h.b16 %v317
    %v1071 = vunpack.c.l.b16 %v318
    %v1072 = vunpack.c.h.b16 %v318
    %v1073 = vunpack.c.l.b16 %v319
    %v1074 = vunpack.c.h.b16 %v319
    %v1075 = vunpack.c.l.b16 %v320
    %v1076 = vunpack.c.h.b16 %v320
    %v1077 = vunpack.c.l.b16 %v321
    %v1078 = vunpack.c.h.b16 %v321
    %v1079 = vunpack.c.l.b16 %v322
    %v1080 = vunpack.c.h.b16 %v322
    %v1081 = vunpack.c.l.b16 %v323
    %v1082 = vunpack.c.h.b16 %v323
    %v1083 = vunpack.c.l.b16 %v324
    %v1084 = vunpack.c.h.b16 %v324
    %v1085 = vunpack.c.l.b16 %v325
    %v1086 = vunpack.c.h.b16 %v325
    %v1087 = vunpack.c.l.b16 %v326
    %v1088 = vunpack.c.h.b16 %v326
    %v1089 = vunpack.c.l.b16 %v327
    %v1090 = vunpack.c.h.b16 %v327
    %v1091 = vunpack.c.l.b16 %v328
    %v1092 = vunpack.c.h.b16 %v328
    %v1093 = vunpack.c.l.b16 %v329
    %v1094 = vunpack.c.h.b16 %v329
    %v1095 = vunpack.c.l.b16 %v330
    %v1096 = vunpack.c.h.b16 %v330
    %v1097 = vunpack.c.l.b16 %v331
    %v1098 = vunpack.c.h.b16 %v331
    %v1099 = vunpack.c.l.b16 %v332
    %v1100 = vunpack.c.h.b16 %v332
    %v1101 = vunpack.c.l.b16 %v333
    %v1102 = vunpack.c.h.b16 %v333
    %v1103 = vunpack.c.l.b16 %v334
    %v1104 = vunpack.c.h.b16 %v334
    %v1105 = vunpack.c.l.b16 %v335
    %v1106 = vunpack.c.h.b16 %v335
    %v1107 = vunpack.c.l.b16 %v336
    %v1108 = vunpack.c.h.b16 %v336
    %v1109 = vunpack.c.l.b16 %v337
    %v1110 = vunpack.c.h.b16 %v337
    %v1111 = vunpack.c.l.b16 %v338
    %v1112 = vunpack.c.h.b16 %v338
    %v1113 = vunpack.c.l.b16 %v339
    %v1114 = vunpack.c.h.b16 %v339
    %v1115 = vunpack.c.l.b16 %v340
    %v1116 = vunpack.c.h.b16 %v340
    %v1117 = vunpack.c.l.b16 %v341
    %v1118 = vunpack.c.h.b16 %v341
    %v1119 = vunpack.c.l.b16 %v342
    %v1120 = vunpack.c.h.b16 %v342
    %v1121 = vunpack.c.l.b16 %v343
    %v1122 = vunpack.c.h.b16 %v343
    %v1123 = vunpack.c.l.b16 %v344
    %v1124 = vunpack.c.h.b16 %v344
    %v1125 = vunpack.c.l.b16 %v345
    %v1126 = vunpack.c.h.b16 %v345
    %v1127 = vunpack.c.l.b16 %v346
    %v1128 = vunpack.c.h.b16 %v346
    %v1129 = vunpack.c.l.b16 %v347
    %v1130 = vunpack.c.h.b16 %v347
    %v1131 = vunpack.c.l.b16 %v348
    %v1132 = vunpack.c.h.b16 %v348
    %v1133 = vunpack.c.l.b16 %v349
    %v1134 = vunpack.c.h.b16 %v349
    %v1135 = vunpack.c.l.b16 %v350
    %v1136 = vunpack.c.h.b16 %v350
    %v1137 = vunpack.c.l.b16 %v351
    %v1138 = vunpack.c.h.b16 %v351
    %v1139 = vunpack.c.l.b16 %v352
    %v1140 = vunpack.c.h.b16 %v352
    %v1141 = vunpack.c.l.b16 %v353
    %v1142 = vunpack.c.h.b16 %v353
    %v1143 = vunpack.c.l.b16 %v354
    %v1144 = vunpack.c.h.b16 %v354
    %v1145 = vunpack.c.l.b16 %v355
    %v1146 = vunpack.c.h.b16 %v355
    %v1147 = vunpack.c.l.b16 %v356
    %v1148 = vunpack.c.h.b16 %v356
    %v1149 = vunpack.c.l.b16 %v357
    %v1150 = vunpack.c.h.b16 %v357
    %v1151 = vunpack.c.l.b16 %v358
    %v1152 = vunpack.c.h.b16 %v358
    %v1153 = vunpack.c.l.b16 %v359
    %v1154 = vunpack.c.h.b16 %v359
    %v1155 = vunpack.c.l.b16 %v360
    %v1156 = vunpack.c.h.b16 %v360
    %v1157 = vunpack.c.l.b16 %v361
    %v1158 = vunpack.c.h.b16 %v361
    %v1159 = vunpack.c.l.b16 %v362
    %v1160 = vunpack.c.h.b16 %v362
    %v1161 = vunpack.c.l.b16 %v363
    %v1162 = vunpack.c.h.b16 %v363
    %v1163 = vunpack.c.l.b16 %v364
    %v1164 = vunpack.c.h.b16 %v364
    %v1165 = vunpack.c.l.b16 %v365
    %v1166 = vunpack.c.h.b16 %v365
    %v1167 = vunpack.c.l.b16 %v366
    %v1168 = vunpack.c.h.b16 %v366
    %v1169 = vunpack.c.l.b16 %v367
    %v1170 = vunpack.c.h.b16 %v367
    %v1171 = vunpack.c.l.b16 %v368
    %v1172 = vunpack.c.h.b16 %v368
    %v1173 = vunpack.c.l.b16 %v369
    %v1174 = vunpack.c.h.b16 %v369
    %v1175 = vunpack.c.l.b16 %v370
    %v1176 = vunpack.c.h.b16 %v370
    %v1177 = vunpack.c.l.b16 %v371
    %v1178 = vunpack.c.h.b16 %v371
    %v1179 = vunpack.c.l.b16 %v372
    %v1180 = vunpack.c.h.b16 %v372
    %v1181 = vunpack.c.l.b16 %v373
    %v1182 = vunpack.c.h.b16 %v373
    %v1183 = vunpack.c.l.b16 %v374
    %v1184 = vunpack.c.h.b16 %v374
    %v1185 = vpack.c.b16 %v681, %v673
    %v1186 = vpack.c.b16 %v682, %v674
    %v1187 = vpack.c.b16 %v683, %v675
    %v1188 = vpack.c.b16 %v684, %v676
    %v1189 = vpack.c.b16 %v685, %v677
    %v1190 = vpack.c.b16 %v686, %v678
    %v1191 = vpack.c.b16 %v687, %v679
    %v1192 = vpack.c.b16 %v688, %v680
    %v1193 = vpack.c.b16 %v697, %v689
    %v1194 = vpack.c.b16 %v698, %v690
    %v1195 = vpack.c.b16 %v699, %v691
    %v1196 = vpack.c.b16 %v700, %v692
    %v1197 = vpack.c.b16 %v701, %v693
    %v1198 = vpack.c.b16 %v702, %v694
    %v1199 = vpack.c.b16 %v703, %v695
    %v1200 = vpack.c.b16 %v704, %v696
    %v1201 = vpack.c.b16 %v713, %v705
    %v1202 = vpack.c.b16 %v714, %v706
    %v1203 = vpack.c.b16 %v715, %v707
    %v1204 = vpack.c.b16 %v716, %v708
    %v1205 = vpack.c.b16 %v717, %v709
    %v1206 = vpack.c.b16 %v718, %v710
    %v1207 = vpack.c.b16 %v719, %v711
    %v1208 = vpack.c.b16 %v720, %v712
    %v1209 = vpack.c.b16 %v729, %v721
    %v1210 = vpack.c.b16 %v730, %v722
    %v1211 = vpack.c.b16 %v731, %v723
    %v1212 = vpack.c.b16 %v732, %v724
    %v1213 = vpack.c.b16 %v733, %v725
    %v1214 = vpack.c.b16 %v734, %v726
    %v1215 = vpack.c.b16 %v735, %v727
    %v1216 = vpack.c.b16 %v736, %v728
    %v1217 = vpack.c.b16 %v745, %v737
    %v1218 = vpack.c.b16 %v746, %v738
    %v1219 = vpack.c.b16 %v747, %v739
    %v1220 = vpack.c.b16 %v748, %v740
    %v1221 = vpack.c.b16 %v749, %v741
    %v1222 = vpack.c.b16 %v750, %v742
    %v1223 = vpack.c.b16 %v751, %v743
    %v1224 = vpack.c.b16 %v752, %v744
    %v1225 = vpack.c.b16 %v761, %v753
    %v1226 = vpack.c.b16 %v762, %v754
    %v1227 = vpack.c.b16 %v763, %v755
    %v1228 = vpack.c.b16 %v764, %v756
    %v1229 = vpack.c.b16 %v765, %v757
    %v1230 = vpack.c.b16 %v766, %v758
    %v1231 = vpack.c.b16 %v767, %v759
    %v1232 = vpack.c.b16 %v768, %v760
    %v1233 = vpack.c.b16 %v777, %v769
    %v1234 = vpack.c.b16 %v778, %v770
    %v1235 = vpack.c.b16 %v779, %v771
    %v1236 = vpack.c.b16 %v780, %v772
    %v1237 = vpack.c.b16 %v781, %v773
    %v1238 = vpack.c.b16 %v782, %v774
    %v1239 = vpack.c.b16 %v783, %v775
    %v1240 = vpack.c.b16 %v784, %v776
    %v1241 = vpack.c.b16 %v793, %v785
    %v1242 = vpack.c.b16 %v794, %v786
    %v1243 = vpack.c.b16 %v795, %v787
    %v1244 = vpack.c.b16 %v796, %v788
    %v1245 = vpack.c.b16 %v797, %v789
    %v1246 = vpack.c.b16 %v798, %v790
    %v1247 = vpack.c.b16 %v799, %v791
    %v1248 = vpack.c.b16 %v800, %v792
    %v1249 = vpack.c.b16 %v809, %v801
    %v1250 = vpack.c.b16 %v810, %v802
    %v1251 = vpack.c.b16 %v811, %v803
    %v1252 = vpack.c.b16 %v812, %v804
    %v1253 = vpack.c.b16 %v813, %v805
    %v1254 = vpack.c.b16 %v814, %v806
    %v1255 = vpack.c.b16 %v815, %v807
    %v1256 = vpack.c.b16 %v816, %v808
    %v1257 = vpack.c.b16 %v825, %v817
    %v1258 = vpack.c.b16 %v826, %v818
    %v1259 = vpack.c.b16 %v827, %v819
    %v1260 = vpack.c.b16 %v828, %v820
    %v1261 = vpack.c.b16 %v829, %v821
    %v1262 = vpack.c.b16 %v830, %v822
    %v1263 = vpack.c.b16 %v831, %v823
    %v1264 = vpack.c.b16 %v832, %v824
    %v1265 = vpack.c.b16 %v841, %v833
    %v1266 = vpack.c.b16 %v842, %v834
    %v1267 = vpack.c.b16 %v843, %v835
    %v1268 = vpack.c.b16 %v844, %v836
    %v1269 = vpack.c.b16 %v845, %v837
    %v1270 = vpack.c.b16 %v846, %v838
    %v1271 = vpack.c.b16 %v847, %v839
    %v1272 = vpack.c.b16 %v848, %v840
    %v1273 = vpack.c.b16 %v857, %v849
    %v1274 = vpack.c.b16 %v858, %v850
    %v1275 = vpack.c.b16 %v859, %v851
    %v1276 = vpack.c.b16 %v860, %v852
    %v1277 = vpack.c.b16 %v861, %v853
    %v1278 = vpack.c.b16 %v862, %v854
    %v1279 = vpack.c.b16 %v863, %v855
    %v1280 = vpack.c.b16 %v864, %v856
    %v1281 = vpack.c.b16 %v873, %v865
    %v1282 = vpack.c.b16 %v874, %v866
    %v1283 = vpack.c.b16 %v875, %v867
    %v1284 = vpack.c.b16 %v876, %v868
    %v1285 = vpack.c.b16 %v877, %v869
    %v1286 = vpack.c.b16 %v878, %v870
    %v1287 = vpack.c.b16 %v879, %v871
    %v1288 = vpack.c.b16 %v880, %v872
    %v1289 = vpack.c.b16 %v889, %v881
    %v1290 = vpack.c.b16 %v890, %v882
    %v1291 = vpack.c.b16 %v891, %v883
    %v1292 = vpack.c.b16 %v892, %v884
    %v1293 = vpack.c.b16 %v893, %v885
    %v1294 = vpack.c.b16 %v894, %v886
    %v1295 = vpack.c.b16 %v895, %v887
    %v1296 = vpack.c.b16 %v896, %v888
    %v1297 = vpack.c.b16 %v905, %v897
    %v1298 = vpack.c.b16 %v906, %v898
    %v1299 = vpack.c.b16 %v907, %v899
    %v1300 = vpack.c.b16 %v908, %v900
    %v1301 = vpack.c.b16 %v909, %v901
    %v1302 = vpack.c.b16 %v910, %v902
    %v1303 = vpack.c.b16 %v911, %v903
    %v1304 = vpack.c.b16 %v912, %v904
    %v1305 = vpack.c.b16 %v921, %v913
    %v1306 = vpack.c.b16 %v922, %v914
    %v1307 = vpack.c.b16 %v923, %v915
    %v1308 = vpack.c.b16 %v924, %v916
    %v1309 = vpack.c.b16 %v925, %v917
    %v1310 = vpack.c.b16 %v926, %v918
    %v1311 = vpack.c.b16 %v927, %v919
    %v1312 = vpack.c.b16 %v928, %v920
    %v1313 = vpack.c.b16 %v937, %v929
    %v1314 = vpack.c.b16 %v938, %v930
    %v1315 = vpack.c.b16 %v939, %v931
    %v1316 = vpack.c.b16 %v940, %v932
    %v1317 = vpack.c.b16 %v941, %v933
    %v1318 = vpack.c.b16 %v942, %v934
    %v1319 = vpack.c.b16 %v943, %v935
    %v1320 = vpack.c.b16 %v944, %v936
    %v1321 = vpack.c.b16 %v953, %v945
    %v1322 = vpack.c.b16 %v954, %v946
    %v1323 = vpack.c.b16 %v955, %v947
    %v1324 = vpack.c.b16 %v956, %v948
    %v1325 = vpack.c.b16 %v957, %v949
    %v1326 = vpack.c.b16 %v958, %v950
    %v1327 = vpack.c.b16 %v959, %v951
    %v1328 = vpack.c.b16 %v960, %v952
    %v1329 = vpack.c.b16 %v969, %v961
    %v1330 = vpack.c.b16 %v970, %v962
    %v1331 = vpack.c.b16 %v971, %v963
    %v1332 = vpack.c.b16 %v972, %v964
    %v1333 = vpack.c.b16 %v973, %v965
    %v1334 = vpack.c.b16 %v974, %v966
    %v1335 = vpack.c.b16 %v975, %v967
    %v1336 = vpack.c.b16 %v976, %v968
    %v1337 = vpack.c.b16 %v985, %v977
    %v1338 = vpack.c.b16 %v986, %v978
    %v1339 = vpack.c.b16 %v987, %v979
    %v1340 = vpack.c.b16 %v988, %v980
    %v1341 = vpack.c.b16 %v989, %v981
    %v1342 = vpack.c.b16 %v990, %v982
    %v1343 = vpack.c.b16 %v991, %v983
    %v1344 = vpack.c.b16 %v992, %v984
    %v1345 = vpack.c.b16 %v1001, %v993
    %v1346 = vpack.c.b16 %v1002, %v994
    %v1347 = vpack.c.b16 %v1003, %v995
    %v1348 = vpack.c.b16 %v1004, %v996
    %v1349 = vpack.c.b16 %v1005, %v997
    %v1350 = vpack.c.b16 %v1006, %v998
    %v1351 = vpack.c.b16 %v1007, %v999
    %v1352 = vpack.c.b16 %v1008, %v1000
    %v1353 = vpack.c.b16 %v1017, %v1009
    %v1354 = vpack.c.b16 %v1018, %v1010
    %v1355 = vpack.c.b16 %v1019, %v1011
    %v1356 = vpack.c.b16 %v1020, %v1012
    %v1357 = vpack.c.b16 %v1021, %v1013
    %v1358 = vpack.c.b16 %v1022, %v1014
    %v1359 = vpack.c.b16 %v1023, %v1015
    %v1360 = vpack.c.b16 %v1024, %v1016
    %v1361 = vpack.c.b16 %v1033, %v1025
    %v1362 = vpack.c.b16 %v1034, %v1026
    %v1363 = vpack.c.b16 %v1035, %v1027
    %v1364 = vpack.c.b16 %v1036, %v1028
    %v1365 = vpack.c.b16 %v1037, %v1029
    %v1366 = vpack.c.b16 %v1038, %v1030
    %v1367 = vpack.c.b16 %v1039, %v1031
    %v1368 = vpack.c.b16 %v1040, %v1032
    %v1369 = vpack.c.b16 %v1049, %v1041
    %v1370 = vpack.c.b16 %v1050, %v1042
    %v1371 = vpack.c.b16 %v1051, %v1043
    %v1372 = vpack.c.b16 %v1052, %v1044
    %v1373 = vpack.c.b16 %v1053, %v1045
    %v1374 = vpack.c.b16 %v1054, %v1046
    %v1375 = vpack.c.b16 %v1055, %v1047
    %v1376 = vpack.c.b16 %v1056, %v1048
    %v1377 = vpack.c.b16 %v1065, %v1057
    %v1378 = vpack.c.b16 %v1066, %v1058
    %v1379 = vpack.c.b16 %v1067, %v1059
    %v1380 = vpack.c.b16 %v1068, %v1060
    %v1381 = vpack.c.b16 %v1069, %v1061
    %v1382 = vpack.c.b16 %v1070, %v1062
    %v1383 = vpack.c.b16 %v1071, %v1063
    %v1384 = vpack.c.b16 %v1072, %v1064
    %v1385 = vpack.c.b16 %v1081, %v1073
    %v1386 = vpack.c.b16 %v1082, %v1074
    %v1387 = vpack.c.b16 %v1083, %v1075
    %v1388 = vpack.c.b16 %v1084, %v1076
    %v1389 = vpack.c.b16 %v1085, %v1077
    %v1390 = vpack.c.b16 %v1086, %v1078
    %v1391 = vpack.c.b16 %v1087, %v1079
    %v1392 = vpack.c.b16 %v1088, %v1080
    %v1393 = vpack.c.b16 %v1097, %v1089
    %v1394 = vpack.c.b16 %v1098, %v1090
    %v1395 = vpack.c.b16 %v1099, %v1091
    %v1396 = vpack.c.b16 %v1100, %v1092
    %v1397 = vpack.c.b16 %v1101, %v1093
    %v1398 = vpack.c.b16 %v1102, %v1094
    %v1399 = vpack.c.b16 %v1103, %v1095
    %v1400 = vpack.c.b16 %v1104, %v1096
    %v1401 = vpack.c.b16 %v1113, %v1105
    %v1402 = vpack.c.b16 %v1114, %v1106
    %v1403 = vpack.c.b16 %v1115, %v1107
    %v1404 = vpack.c.b16 %v1116, %v1108
    %v1405 = vpack.c.b16 %v1117, %v1109
    %v1406 = vpack.c.b16 %v1118, %v1110
    %v1407 = vpack.c.b16 %v1119, %v1111
    %v1408 = vpack.c.b16 %v1120, %v1112
    %v1409 = vpack.c.b16 %v1129, %v1121
    %v1410 = vpack.c.b16 %v1130, %v1122
    %v1411 = vpack.c.b16 %v1131, %v1123
    %v1412 = vpack.c.b16 %v1132, %v1124
    %v1413 = vpack.c.b16 %v1133, %v1125
    %v1414 = vpack.c.b16 %v1134, %v1126
    %v1415 = vpack.c.b16 %v1135, %v1127
    %v1416 = vpack.c.b16 %v1136, %v1128
    %v1417 = vpack.c.b16 %v1145, %v1137
    %v1418 = vpack.c.b16 %v1146, %v1138
    %v1419 = vpack.c.b16 %v1147, %v1139
    %v1420 = vpack.c.b16 %v1148, %v1140
    %v1421 = vpack.c.b16 %v1149, %v1141
    %v1422 = vpack.c.b16 %v1150, %v1142
    %v1423 = vpack.c.b16 %v1151, %v1143
    %v1424 = vpack.c.b16 %v1152, %v1144
    %v1425 = vpack.c.b16 %v1161, %v1153
    %v1426 = vpack.c.b16 %v1162, %v1154
    %v1427 = vpack.c.b16 %v1163, %v1155
    %v1428 = vpack.c.b16 %v1164, %v1156
    %v1429 = vpack.c.b16 %v1165, %v1157
    %v1430 = vpack.c.b16 %v1166, %v1158
    %v1431 = vpack.c.b16 %v1167, %v1159
    %v1432 = vpack.c.b16 %v1168, %v1160
    %v1433 = vpack.c.b16 %v1177, %v1169
    %v1434 = vpack.c.b16 %v1178, %v1170
    %v1435 = vpack.c.b16 %v1179, %v1171
    %v1436 = vpack.c.b16 %v1180, %v1172
    %v1437 = vpack.c.b16 %v1181, %v1173
    %v1438 = vpack.c.b16 %v1182, %v1174
    %v1439 = vpack.c.b16 %v1183, %v1175
    %v1440 = vpack.c.b16 %v1184, %v1176
    %1697 = vmatprep.subr.bf16.mxu0 %v1186
    %1698 = vmatpush1.bf16.msra.mxu0 %v1185
    %1699 = vmatprep.subr.bf16.mxu0 %v1194
    %1700 = vmatpush1.bf16.msra.mxu0 %v1193
    %1701 = vmatprep.subr.bf16.mxu0 %v1202
    %1702 = vmatpush1.bf16.msra.mxu0 %v1201
    %1703 = vmatprep.subr.bf16.mxu0 %v1210
    %1704 = vmatpush1.bf16.msra.mxu0 %v1209
    %1705 = vmatprep.subr.bf16.mxu0 %v1218
    %1706 = vmatpush1.bf16.msra.mxu0 %v1217
    %1707 = vmatprep.subr.bf16.mxu0 %v1226
    %1708 = vmatpush1.bf16.msra.mxu0 %v1225
    %1709 = vmatprep.subr.bf16.mxu0 %v1234
    %1710 = vmatpush1.bf16.msra.mxu0 %v1233
    %1711 = vmatprep.subr.bf16.mxu0 %v1242
    %1712 = vmatpush1.bf16.msra.mxu0 %v1241
    %1713 = vmatprep.subr.bf16.mxu0 %v1250
    %1714 = vmatpush1.bf16.msra.mxu0 %v1249
    %1715 = vmatprep.subr.bf16.mxu0 %v1258
    %1716 = vmatpush1.bf16.msra.mxu0 %v1257
    %1717 = vmatprep.subr.bf16.mxu0 %v1266
    %1718 = vmatpush1.bf16.msra.mxu0 %v1265
    %1719 = vmatprep.subr.bf16.mxu0 %v1274
    %1720 = vmatpush1.bf16.msra.mxu0 %v1273
    %1721 = vmatprep.subr.bf16.mxu0 %v1282
    %1722 = vmatpush1.bf16.msra.mxu0 %v1281
    %1723 = vmatprep.subr.bf16.mxu0 %v1290
    %1724 = vmatpush1.bf16.msra.mxu0 %v1289
    %1725 = vmatprep.subr.bf16.mxu0 %v1298
    %1726 = vmatpush1.bf16.msra.mxu0 %v1297
    %1727 = vmatprep.subr.bf16.mxu0 %v1306
    %1728 = vmatpush1.bf16.msra.mxu0 %v1305
    %1729 = vmatprep.mubr.bf16.mxu0 %v116
    %1730 = vmatmul.mubr.bf16.gmra.mrb[0].mxu0 %v115
    %v1731 = vpop.f32.mrb[0].mxu0
    %v1732 = vadd.f32 %v380, %v1731
    %v1733 = vpop.f32.mrb[0].mxu0
    %v1734 = vadd.f32 %v384, %v1733
    %v1735 = vpop.f32.mrb[0].mxu0
    %v1736 = vpop.f32.mrb[0].mxu0
    %1737 = vdwg.mxu0
    %1738 = vmatprep.subr.bf16.mxu0 %v1314
    %1739 = vmatpush1.bf16.msra.mxu0 %v1313
    %1740 = vmatprep.subr.bf16.mxu0 %v1322
    %1741 = vmatpush1.bf16.msra.mxu0 %v1321
    %1742 = vmatprep.subr.bf16.mxu0 %v1330
    %1743 = vmatpush1.bf16.msra.mxu0 %v1329
    %1744 = vmatprep.subr.bf16.mxu0 %v1338
    %1745 = vmatpush1.bf16.msra.mxu0 %v1337
    %1746 = vmatprep.subr.bf16.mxu0 %v1346
    %1747 = vmatpush1.bf16.msra.mxu0 %v1345
    %1748 = vmatprep.subr.bf16.mxu0 %v1354
    %1749 = vmatpush1.bf16.msra.mxu0 %v1353
    %1750 = vmatprep.subr.bf16.mxu0 %v1362
    %1751 = vmatpush1.bf16.msra.mxu0 %v1361
    %1752 = vmatprep.subr.bf16.mxu0 %v1370
    %1753 = vmatpush1.bf16.msra.mxu0 %v1369
    %1754 = vmatprep.subr.bf16.mxu0 %v1378
    %1755 = vmatpush1.bf16.msra.mxu0 %v1377
    %1756 = vmatprep.subr.bf16.mxu0 %v1386
    %1757 = vmatpush1.bf16.msra.mxu0 %v1385
    %1758 = vmatprep.subr.bf16.mxu0 %v1394
    %1759 = vmatpush1.bf16.msra.mxu0 %v1393
    %1760 = vmatprep.subr.bf16.mxu0 %v1402
    %1761 = vmatpush1.bf16.msra.mxu0 %v1401
    %1762 = vmatprep.subr.bf16.mxu0 %v1410
    %1763 = vmatpush1.bf16.msra.mxu0 %v1409
    %1764 = vmatprep.subr.bf16.mxu0 %v1418
    %1765 = vmatpush1.bf16.msra.mxu0 %v1417
    %1766 = vmatprep.subr.bf16.mxu0 %v1426
    %1767 = vmatpush1.bf16.msra.mxu0 %v1425
    %1768 = vmatprep.subr.bf16.mxu0 %v1434
    %1769 = vmatpush1.bf16.msra.mxu0 %v1433
    %1770 = vmatprep.mubr.bf16.mxu0 %v118
    %1771 = vmatmul.mubr.bf16.gmra.mrb[0].mxu0 %v117
    %v1772 = vpop.f32.mrb[0].mxu0
    %v1773 = vadd.f32 %v1732, %v1772
    %v1774 = vpop.f32.mrb[0].mxu0
    %v1775 = vadd.f32 %v1734, %v1774
    %v1776 = vpop.f32.mrb[0].mxu0
    %v1777 = vpop.f32.mrb[0].mxu0
    %1778 = vdwg.mxu0
    %1779 = vmatprep.subr.bf16.mxu0 %v1188
    %1780 = vmatpush1.bf16.msra.mxu0 %v1187
    %1781 = vmatprep.subr.bf16.mxu0 %v1196
    %1782 = vmatpush1.bf16.msra.mxu0 %v1195
    %1783 = vmatprep.subr.bf16.mxu0 %v1204
    %1784 = vmatpush1.bf16.msra.mxu0 %v1203
    %1785 = vmatprep.subr.bf16.mxu0 %v1212
    %1786 = vmatpush1.bf16.msra.mxu0 %v1211
    %1787 = vmatprep.subr.bf16.mxu0 %v1220
    %1788 = vmatpush1.bf16.msra.mxu0 %v1219
    %1789 = vmatprep.subr.bf16.mxu0 %v1228
    %1790 = vmatpush1.bf16.msra.mxu0 %v1227
    %1791 = vmatprep.subr.bf16.mxu0 %v1236
    %1792 = vmatpush1.bf16.msra.mxu0 %v1235
    %1793 = vmatprep.subr.bf16.mxu0 %v1244
    %1794 = vmatpush1.bf16.msra.mxu0 %v1243
    %1795 = vmatprep.subr.bf16.mxu0 %v1252
    %1796 = vmatpush1.bf16.msra.mxu0 %v1251
    %1797 = vmatprep.subr.bf16.mxu0 %v1260
    %1798 = vmatpush1.bf16.msra.mxu0 %v1259
    %1799 = vmatprep.subr.bf16.mxu0 %v1268
    %1800 = vmatpush1.bf16.msra.mxu0 %v1267
    %1801 = vmatprep.subr.bf16.mxu0 %v1276
    %1802 = vmatpush1.bf16.msra.mxu0 %v1275
    %1803 = vmatprep.subr.bf16.mxu0 %v1284
    %1804 = vmatpush1.bf16.msra.mxu0 %v1283
    %1805 = vmatprep.subr.bf16.mxu0 %v1292
    %1806 = vmatpush1.bf16.msra.mxu0 %v1291
    %1807 = vmatprep.subr.bf16.mxu0 %v1300
    %1808 = vmatpush1.bf16.msra.mxu0 %v1299
    %1809 = vmatprep.subr.bf16.mxu0 %v1308
    %1810 = vmatpush1.bf16.msra.mxu0 %v1307
    %1811 = vmatprep.mubr.bf16.mxu0 %v116
    %1812 = vmatmul.mubr.bf16.gmra.mrb[0].mxu0 %v115
    %v1813 = vpop.f32.mrb[0].mxu0
    %v1814 = vadd.f32 %v388, %v1813
    %v1815 = vpop.f32.mrb[0].mxu0
    %v1816 = vadd.f32 %v392, %v1815
    %v1817 = vpop.f32.mrb[0].mxu0
    %v1818 = vpop.f32.mrb[0].mxu0
    %1819 = vdwg.mxu0
    %1820 = vmatprep.subr.bf16.mxu0 %v1316
    %1821 = vmatpush1.bf16.msra.mxu0 %v1315
    %1822 = vmatprep.subr.bf16.mxu0 %v1324
    %1823 = vmatpush1.bf16.msra.mxu0 %v1323
    %1824 = vmatprep.subr.bf16.mxu0 %v1332
    %1825 = vmatpush1.bf16.msra.mxu0 %v1331
    %1826 = vmatprep.subr.bf16.mxu0 %v1340
    %1827 = vmatpush1.bf16.msra.mxu0 %v1339
    %1828 = vmatprep.subr.bf16.mxu0 %v1348
    %1829 = vmatpush1.bf16.msra.mxu0 %v1347
    %1830 = vmatprep.subr.bf16.mxu0 %v1356
    %1831 = vmatpush1.bf16.msra.mxu0 %v1355
    %1832 = vmatprep.subr.bf16.mxu0 %v1364
    %1833 = vmatpush1.bf16.msra.mxu0 %v1363
    %1834 = vmatprep.subr.bf16.mxu0 %v1372
    %1835 = vmatpush1.bf16.msra.mxu0 %v1371
    %1836 = vmatprep.subr.bf16.mxu0 %v1380
    %1837 = vmatpush1.bf16.msra.mxu0 %v1379
    %1838 = vmatprep.subr.bf16.mxu0 %v1388
    %1839 = vmatpush1.bf16.msra.mxu0 %v1387
    %1840 = vmatprep.subr.bf16.mxu0 %v1396
    %1841 = vmatpush1.bf16.msra.mxu0 %v1395
    %1842 = vmatprep.subr.bf16.mxu0 %v1404
    %1843 = vmatpush1.bf16.msra.mxu0 %v1403
    %1844 = vmatprep.subr.bf16.mxu0 %v1412
    %1845 = vmatpush1.bf16.msra.mxu0 %v1411
    %1846 = vmatprep.subr.bf16.mxu0 %v1420
    %1847 = vmatpush1.bf16.msra.mxu0 %v1419
    %1848 = vmatprep.subr.bf16.mxu0 %v1428
    %1849 = vmatpush1.bf16.msra.mxu0 %v1427
    %1850 = vmatprep.subr.bf16.mxu0 %v1436
    %1851 = vmatpush1.bf16.msra.mxu0 %v1435
    %1852 = vmatprep.mubr.bf16.mxu0 %v118
    %1853 = vmatmul.mubr.bf16.gmra.mrb[0].mxu0 %v117
    %v1854 = vpop.f32.mrb[0].mxu0
    %v1855 = vadd.f32 %v1814, %v1854
    %v1856 = vpop.f32.mrb[0].mxu0
    %v1857 = vadd.f32 %v1816, %v1856
    %v1858 = vpop.f32.mrb[0].mxu0
    %v1859 = vpop.f32.mrb[0].mxu0
    %1860 = vdwg.mxu0
    %1861 = vmatprep.subr.bf16.mxu0 %v1190
    %1862 = vmatpush1.bf16.msra.mxu0 %v1189
    %1863 = vmatprep.subr.bf16.mxu0 %v1198
    %1864 = vmatpush1.bf16.msra.mxu0 %v1197
    %1865 = vmatprep.subr.bf16.mxu0 %v1206
    %1866 = vmatpush1.bf16.msra.mxu0 %v1205
    %1867 = vmatprep.subr.bf16.mxu0 %v1214
    %1868 = vmatpush1.bf16.msra.mxu0 %v1213
    %1869 = vmatprep.subr.bf16.mxu0 %v1222
    %1870 = vmatpush1.bf16.msra.mxu0 %v1221
    %1871 = vmatprep.subr.bf16.mxu0 %v1230
    %1872 = vmatpush1.bf16.msra.mxu0 %v1229
    %1873 = vmatprep.subr.bf16.mxu0 %v1238
    %1874 = vmatpush1.bf16.msra.mxu0 %v1237
    %1875 = vmatprep.subr.bf16.mxu0 %v1246
    %1876 = vmatpush1.bf16.msra.mxu0 %v1245
    %1877 = vmatprep.subr.bf16.mxu0 %v1254
    %1878 = vmatpush1.bf16.msra.mxu0 %v1253
    %1879 = vmatprep.subr.bf16.mxu0 %v1262
    %1880 = vmatpush1.bf16.msra.mxu0 %v1261
    %1881 = vmatprep.subr.bf16.mxu0 %v1270
    %1882 = vmatpush1.bf16.msra.mxu0 %v1269
    %1883 = vmatprep.subr.bf16.mxu0 %v1278
    %1884 = vmatpush1.bf16.msra.mxu0 %v1277
    %1885 = vmatprep.subr.bf16.mxu0 %v1286
    %1886 = vmatpush1.bf16.msra.mxu0 %v1285
    %1887 = vmatprep.subr.bf16.mxu0 %v1294
    %1888 = vmatpush1.bf16.msra.mxu0 %v1293
    %1889 = vmatprep.subr.bf16.mxu0 %v1302
    %1890 = vmatpush1.bf16.msra.mxu0 %v1301
    %1891 = vmatprep.subr.bf16.mxu0 %v1310
    %1892 = vmatpush1.bf16.msra.mxu0 %v1309
    %1893 = vmatprep.mubr.bf16.mxu0 %v116
    %1894 = vmatmul.mubr.bf16.gmra.mrb[0].mxu0 %v115
    %v1895 = vpop.f32.mrb[0].mxu0
    %v1896 = vadd.f32 %v396, %v1895
    %v1897 = vpop.f32.mrb[0].mxu0
    %v1898 = vadd.f32 %v400, %v1897
    %v1899 = vpop.f32.mrb[0].mxu0
    %v1900 = vpop.f32.mrb[0].mxu0
    %1901 = vdwg.mxu0
    %1902 = vmatprep.subr.bf16.mxu0 %v1318
    %1903 = vmatpush1.bf16.msra.mxu0 %v1317
    %1904 = vmatprep.subr.bf16.mxu0 %v1326
    %1905 = vmatpush1.bf16.msra.mxu0 %v1325
    %1906 = vmatprep.subr.bf16.mxu0 %v1334
    %1907 = vmatpush1.bf16.msra.mxu0 %v1333
    %1908 = vmatprep.subr.bf16.mxu0 %v1342
    %1909 = vmatpush1.bf16.msra.mxu0 %v1341
    %1910 = vmatprep.subr.bf16.mxu0 %v1350
    %1911 = vmatpush1.bf16.msra.mxu0 %v1349
    %1912 = vmatprep.subr.bf16.mxu0 %v1358
    %1913 = vmatpush1.bf16.msra.mxu0 %v1357
    %1914 = vmatprep.subr.bf16.mxu0 %v1366
    %1915 = vmatpush1.bf16.msra.mxu0 %v1365
    %1916 = vmatprep.subr.bf16.mxu0 %v1374
    %1917 = vmatpush1.bf16.msra.mxu0 %v1373
    %1918 = vmatprep.subr.bf16.mxu0 %v1382
    %1919 = vmatpush1.bf16.msra.mxu0 %v1381
    %1920 = vmatprep.subr.bf16.mxu0 %v1390
    %1921 = vmatpush1.bf16.msra.mxu0 %v1389
    %1922 = vmatprep.subr.bf16.mxu0 %v1398
    %1923 = vmatpush1.bf16.msra.mxu0 %v1397
    %1924 = vmatprep.subr.bf16.mxu0 %v1406
    %1925 = vmatpush1.bf16.msra.mxu0 %v1405
    %1926 = vmatprep.subr.bf16.mxu0 %v1414
    %1927 = vmatpush1.bf16.msra.mxu0 %v1413
    %1928 = vmatprep.subr.bf16.mxu0 %v1422
    %1929 = vmatpush1.bf16.msra.mxu0 %v1421
    %1930 = vmatprep.subr.bf16.mxu0 %v1430
    %1931 = vmatpush1.bf16.msra.mxu0 %v1429
    %1932 = vmatprep.subr.bf16.mxu0 %v1438
    %1933 = vmatpush1.bf16.msra.mxu0 %v1437
    %1934 = vmatprep.mubr.bf16.mxu0 %v118
    %1935 = vmatmul.mubr.bf16.gmra.mrb[0].mxu0 %v117
    %v1936 = vpop.f32.mrb[0].mxu0
    %v1937 = vadd.f32 %v1896, %v1936
    %v1938 = vpop.f32.mrb[0].mxu0
    %v1939 = vadd.f32 %v1898, %v1938
    %v1940 = vpop.f32.mrb[0].mxu0
    %v1941 = vpop.f32.mrb[0].mxu0
    %1942 = vdwg.mxu0
    %1943 = vmatprep.subr.bf16.mxu0 %v1192
    %1944 = vmatpush1.bf16.msra.mxu0 %v1191
    %1945 = vmatprep.subr.bf16.mxu0 %v1200
    %1946 = vmatpush1.bf16.msra.mxu0 %v1199
    %1947 = vmatprep.subr.bf16.mxu0 %v1208
    %1948 = vmatpush1.bf16.msra.mxu0 %v1207
    %1949 = vmatprep.subr.bf16.mxu0 %v1216
    %1950 = vmatpush1.bf16.msra.mxu0 %v1215
    %1951 = vmatprep.subr.bf16.mxu0 %v1224
    %1952 = vmatpush1.bf16.msra.mxu0 %v1223
    %1953 = vmatprep.subr.bf16.mxu0 %v1232
    %1954 = vmatpush1.bf16.msra.mxu0 %v1231
    %1955 = vmatprep.subr.bf16.mxu0 %v1240
    %1956 = vmatpush1.bf16.msra.mxu0 %v1239
    %1957 = vmatprep.subr.bf16.mxu0 %v1248
    %1958 = vmatpush1.bf16.msra.mxu0 %v1247
    %1959 = vmatprep.subr.bf16.mxu0 %v1256
    %1960 = vmatpush1.bf16.msra.mxu0 %v1255
    %1961 = vmatprep.subr.bf16.mxu0 %v1264
    %1962 = vmatpush1.bf16.msra.mxu0 %v1263
    %1963 = vmatprep.subr.bf16.mxu0 %v1272
    %1964 = vmatpush1.bf16.msra.mxu0 %v1271
    %1965 = vmatprep.subr.bf16.mxu0 %v1280
    %1966 = vmatpush1.bf16.msra.mxu0 %v1279
    %1967 = vmatprep.subr.bf16.mxu0 %v1288
    %1968 = vmatpush1.bf16.msra.mxu0 %v1287
    %1969 = vmatprep.subr.bf16.mxu0 %v1296
    %1970 = vmatpush1.bf16.msra.mxu0 %v1295
    %1971 = vmatprep.subr.bf16.mxu0 %v1304
    %1972 = vmatpush1.bf16.msra.mxu0 %v1303
    %1973 = vmatprep.subr.bf16.mxu0 %v1312
    %1974 = vmatpush1.bf16.msra.mxu0 %v1311
    %1975 = vmatprep.mubr.bf16.mxu0 %v116
    %1976 = vmatmul.mubr.bf16.gmra.mrb[0].mxu0 %v115
    %v1977 = vpop.f32.mrb[0].mxu0
    %v1978 = vadd.f32 %v404, %v1977
    %v1979 = vpop.f32.mrb[0].mxu0
    %v1980 = vadd.f32 %v408, %v1979
    %v1981 = vpop.f32.mrb[0].mxu0
    %v1982 = vpop.f32.mrb[0].mxu0
    %1983 = vdwg.mxu0
    %1984 = vmatprep.subr.bf16.mxu0 %v1320
    %1985 = vmatpush1.bf16.msra.mxu0 %v1319
    %1986 = vmatprep.subr.bf16.mxu0 %v1328
    %1987 = vmatpush1.bf16.msra.mxu0 %v1327
    %1988 = vmatprep.subr.bf16.mxu0 %v1336
    %1989 = vmatpush1.bf16.msra.mxu0 %v1335
    %1990 = vmatprep.subr.bf16.mxu0 %v1344
    %1991 = vmatpush1.bf16.msra.mxu0 %v1343
    %1992 = vmatprep.subr.bf16.mxu0 %v1352
    %1993 = vmatpush1.bf16.msra.mxu0 %v1351
    %1994 = vmatprep.subr.bf16.mxu0 %v1360
    %1995 = vmatpush1.bf16.msra.mxu0 %v1359
    %1996 = vmatprep.subr.bf16.mxu0 %v1368
    %1997 = vmatpush1.bf16.msra.mxu0 %v1367
    %1998 = vmatprep.subr.bf16.mxu0 %v1376
    %1999 = vmatpush1.bf16.msra.mxu0 %v1375
    %2000 = vmatprep.subr.bf16.mxu0 %v1384
    %2001 = vmatpush1.bf16.msra.mxu0 %v1383
    %2002 = vmatprep.subr.bf16.mxu0 %v1392
    %2003 = vmatpush1.bf16.msra.mxu0 %v1391
    %2004 = vmatprep.subr.bf16.mxu0 %v1400
    %2005 = vmatpush1.bf16.msra.mxu0 %v1399
    %2006 = vmatprep.subr.bf16.mxu0 %v1408
    %2007 = vmatpush1.bf16.msra.mxu0 %v1407
    %2008 = vmatprep.subr.bf16.mxu0 %v1416
    %2009 = vmatpush1.bf16.msra.mxu0 %v1415
    %2010 = vmatprep.subr.bf16.mxu0 %v1424
    %2011 = vmatpush1.bf16.msra.mxu0 %v1423
    %2012 = vmatprep.subr.bf16.mxu0 %v1432
    %2013 = vmatpush1.bf16.msra.mxu0 %v1431
    %2014 = vmatprep.subr.bf16.mxu0 %v1440
    %2015 = vmatpush1.bf16.msra.mxu0 %v1439
    %2016 = vmatprep.mubr.bf16.mxu0 %v118
    %2017 = vmatmul.mubr.bf16.gmra.mrb[0].mxu0 %v117
    %v2018 = vpop.f32.mrb[0].mxu0
    %v2019 = vadd.f32 %v1978, %v2018
    %v2020 = vpop.f32.mrb[0].mxu0
    %v2021 = vadd.f32 %v1980, %v2020
    %v2022 = vpop.f32.mrb[0].mxu0
    %v2023 = vpop.f32.mrb[0].mxu0
    %2024 = vdwg.mxu0
    %v2025 = vmul.f32 %v1773, 0.2
    %v2026 = vmul.f32 %v1775, 0.2
    %v2027 = vmul.f32 %v1855, 0.2
    %v2028 = vmul.f32 %v1857, 0.2
    %v2029 = vmul.f32 %v1937, 0.2
    %v2030 = vmul.f32 %v1939, 0.2
    %v2031 = vmul.f32 %v2019, 0.2
    %v2032 = vmul.f32 %v2021, 0.2
    %v2033 = vmax.f32 %v1773, %v2025
    %v2034 = vmax.f32 %v1775, %v2026
    %v2035 = vmax.f32 %v1855, %v2027
    %v2036 = vmax.f32 %v1857, %v2028
    %v2037 = vmax.f32 %v1937, %v2029
    %v2038 = vmax.f32 %v1939, %v2030
    %v2039 = vmax.f32 %v2019, %v2031
    %v2040 = vmax.f32 %v2021, %v2032
    %v2041 = vpack.c.bf16 %v2033, %v2033
    %v2042 = vpack.c.bf16 %v2034, %v2034
    %v2043 = vpack.c.bf16 %v2035, %v2035
    %v2044 = vpack.c.bf16 %v2036, %v2036
    %v2045 = vpack.c.bf16 %v2037, %v2037
    %v2046 = vpack.c.bf16 %v2038, %v2038
    %v2047 = vpack.c.bf16 %v2039, %v2039
    %v2048 = vpack.c.bf16 %v2040, %v2040
    %v2049 = vld [vmem:[#allocation7] sm:$0xff]
    %v2050 = vld [vmem:[#allocation7 + $0x8] sm:$0xff]
    %v2051 = vld [vmem:[#allocation7 + $0x10] sm:$0xff]
    %v2052 = vld [vmem:[#allocation7 + $0x18] sm:$0xff]
    %v2053 = vld [vmem:[#allocation7 + $0x20] sm:$0xff]
    %v2054 = vld [vmem:[#allocation7 + $0x28] sm:$0xff]
    %v2055 = vld [vmem:[#allocation7 + $0x30] sm:$0xff]
    %v2056 = vld [vmem:[#allocation7 + $0x38] sm:$0xff]
    %v2057 = vld [vmem:[#allocation7 + $0x40] sm:$0xff]
    %v2058 = vld [vmem:[#allocation7 + $0x48] sm:$0xff]
    %v2059 = vld [vmem:[#allocation7 + $0x50] sm:$0xff]
    %v2060 = vld [vmem:[#allocation7 + $0x58] sm:$0xff]
    %v2061 = vld [vmem:[#allocation7 + $0x60] sm:$0xff]
    %v2062 = vld [vmem:[#allocation7 + $0x68] sm:$0xff]
    %v2063 = vld [vmem:[#allocation7 + $0x70] sm:$0xff]
    %v2064 = vld [vmem:[#allocation7 + $0x78] sm:$0xff]
    %v2065 = vld [vmem:[#allocation7 + $0x80] sm:$0xff]
    %v2066 = vld [vmem:[#allocation7 + $0x88] sm:$0xff]
    %v2067 = vld [vmem:[#allocation7 + $0x90] sm:$0xff]
    %v2068 = vld [vmem:[#allocation7 + $0x98] sm:$0xff]
    %v2069 = vld [vmem:[#allocation7 + $0xa0] sm:$0xff]
    %v2070 = vld [vmem:[#allocation7 + $0xa8] sm:$0xff]
    %v2071 = vld [vmem:[#allocation7 + $0xb0] sm:$0xff]
    %v2072 = vld [vmem:[#allocation7 + $0xb8] sm:$0xff]
    %v2073 = vld [vmem:[#allocation7 + $0xc0] sm:$0xff]
    %v2074 = vld [vmem:[#allocation7 + $0xc8] sm:$0xff]
    %v2075 = vld [vmem:[#allocation7 + $0xd0] sm:$0xff]
    %v2076 = vld [vmem:[#allocation7 + $0xd8] sm:$0xff]
    %v2077 = vld [vmem:[#allocation7 + $0xe0] sm:$0xff]
    %v2078 = vld [vmem:[#allocation7 + $0xe8] sm:$0xff]
    %v2079 = vld [vmem:[#allocation7 + $0xf0] sm:$0xff]
    %v2080 = vld [vmem:[#allocation7 + $0xf8] sm:$0xff]
    %v2081 = vld [vmem:[#allocation7 + $0x100] sm:$0xff]
    %v2082 = vld [vmem:[#allocation7 + $0x108] sm:$0xff]
    %v2083 = vld [vmem:[#allocation7 + $0x110] sm:$0xff]
    %v2084 = vld [vmem:[#allocation7 + $0x118] sm:$0xff]
    %v2085 = vld [vmem:[#allocation7 + $0x120] sm:$0xff]
    %v2086 = vld [vmem:[#allocation7 + $0x128] sm:$0xff]
    %v2087 = vld [vmem:[#allocation7 + $0x130] sm:$0xff]
    %v2088 = vld [vmem:[#allocation7 + $0x138] sm:$0xff]
    %v2089 = vld [vmem:[#allocation7 + $0x140] sm:$0xff]
    %v2090 = vld [vmem:[#allocation7 + $0x148] sm:$0xff]
    %v2091 = vld [vmem:[#allocation7 + $0x150] sm:$0xff]
    %v2092 = vld [vmem:[#allocation7 + $0x158] sm:$0xff]
    %v2093 = vld [vmem:[#allocation7 + $0x160] sm:$0xff]
    %v2094 = vld [vmem:[#allocation7 + $0x168] sm:$0xff]
    %v2095 = vld [vmem:[#allocation7 + $0x170] sm:$0xff]
    %v2096 = vld [vmem:[#allocation7 + $0x178] sm:$0xff]
    %v2097 = vld [vmem:[#allocation7 + $0x180] sm:$0xff]
    %v2098 = vld [vmem:[#allocation7 + $0x188] sm:$0xff]
    %v2099 = vld [vmem:[#allocation7 + $0x190] sm:$0xff]
    %v2100 = vld [vmem:[#allocation7 + $0x198] sm:$0xff]
    %v2101 = vld [vmem:[#allocation7 + $0x1a0] sm:$0xff]
    %v2102 = vld [vmem:[#allocation7 + $0x1a8] sm:$0xff]
    %v2103 = vld [vmem:[#allocation7 + $0x1b0] sm:$0xff]
    %v2104 = vld [vmem:[#allocation7 + $0x1b8] sm:$0xff]
    %v2105 = vld [vmem:[#allocation7 + $0x1c0] sm:$0xff]
    %v2106 = vld [vmem:[#allocation7 + $0x1c8] sm:$0xff]
    %v2107 = vld [vmem:[#allocation7 + $0x1d0] sm:$0xff]
    %v2108 = vld [vmem:[#allocation7 + $0x1d8] sm:$0xff]
    %v2109 = vld [vmem:[#allocation7 + $0x1e0] sm:$0xff]
    %v2110 = vld [vmem:[#allocation7 + $0x1e8] sm:$0xff]
    %v2111 = vld [vmem:[#allocation7 + $0x1f0] sm:$0xff]
    %v2112 = vld [vmem:[#allocation7 + $0x1f8] sm:$0xff]
    %v2113 = vld [vmem:[#allocation7 + $0x200] sm:$0xff]
    %v2114 = vld [vmem:[#allocation7 + $0x208] sm:$0xff]
    %v2115 = vld [vmem:[#allocation7 + $0x210] sm:$0xff]
    %v2116 = vld [vmem:[#allocation7 + $0x218] sm:$0xff]
    %v2117 = vld [vmem:[#allocation7 + $0x220] sm:$0xff]
    %v2118 = vld [vmem:[#allocation7 + $0x228] sm:$0xff]
    %v2119 = vld [vmem:[#allocation7 + $0x230] sm:$0xff]
    %v2120 = vld [vmem:[#allocation7 + $0x238] sm:$0xff]
    %v2121 = vld [vmem:[#allocation7 + $0x240] sm:$0xff]
    %v2122 = vld [vmem:[#allocation7 + $0x248] sm:$0xff]
    %v2123 = vld [vmem:[#allocation7 + $0x250] sm:$0xff]
    %v2124 = vld [vmem:[#allocation7 + $0x258] sm:$0xff]
    %v2125 = vld [vmem:[#allocation7 + $0x260] sm:$0xff]
    %v2126 = vld [vmem:[#allocation7 + $0x268] sm:$0xff]
    %v2127 = vld [vmem:[#allocation7 + $0x270] sm:$0xff]
    %v2128 = vld [vmem:[#allocation7 + $0x278] sm:$0xff]
    %v2129 = vld [vmem:[#allocation7 + $0x280] sm:$0xff]
    %v2130 = vld [vmem:[#allocation7 + $0x288] sm:$0xff]
    %v2131 = vld [vmem:[#allocation7 + $0x290] sm:$0xff]
    %v2132 = vld [vmem:[#allocation7 + $0x298] sm:$0xff]
    %v2133 = vld [vmem:[#allocation7 + $0x2a0] sm:$0xff]
    %v2134 = vld [vmem:[#allocation7 + $0x2a8] sm:$0xff]
    %v2135 = vld [vmem:[#allocation7 + $0x2b0] sm:$0xff]
    %v2136 = vld [vmem:[#allocation7 + $0x2b8] sm:$0xff]
    %v2137 = vld [vmem:[#allocation7 + $0x2c0] sm:$0xff]
    %v2138 = vld [vmem:[#allocation7 + $0x2c8] sm:$0xff]
    %v2139 = vld [vmem:[#allocation7 + $0x2d0] sm:$0xff]
    %v2140 = vld [vmem:[#allocation7 + $0x2d8] sm:$0xff]
    %v2141 = vld [vmem:[#allocation7 + $0x2e0] sm:$0xff]
    %v2142 = vld [vmem:[#allocation7 + $0x2e8] sm:$0xff]
    %v2143 = vld [vmem:[#allocation7 + $0x2f0] sm:$0xff]
    %v2144 = vld [vmem:[#allocation7 + $0x2f8] sm:$0xff]
    %v2145 = vld [vmem:[#allocation7 + $0x300] sm:$0xff]
    %v2146 = vld [vmem:[#allocation7 + $0x308] sm:$0xff]
    %v2147 = vld [vmem:[#allocation7 + $0x310] sm:$0xff]
    %v2148 = vld [vmem:[#allocation7 + $0x318] sm:$0xff]
    %v2149 = vld [vmem:[#allocation7 + $0x320] sm:$0xff]
    %v2150 = vld [vmem:[#allocation7 + $0x328] sm:$0xff]
    %v2151 = vld [vmem:[#allocation7 + $0x330] sm:$0xff]
    %v2152 = vld [vmem:[#allocation7 + $0x338] sm:$0xff]
    %v2153 = vld [vmem:[#allocation7 + $0x340] sm:$0xff]
    %v2154 = vld [vmem:[#allocation7 + $0x348] sm:$0xff]
    %v2155 = vld [vmem:[#allocation7 + $0x350] sm:$0xff]
    %v2156 = vld [vmem:[#allocation7 + $0x358] sm:$0xff]
    %v2157 = vld [vmem:[#allocation7 + $0x360] sm:$0xff]
    %v2158 = vld [vmem:[#allocation7 + $0x368] sm:$0xff]
    %v2159 = vld [vmem:[#allocation7 + $0x370] sm:$0xff]
    %v2160 = vld [vmem:[#allocation7 + $0x378] sm:$0xff]
    %v2161 = vld [vmem:[#allocation7 + $0x380] sm:$0xff]
    %v2162 = vld [vmem:[#allocation7 + $0x388] sm:$0xff]
    %v2163 = vld [vmem:[#allocation7 + $0x390] sm:$0xff]
    %v2164 = vld [vmem:[#allocation7 + $0x398] sm:$0xff]
    %v2165 = vld [vmem:[#allocation7 + $0x3a0] sm:$0xff]
    %v2166 = vld [vmem:[#allocation7 + $0x3a8] sm:$0xff]
    %v2167 = vld [vmem:[#allocation7 + $0x3b0] sm:$0xff]
    %v2168 = vld [vmem:[#allocation7 + $0x3b8] sm:$0xff]
    %v2169 = vld [vmem:[#allocation7 + $0x3c0] sm:$0xff]
    %v2170 = vld [vmem:[#allocation7 + $0x3c8] sm:$0xff]
    %v2171 = vld [vmem:[#allocation7 + $0x3d0] sm:$0xff]
    %v2172 = vld [vmem:[#allocation7 + $0x3d8] sm:$0xff]
    %v2173 = vld [vmem:[#allocation7 + $0x3e0] sm:$0xff]
    %v2174 = vld [vmem:[#allocation7 + $0x3e8] sm:$0xff]
    %v2175 = vld [vmem:[#allocation7 + $0x3f0] sm:$0xff]
    %v2176 = vld [vmem:[#allocation7 + $0x3f8] sm:$0xff]
    %v2177 = vld [vmem:[#allocation7 + $0x400] sm:$0xff]
    %v2178 = vld [vmem:[#allocation7 + $0x408] sm:$0xff]
    %v2179 = vld [vmem:[#allocation7 + $0x410] sm:$0xff]
    %v2180 = vld [vmem:[#allocation7 + $0x418] sm:$0xff]
    %v2181 = vld [vmem:[#allocation7 + $0x420] sm:$0xff]
    %v2182 = vld [vmem:[#allocation7 + $0x428] sm:$0xff]
    %v2183 = vld [vmem:[#allocation7 + $0x430] sm:$0xff]
    %v2184 = vld [vmem:[#allocation7 + $0x438] sm:$0xff]
    %v2185 = vld [vmem:[#allocation7 + $0x440] sm:$0xff]
    %v2186 = vld [vmem:[#allocation7 + $0x448] sm:$0xff]
    %v2187 = vld [vmem:[#allocation7 + $0x450] sm:$0xff]
    %v2188 = vld [vmem:[#allocation7 + $0x458] sm:$0xff]
    %v2189 = vld [vmem:[#allocation7 + $0x460] sm:$0xff]
    %v2190 = vld [vmem:[#allocation7 + $0x468] sm:$0xff]
    %v2191 = vld [vmem:[#allocation7 + $0x470] sm:$0xff]
    %v2192 = vld [vmem:[#allocation7 + $0x478] sm:$0xff]
    %v2193 = vld [vmem:[#allocation7 + $0x480] sm:$0xff]
    %v2194 = vld [vmem:[#allocation7 + $0x488] sm:$0xff]
    %v2195 = vld [vmem:[#allocation7 + $0x490] sm:$0xff]
    %v2196 = vld [vmem:[#allocation7 + $0x498] sm:$0xff]
    %v2197 = vld [vmem:[#allocation7 + $0x4a0] sm:$0xff]
    %v2198 = vld [vmem:[#allocation7 + $0x4a8] sm:$0xff]
    %v2199 = vld [vmem:[#allocation7 + $0x4b0] sm:$0xff]
    %v2200 = vld [vmem:[#allocation7 + $0x4b8] sm:$0xff]
    %v2201 = vld [vmem:[#allocation7 + $0x4c0] sm:$0xff]
    %v2202 = vld [vmem:[#allocation7 + $0x4c8] sm:$0xff]
    %v2203 = vld [vmem:[#allocation7 + $0x4d0] sm:$0xff]
    %v2204 = vld [vmem:[#allocation7 + $0x4d8] sm:$0xff]
    %v2205 = vld [vmem:[#allocation7 + $0x4e0] sm:$0xff]
    %v2206 = vld [vmem:[#allocation7 + $0x4e8] sm:$0xff]
    %v2207 = vld [vmem:[#allocation7 + $0x4f0] sm:$0xff]
    %v2208 = vld [vmem:[#allocation7 + $0x4f8] sm:$0xff]
    %v2209 = vld [vmem:[#allocation7 + $0x500] sm:$0xff]
    %v2210 = vld [vmem:[#allocation7 + $0x508] sm:$0xff]
    %v2211 = vld [vmem:[#allocation7 + $0x510] sm:$0xff]
    %v2212 = vld [vmem:[#allocation7 + $0x518] sm:$0xff]
    %v2213 = vld [vmem:[#allocation7 + $0x520] sm:$0xff]
    %v2214 = vld [vmem:[#allocation7 + $0x528] sm:$0xff]
    %v2215 = vld [vmem:[#allocation7 + $0x530] sm:$0xff]
    %v2216 = vld [vmem:[#allocation7 + $0x538] sm:$0xff]
    %v2217 = vld [vmem:[#allocation7 + $0x540] sm:$0xff]
    %v2218 = vld [vmem:[#allocation7 + $0x548] sm:$0xff]
    %v2219 = vld [vmem:[#allocation7 + $0x550] sm:$0xff]
    %v2220 = vld [vmem:[#allocation7 + $0x558] sm:$0xff]
    %v2221 = vld [vmem:[#allocation7 + $0x560] sm:$0xff]
    %v2222 = vld [vmem:[#allocation7 + $0x568] sm:$0xff]
    %v2223 = vld [vmem:[#allocation7 + $0x570] sm:$0xff]
    %v2224 = vld [vmem:[#allocation7 + $0x578] sm:$0xff]
    %v2225 = vld [vmem:[#allocation7 + $0x580] sm:$0xff]
    %v2226 = vld [vmem:[#allocation7 + $0x588] sm:$0xff]
    %v2227 = vld [vmem:[#allocation7 + $0x590] sm:$0xff]
    %v2228 = vld [vmem:[#allocation7 + $0x598] sm:$0xff]
    %v2229 = vld [vmem:[#allocation7 + $0x5a0] sm:$0xff]
    %v2230 = vld [vmem:[#allocation7 + $0x5a8] sm:$0xff]
    %v2231 = vld [vmem:[#allocation7 + $0x5b0] sm:$0xff]
    %v2232 = vld [vmem:[#allocation7 + $0x5b8] sm:$0xff]
    %v2233 = vld [vmem:[#allocation7 + $0x5c0] sm:$0xff]
    %v2234 = vld [vmem:[#allocation7 + $0x5c8] sm:$0xff]
    %v2235 = vld [vmem:[#allocation7 + $0x5d0] sm:$0xff]
    %v2236 = vld [vmem:[#allocation7 + $0x5d8] sm:$0xff]
    %v2237 = vld [vmem:[#allocation7 + $0x5e0] sm:$0xff]
    %v2238 = vld [vmem:[#allocation7 + $0x5e8] sm:$0xff]
    %v2239 = vld [vmem:[#allocation7 + $0x5f0] sm:$0xff]
    %v2240 = vld [vmem:[#allocation7 + $0x5f8] sm:$0xff]
    %v2241 = vld [vmem:[#allocation7 + $0x600] sm:$0xff]
    %v2242 = vld [vmem:[#allocation7 + $0x608] sm:$0xff]
    %v2243 = vld [vmem:[#allocation7 + $0x610] sm:$0xff]
    %v2244 = vld [vmem:[#allocation7 + $0x618] sm:$0xff]
    %v2245 = vld [vmem:[#allocation7 + $0x620] sm:$0xff]
    %v2246 = vld [vmem:[#allocation7 + $0x628] sm:$0xff]
    %v2247 = vld [vmem:[#allocation7 + $0x630] sm:$0xff]
    %v2248 = vld [vmem:[#allocation7 + $0x638] sm:$0xff]
    %v2249 = vld [vmem:[#allocation7 + $0x640] sm:$0xff]
    %v2250 = vld [vmem:[#allocation7 + $0x648] sm:$0xff]
    %v2251 = vld [vmem:[#allocation7 + $0x650] sm:$0xff]
    %v2252 = vld [vmem:[#allocation7 + $0x658] sm:$0xff]
    %v2253 = vld [vmem:[#allocation7 + $0x660] sm:$0xff]
    %v2254 = vld [vmem:[#allocation7 + $0x668] sm:$0xff]
    %v2255 = vld [vmem:[#allocation7 + $0x670] sm:$0xff]
    %v2256 = vld [vmem:[#allocation7 + $0x678] sm:$0xff]
    %v2257 = vld [vmem:[#allocation7 + $0x680] sm:$0xff]
    %v2258 = vld [vmem:[#allocation7 + $0x688] sm:$0xff]
    %v2259 = vld [vmem:[#allocation7 + $0x690] sm:$0xff]
    %v2260 = vld [vmem:[#allocation7 + $0x698] sm:$0xff]
    %v2261 = vld [vmem:[#allocation7 + $0x6a0] sm:$0xff]
    %v2262 = vld [vmem:[#allocation7 + $0x6a8] sm:$0xff]
    %v2263 = vld [vmem:[#allocation7 + $0x6b0] sm:$0xff]
    %v2264 = vld [vmem:[#allocation7 + $0x6b8] sm:$0xff]
    %v2265 = vld [vmem:[#allocation7 + $0x6c0] sm:$0xff]
    %v2266 = vld [vmem:[#allocation7 + $0x6c8] sm:$0xff]
    %v2267 = vld [vmem:[#allocation7 + $0x6d0] sm:$0xff]
    %v2268 = vld [vmem:[#allocation7 + $0x6d8] sm:$0xff]
    %v2269 = vld [vmem:[#allocation7 + $0x6e0] sm:$0xff]
    %v2270 = vld [vmem:[#allocation7 + $0x6e8] sm:$0xff]
    %v2271 = vld [vmem:[#allocation7 + $0x6f0] sm:$0xff]
    %v2272 = vld [vmem:[#allocation7 + $0x6f8] sm:$0xff]
    %v2273 = vld [vmem:[#allocation7 + $0x700] sm:$0xff]
    %v2274 = vld [vmem:[#allocation7 + $0x708] sm:$0xff]
    %v2275 = vld [vmem:[#allocation7 + $0x710] sm:$0xff]
    %v2276 = vld [vmem:[#allocation7 + $0x718] sm:$0xff]
    %v2277 = vld [vmem:[#allocation7 + $0x720] sm:$0xff]
    %v2278 = vld [vmem:[#allocation7 + $0x728] sm:$0xff]
    %v2279 = vld [vmem:[#allocation7 + $0x730] sm:$0xff]
    %v2280 = vld [vmem:[#allocation7 + $0x738] sm:$0xff]
    %v2281 = vld [vmem:[#allocation7 + $0x740] sm:$0xff]
    %v2282 = vld [vmem:[#allocation7 + $0x748] sm:$0xff]
    %v2283 = vld [vmem:[#allocation7 + $0x750] sm:$0xff]
    %v2284 = vld [vmem:[#allocation7 + $0x758] sm:$0xff]
    %v2285 = vld [vmem:[#allocation7 + $0x760] sm:$0xff]
    %v2286 = vld [vmem:[#allocation7 + $0x768] sm:$0xff]
    %v2287 = vld [vmem:[#allocation7 + $0x770] sm:$0xff]
    %v2288 = vld [vmem:[#allocation7 + $0x778] sm:$0xff]
    %v2289 = vld [vmem:[#allocation7 + $0x780] sm:$0xff]
    %v2290 = vld [vmem:[#allocation7 + $0x788] sm:$0xff]
    %v2291 = vld [vmem:[#allocation7 + $0x790] sm:$0xff]
    %v2292 = vld [vmem:[#allocation7 + $0x798] sm:$0xff]
    %v2293 = vld [vmem:[#allocation7 + $0x7a0] sm:$0xff]
    %v2294 = vld [vmem:[#allocation7 + $0x7a8] sm:$0xff]
    %v2295 = vld [vmem:[#allocation7 + $0x7b0] sm:$0xff]
    %v2296 = vld [vmem:[#allocation7 + $0x7b8] sm:$0xff]
    %v2297 = vld [vmem:[#allocation7 + $0x7c0] sm:$0xff]
    %v2298 = vld [vmem:[#allocation7 + $0x7c8] sm:$0xff]
    %v2299 = vld [vmem:[#allocation7 + $0x7d0] sm:$0xff]
    %v2300 = vld [vmem:[#allocation7 + $0x7d8] sm:$0xff]
    %v2301 = vld [vmem:[#allocation7 + $0x7e0] sm:$0xff]
    %v2302 = vld [vmem:[#allocation7 + $0x7e8] sm:$0xff]
    %v2303 = vld [vmem:[#allocation7 + $0x7f0] sm:$0xff]
    %v2304 = vld [vmem:[#allocation7 + $0x7f8] sm:$0xff]
    %v2305 = vld [vmem:[%s4] sm:$0xf]
    %v2307 = vlaneseq
    %v2308 = vshrl.u32 %v2307, 7
    %v2309 = vsub.s32 0, %v2308
    %v2310 = vrot.slane %v2305, %v2309
    %v2311 = vlaneseq
    %v2312 = vshrl.u32 %v2311, 7
    %v2313 = vsub.s32 1, %v2312
    %v2314 = vrot.slane %v2305, %v2313
    %v2315 = vlaneseq
    %v2316 = vshrl.u32 %v2315, 7
    %v2317 = vsub.s32 2, %v2316
    %v2318 = vrot.slane %v2305, %v2317
    %v2319 = vlaneseq
    %v2320 = vshrl.u32 %v2319, 7
    %v2321 = vsub.s32 3, %v2320
    %v2322 = vrot.slane %v2305, %v2321
    %v2583 = vunpack.c.l.b16 %v2049
    %v2584 = vunpack.c.h.b16 %v2049
    %v2585 = vunpack.c.l.b16 %v2050
    %v2586 = vunpack.c.h.b16 %v2050
    %v2587 = vunpack.c.l.b16 %v2051
    %v2588 = vunpack.c.h.b16 %v2051
    %v2589 = vunpack.c.l.b16 %v2052
    %v2590 = vunpack.c.h.b16 %v2052
    %v2591 = vunpack.c.l.b16 %v2053
    %v2592 = vunpack.c.h.b16 %v2053
    %v2593 = vunpack.c.l.b16 %v2054
    %v2594 = vunpack.c.h.b16 %v2054
    %v2595 = vunpack.c.l.b16 %v2055
    %v2596 = vunpack.c.h.b16 %v2055
    %v2597 = vunpack.c.l.b16 %v2056
    %v2598 = vunpack.c.h.b16 %v2056
    %v2599 = vunpack.c.l.b16 %v2057
    %v2600 = vunpack.c.h.b16 %v2057
    %v2601 = vunpack.c.l.b16 %v2058
    %v2602 = vunpack.c.h.b16 %v2058
    %v2603 = vunpack.c.l.b16 %v2059
    %v2604 = vunpack.c.h.b16 %v2059
    %v2605 = vunpack.c.l.b16 %v2060
    %v2606 = vunpack.c.h.b16 %v2060
    %v2607 = vunpack.c.l.b16 %v2061
    %v2608 = vunpack.c.h.b16 %v2061
    %v2609 = vunpack.c.l.b16 %v2062
    %v2610 = vunpack.c.h.b16 %v2062
    %v2611 = vunpack.c.l.b16 %v2063
    %v2612 = vunpack.c.h.b16 %v2063
    %v2613 = vunpack.c.l.b16 %v2064
    %v2614 = vunpack.c.h.b16 %v2064
    %v2615 = vunpack.c.l.b16 %v2065
    %v2616 = vunpack.c.h.b16 %v2065
    %v2617 = vunpack.c.l.b16 %v2066
    %v2618 = vunpack.c.h.b16 %v2066
    %v2619 = vunpack.c.l.b16 %v2067
    %v2620 = vunpack.c.h.b16 %v2067
    %v2621 = vunpack.c.l.b16 %v2068
    %v2622 = vunpack.c.h.b16 %v2068
    %v2623 = vunpack.c.l.b16 %v2069
    %v2624 = vunpack.c.h.b16 %v2069
    %v2625 = vunpack.c.l.b16 %v2070
    %v2626 = vunpack.c.h.b16 %v2070
    %v2627 = vunpack.c.l.b16 %v2071
    %v2628 = vunpack.c.h.b16 %v2071
    %v2629 = vunpack.c.l.b16 %v2072
    %v2630 = vunpack.c.h.b16 %v2072
    %v2631 = vunpack.c.l.b16 %v2073
    %v2632 = vunpack.c.h.b16 %v2073
    %v2633 = vunpack.c.l.b16 %v2074
    %v2634 = vunpack.c.h.b16 %v2074
    %v2635 = vunpack.c.l.b16 %v2075
    %v2636 = vunpack.c.h.b16 %v2075
    %v2637 = vunpack.c.l.b16 %v2076
    %v2638 = vunpack.c.h.b16 %v2076
    %v2639 = vunpack.c.l.b16 %v2077
    %v2640 = vunpack.c.h.b16 %v2077
    %v2641 = vunpack.c.l.b16 %v2078
    %v2642 = vunpack.c.h.b16 %v2078
    %v2643 = vunpack.c.l.b16 %v2079
    %v2644 = vunpack.c.h.b16 %v2079
    %v2645 = vunpack.c.l.b16 %v2080
    %v2646 = vunpack.c.h.b16 %v2080
    %v2647 = vunpack.c.l.b16 %v2081
    %v2648 = vunpack.c.h.b16 %v2081
    %v2649 = vunpack.c.l.b16 %v2082
    %v2650 = vunpack.c.h.b16 %v2082
    %v2651 = vunpack.c.l.b16 %v2083
    %v2652 = vunpack.c.h.b16 %v2083
    %v2653 = vunpack.c.l.b16 %v2084
    %v2654 = vunpack.c.h.b16 %v2084
    %v2655 = vunpack.c.l.b16 %v2085
    %v2656 = vunpack.c.h.b16 %v2085
    %v2657 = vunpack.c.l.b16 %v2086
    %v2658 = vunpack.c.h.b16 %v2086
    %v2659 = vunpack.c.l.b16 %v2087
    %v2660 = vunpack.c.h.b16 %v2087
    %v2661 = vunpack.c.l.b16 %v2088
    %v2662 = vunpack.c.h.b16 %v2088
    %v2663 = vunpack.c.l.b16 %v2089
    %v2664 = vunpack.c.h.b16 %v2089
    %v2665 = vunpack.c.l.b16 %v2090
    %v2666 = vunpack.c.h.b16 %v2090
    %v2667 = vunpack.c.l.b16 %v2091
    %v2668 = vunpack.c.h.b16 %v2091
    %v2669 = vunpack.c.l.b16 %v2092
    %v2670 = vunpack.c.h.b16 %v2092
    %v2671 = vunpack.c.l.b16 %v2093
    %v2672 = vunpack.c.h.b16 %v2093
    %v2673 = vunpack.c.l.b16 %v2094
    %v2674 = vunpack.c.h.b16 %v2094
    %v2675 = vunpack.c.l.b16 %v2095
    %v2676 = vunpack.c.h.b16 %v2095
    %v2677 = vunpack.c.l.b16 %v2096
    %v2678 = vunpack.c.h.b16 %v2096
    %v2679 = vunpack.c.l.b16 %v2097
    %v2680 = vunpack.c.h.b16 %v2097
    %v2681 = vunpack.c.l.b16 %v2098
    %v2682 = vunpack.c.h.b16 %v2098
    %v2683 = vunpack.c.l.b16 %v2099
    %v2684 = vunpack.c.h.b16 %v2099
    %v2685 = vunpack.c.l.b16 %v2100
    %v2686 = vunpack.c.h.b16 %v2100
    %v2687 = vunpack.c.l.b16 %v2101
    %v2688 = vunpack.c.h.b16 %v2101
    %v2689 = vunpack.c.l.b16 %v2102
    %v2690 = vunpack.c.h.b16 %v2102
    %v2691 = vunpack.c.l.b16 %v2103
    %v2692 = vunpack.c.h.b16 %v2103
    %v2693 = vunpack.c.l.b16 %v2104
    %v2694 = vunpack.c.h.b16 %v2104
    %v2695 = vunpack.c.l.b16 %v2105
    %v2696 = vunpack.c.h.b16 %v2105
    %v2697 = vunpack.c.l.b16 %v2106
    %v2698 = vunpack.c.h.b16 %v2106
    %v2699 = vunpack.c.l.b16 %v2107
    %v2700 = vunpack.c.h.b16 %v2107
    %v2701 = vunpack.c.l.b16 %v2108
    %v2702 = vunpack.c.h.b16 %v2108
    %v2703 = vunpack.c.l.b16 %v2109
    %v2704 = vunpack.c.h.b16 %v2109
    %v2705 = vunpack.c.l.b16 %v2110
    %v2706 = vunpack.c.h.b16 %v2110
    %v2707 = vunpack.c.l.b16 %v2111
    %v2708 = vunpack.c.h.b16 %v2111
    %v2709 = vunpack.c.l.b16 %v2112
    %v2710 = vunpack.c.h.b16 %v2112
    %v2711 = vunpack.c.l.b16 %v2113
    %v2712 = vunpack.c.h.b16 %v2113
    %v2713 = vunpack.c.l.b16 %v2114
    %v2714 = vunpack.c.h.b16 %v2114
    %v2715 = vunpack.c.l.b16 %v2115
    %v2716 = vunpack.c.h.b16 %v2115
    %v2717 = vunpack.c.l.b16 %v2116
    %v2718 = vunpack.c.h.b16 %v2116
    %v2719 = vunpack.c.l.b16 %v2117
    %v2720 = vunpack.c.h.b16 %v2117
    %v2721 = vunpack.c.l.b16 %v2118
    %v2722 = vunpack.c.h.b16 %v2118
    %v2723 = vunpack.c.l.b16 %v2119
    %v2724 = vunpack.c.h.b16 %v2119
    %v2725 = vunpack.c.l.b16 %v2120
    %v2726 = vunpack.c.h.b16 %v2120
    %v2727 = vunpack.c.l.b16 %v2121
    %v2728 = vunpack.c.h.b16 %v2121
    %v2729 = vunpack.c.l.b16 %v2122
    %v2730 = vunpack.c.h.b16 %v2122
    %v2731 = vunpack.c.l.b16 %v2123
    %v2732 = vunpack.c.h.b16 %v2123
    %v2733 = vunpack.c.l.b16 %v2124
    %v2734 = vunpack.c.h.b16 %v2124
    %v2735 = vunpack.c.l.b16 %v2125
    %v2736 = vunpack.c.h.b16 %v2125
    %v2737 = vunpack.c.l.b16 %v2126
    %v2738 = vunpack.c.h.b16 %v2126
    %v2739 = vunpack.c.l.b16 %v2127
    %v2740 = vunpack.c.h.b16 %v2127
    %v2741 = vunpack.c.l.b16 %v2128
    %v2742 = vunpack.c.h.b16 %v2128
    %v2743 = vunpack.c.l.b16 %v2129
    %v2744 = vunpack.c.h.b16 %v2129
    %v2745 = vunpack.c.l.b16 %v2130
    %v2746 = vunpack.c.h.b16 %v2130
    %v2747 = vunpack.c.l.b16 %v2131
    %v2748 = vunpack.c.h.b16 %v2131
    %v2749 = vunpack.c.l.b16 %v2132
    %v2750 = vunpack.c.h.b16 %v2132
    %v2751 = vunpack.c.l.b16 %v2133
    %v2752 = vunpack.c.h.b16 %v2133
    %v2753 = vunpack.c.l.b16 %v2134
    %v2754 = vunpack.c.h.b16 %v2134
    %v2755 = vunpack.c.l.b16 %v2135
    %v2756 = vunpack.c.h.b16 %v2135
    %v2757 = vunpack.c.l.b16 %v2136
    %v2758 = vunpack.c.h.b16 %v2136
    %v2759 = vunpack.c.l.b16 %v2137
    %v2760 = vunpack.c.h.b16 %v2137
    %v2761 = vunpack.c.l.b16 %v2138
    %v2762 = vunpack.c.h.b16 %v2138
    %v2763 = vunpack.c.l.b16 %v2139
    %v2764 = vunpack.c.h.b16 %v2139
    %v2765 = vunpack.c.l.b16 %v2140
    %v2766 = vunpack.c.h.b16 %v2140
    %v2767 = vunpack.c.l.b16 %v2141
    %v2768 = vunpack.c.h.b16 %v2141
    %v2769 = vunpack.c.l.b16 %v2142
    %v2770 = vunpack.c.h.b16 %v2142
    %v2771 = vunpack.c.l.b16 %v2143
    %v2772 = vunpack.c.h.b16 %v2143
    %v2773 = vunpack.c.l.b16 %v2144
    %v2774 = vunpack.c.h.b16 %v2144
    %v2775 = vunpack.c.l.b16 %v2145
    %v2776 = vunpack.c.h.b16 %v2145
    %v2777 = vunpack.c.l.b16 %v2146
    %v2778 = vunpack.c.h.b16 %v2146
    %v2779 = vunpack.c.l.b16 %v2147
    %v2780 = vunpack.c.h.b16 %v2147
    %v2781 = vunpack.c.l.b16 %v2148
    %v2782 = vunpack.c.h.b16 %v2148
    %v2783 = vunpack.c.l.b16 %v2149
    %v2784 = vunpack.c.h.b16 %v2149
    %v2785 = vunpack.c.l.b16 %v2150
    %v2786 = vunpack.c.h.b16 %v2150
    %v2787 = vunpack.c.l.b16 %v2151
    %v2788 = vunpack.c.h.b16 %v2151
    %v2789 = vunpack.c.l.b16 %v2152
    %v2790 = vunpack.c.h.b16 %v2152
    %v2791 = vunpack.c.l.b16 %v2153
    %v2792 = vunpack.c.h.b16 %v2153
    %v2793 = vunpack.c.l.b16 %v2154
    %v2794 = vunpack.c.h.b16 %v2154
    %v2795 = vunpack.c.l.b16 %v2155
    %v2796 = vunpack.c.h.b16 %v2155
    %v2797 = vunpack.c.l.b16 %v2156
    %v2798 = vunpack.c.h.b16 %v2156
    %v2799 = vunpack.c.l.b16 %v2157
    %v2800 = vunpack.c.h.b16 %v2157
    %v2801 = vunpack.c.l.b16 %v2158
    %v2802 = vunpack.c.h.b16 %v2158
    %v2803 = vunpack.c.l.b16 %v2159
    %v2804 = vunpack.c.h.b16 %v2159
    %v2805 = vunpack.c.l.b16 %v2160
    %v2806 = vunpack.c.h.b16 %v2160
    %v2807 = vunpack.c.l.b16 %v2161
    %v2808 = vunpack.c.h.b16 %v2161
    %v2809 = vunpack.c.l.b16 %v2162
    %v2810 = vunpack.c.h.b16 %v2162
    %v2811 = vunpack.c.l.b16 %v2163
    %v2812 = vunpack.c.h.b16 %v2163
    %v2813 = vunpack.c.l.b16 %v2164
    %v2814 = vunpack.c.h.b16 %v2164
    %v2815 = vunpack.c.l.b16 %v2165
    %v2816 = vunpack.c.h.b16 %v2165
    %v2817 = vunpack.c.l.b16 %v2166
    %v2818 = vunpack.c.h.b16 %v2166
    %v2819 = vunpack.c.l.b16 %v2167
    %v2820 = vunpack.c.h.b16 %v2167
    %v2821 = vunpack.c.l.b16 %v2168
    %v2822 = vunpack.c.h.b16 %v2168
    %v2823 = vunpack.c.l.b16 %v2169
    %v2824 = vunpack.c.h.b16 %v2169
    %v2825 = vunpack.c.l.b16 %v2170
    %v2826 = vunpack.c.h.b16 %v2170
    %v2827 = vunpack.c.l.b16 %v2171
    %v2828 = vunpack.c.h.b16 %v2171
    %v2829 = vunpack.c.l.b16 %v2172
    %v2830 = vunpack.c.h.b16 %v2172
    %v2831 = vunpack.c.l.b16 %v2173
    %v2832 = vunpack.c.h.b16 %v2173
    %v2833 = vunpack.c.l.b16 %v2174
    %v2834 = vunpack.c.h.b16 %v2174
    %v2835 = vunpack.c.l.b16 %v2175
    %v2836 = vunpack.c.h.b16 %v2175
    %v2837 = vunpack.c.l.b16 %v2176
    %v2838 = vunpack.c.h.b16 %v2176
    %v2839 = vunpack.c.l.b16 %v2177
    %v2840 = vunpack.c.h.b16 %v2177
    %v2841 = vunpack.c.l.b16 %v2178
    %v2842 = vunpack.c.h.b16 %v2178
    %v2843 = vunpack.c.l.b16 %v2179
    %v2844 = vunpack.c.h.b16 %v2179
    %v2845 = vunpack.c.l.b16 %v2180
    %v2846 = vunpack.c.h.b16 %v2180
    %v2847 = vunpack.c.l.b16 %v2181
    %v2848 = vunpack.c.h.b16 %v2181
    %v2849 = vunpack.c.l.b16 %v2182
    %v2850 = vunpack.c.h.b16 %v2182
    %v2851 = vunpack.c.l.b16 %v2183
    %v2852 = vunpack.c.h.b16 %v2183
    %v2853 = vunpack.c.l.b16 %v2184
    %v2854 = vunpack.c.h.b16 %v2184
    %v2855 = vunpack.c.l.b16 %v2185
    %v2856 = vunpack.c.h.b16 %v2185
    %v2857 = vunpack.c.l.b16 %v2186
    %v2858 = vunpack.c.h.b16 %v2186
    %v2859 = vunpack.c.l.b16 %v2187
    %v2860 = vunpack.c.h.b16 %v2187
    %v2861 = vunpack.c.l.b16 %v2188
    %v2862 = vunpack.c.h.b16 %v2188
    %v2863 = vunpack.c.l.b16 %v2189
    %v2864 = vunpack.c.h.b16 %v2189
    %v2865 = vunpack.c.l.b16 %v2190
    %v2866 = vunpack.c.h.b16 %v2190
    %v2867 = vunpack.c.l.b16 %v2191
    %v2868 = vunpack.c.h.b16 %v2191
    %v2869 = vunpack.c.l.b16 %v2192
    %v2870 = vunpack.c.h.b16 %v2192
    %v2871 = vunpack.c.l.b16 %v2193
    %v2872 = vunpack.c.h.b16 %v2193
    %v2873 = vunpack.c.l.b16 %v2194
    %v2874 = vunpack.c.h.b16 %v2194
    %v2875 = vunpack.c.l.b16 %v2195
    %v2876 = vunpack.c.h.b16 %v2195
    %v2877 = vunpack.c.l.b16 %v2196
    %v2878 = vunpack.c.h.b16 %v2196
    %v2879 = vunpack.c.l.b16 %v2197
    %v2880 = vunpack.c.h.b16 %v2197
    %v2881 = vunpack.c.l.b16 %v2198
    %v2882 = vunpack.c.h.b16 %v2198
    %v2883 = vunpack.c.l.b16 %v2199
    %v2884 = vunpack.c.h.b16 %v2199
    %v2885 = vunpack.c.l.b16 %v2200
    %v2886 = vunpack.c.h.b16 %v2200
    %v2887 = vunpack.c.l.b16 %v2201
    %v2888 = vunpack.c.h.b16 %v2201
    %v2889 = vunpack.c.l.b16 %v2202
    %v2890 = vunpack.c.h.b16 %v2202
    %v2891 = vunpack.c.l.b16 %v2203
    %v2892 = vunpack.c.h.b16 %v2203
    %v2893 = vunpack.c.l.b16 %v2204
    %v2894 = vunpack.c.h.b16 %v2204
    %v2895 = vunpack.c.l.b16 %v2205
    %v2896 = vunpack.c.h.b16 %v2205
    %v2897 = vunpack.c.l.b16 %v2206
    %v2898 = vunpack.c.h.b16 %v2206
    %v2899 = vunpack.c.l.b16 %v2207
    %v2900 = vunpack.c.h.b16 %v2207
    %v2901 = vunpack.c.l.b16 %v2208
    %v2902 = vunpack.c.h.b16 %v2208
    %v2903 = vunpack.c.l.b16 %v2209
    %v2904 = vunpack.c.h.b16 %v2209
    %v2905 = vunpack.c.l.b16 %v2210
    %v2906 = vunpack.c.h.b16 %v2210
    %v2907 = vunpack.c.l.b16 %v2211
    %v2908 = vunpack.c.h.b16 %v2211
    %v2909 = vunpack.c.l.b16 %v2212
    %v2910 = vunpack.c.h.b16 %v2212
    %v2911 = vunpack.c.l.b16 %v2213
    %v2912 = vunpack.c.h.b16 %v2213
    %v2913 = vunpack.c.l.b16 %v2214
    %v2914 = vunpack.c.h.b16 %v2214
    %v2915 = vunpack.c.l.b16 %v2215
    %v2916 = vunpack.c.h.b16 %v2215
    %v2917 = vunpack.c.l.b16 %v2216
    %v2918 = vunpack.c.h.b16 %v2216
    %v2919 = vunpack.c.l.b16 %v2217
    %v2920 = vunpack.c.h.b16 %v2217
    %v2921 = vunpack.c.l.b16 %v2218
    %v2922 = vunpack.c.h.b16 %v2218
    %v2923 = vunpack.c.l.b16 %v2219
    %v2924 = vunpack.c.h.b16 %v2219
    %v2925 = vunpack.c.l.b16 %v2220
    %v2926 = vunpack.c.h.b16 %v2220
    %v2927 = vunpack.c.l.b16 %v2221
    %v2928 = vunpack.c.h.b16 %v2221
    %v2929 = vunpack.c.l.b16 %v2222
    %v2930 = vunpack.c.h.b16 %v2222
    %v2931 = vunpack.c.l.b16 %v2223
    %v2932 = vunpack.c.h.b16 %v2223
    %v2933 = vunpack.c.l.b16 %v2224
    %v2934 = vunpack.c.h.b16 %v2224
    %v2935 = vunpack.c.l.b16 %v2225
    %v2936 = vunpack.c.h.b16 %v2225
    %v2937 = vunpack.c.l.b16 %v2226
    %v2938 = vunpack.c.h.b16 %v2226
    %v2939 = vunpack.c.l.b16 %v2227
    %v2940 = vunpack.c.h.b16 %v2227
    %v2941 = vunpack.c.l.b16 %v2228
    %v2942 = vunpack.c.h.b16 %v2228
    %v2943 = vunpack.c.l.b16 %v2229
    %v2944 = vunpack.c.h.b16 %v2229
    %v2945 = vunpack.c.l.b16 %v2230
    %v2946 = vunpack.c.h.b16 %v2230
    %v2947 = vunpack.c.l.b16 %v2231
    %v2948 = vunpack.c.h.b16 %v2231
    %v2949 = vunpack.c.l.b16 %v2232
    %v2950 = vunpack.c.h.b16 %v2232
    %v2951 = vunpack.c.l.b16 %v2233
    %v2952 = vunpack.c.h.b16 %v2233
    %v2953 = vunpack.c.l.b16 %v2234
    %v2954 = vunpack.c.h.b16 %v2234
    %v2955 = vunpack.c.l.b16 %v2235
    %v2956 = vunpack.c.h.b16 %v2235
    %v2957 = vunpack.c.l.b16 %v2236
    %v2958 = vunpack.c.h.b16 %v2236
    %v2959 = vunpack.c.l.b16 %v2237
    %v2960 = vunpack.c.h.b16 %v2237
    %v2961 = vunpack.c.l.b16 %v2238
    %v2962 = vunpack.c.h.b16 %v2238
    %v2963 = vunpack.c.l.b16 %v2239
    %v2964 = vunpack.c.h.b16 %v2239
    %v2965 = vunpack.c.l.b16 %v2240
    %v2966 = vunpack.c.h.b16 %v2240
    %v2967 = vunpack.c.l.b16 %v2241
    %v2968 = vunpack.c.h.b16 %v2241
    %v2969 = vunpack.c.l.b16 %v2242
    %v2970 = vunpack.c.h.b16 %v2242
    %v2971 = vunpack.c.l.b16 %v2243
    %v2972 = vunpack.c.h.b16 %v2243
    %v2973 = vunpack.c.l.b16 %v2244
    %v2974 = vunpack.c.h.b16 %v2244
    %v2975 = vunpack.c.l.b16 %v2245
    %v2976 = vunpack.c.h.b16 %v2245
    %v2977 = vunpack.c.l.b16 %v2246
    %v2978 = vunpack.c.h.b16 %v2246
    %v2979 = vunpack.c.l.b16 %v2247
    %v2980 = vunpack.c.h.b16 %v2247
    %v2981 = vunpack.c.l.b16 %v2248
    %v2982 = vunpack.c.h.b16 %v2248
    %v2983 = vunpack.c.l.b16 %v2249
    %v2984 = vunpack.c.h.b16 %v2249
    %v2985 = vunpack.c.l.b16 %v2250
    %v2986 = vunpack.c.h.b16 %v2250
    %v2987 = vunpack.c.l.b16 %v2251
    %v2988 = vunpack.c.h.b16 %v2251
    %v2989 = vunpack.c.l.b16 %v2252
    %v2990 = vunpack.c.h.b16 %v2252
    %v2991 = vunpack.c.l.b16 %v2253
    %v2992 = vunpack.c.h.b16 %v2253
    %v2993 = vunpack.c.l.b16 %v2254
    %v2994 = vunpack.c.h.b16 %v2254
    %v2995 = vunpack.c.l.b16 %v2255
    %v2996 = vunpack.c.h.b16 %v2255
    %v2997 = vunpack.c.l.b16 %v2256
    %v2998 = vunpack.c.h.b16 %v2256
    %v2999 = vunpack.c.l.b16 %v2257
    %v3000 = vunpack.c.h.b16 %v2257
    %v3001 = vunpack.c.l.b16 %v2258
    %v3002 = vunpack.c.h.b16 %v2258
    %v3003 = vunpack.c.l.b16 %v2259
    %v3004 = vunpack.c.h.b16 %v2259
    %v3005 = vunpack.c.l.b16 %v2260
    %v3006 = vunpack.c.h.b16 %v2260
    %v3007 = vunpack.c.l.b16 %v2261
    %v3008 = vunpack.c.h.b16 %v2261
    %v3009 = vunpack.c.l.b16 %v2262
    %v3010 = vunpack.c.h.b16 %v2262
    %v3011 = vunpack.c.l.b16 %v2263
    %v3012 = vunpack.c.h.b16 %v2263
    %v3013 = vunpack.c.l.b16 %v2264
    %v3014 = vunpack.c.h.b16 %v2264
    %v3015 = vunpack.c.l.b16 %v2265
    %v3016 = vunpack.c.h.b16 %v2265
    %v3017 = vunpack.c.l.b16 %v2266
    %v3018 = vunpack.c.h.b16 %v2266
    %v3019 = vunpack.c.l.b16 %v2267
    %v3020 = vunpack.c.h.b16 %v2267
    %v3021 = vunpack.c.l.b16 %v2268
    %v3022 = vunpack.c.h.b16 %v2268
    %v3023 = vunpack.c.l.b16 %v2269
    %v3024 = vunpack.c.h.b16 %v2269
    %v3025 = vunpack.c.l.b16 %v2270
    %v3026 = vunpack.c.h.b16 %v2270
    %v3027 = vunpack.c.l.b16 %v2271
    %v3028 = vunpack.c.h.b16 %v2271
    %v3029 = vunpack.c.l.b16 %v2272
    %v3030 = vunpack.c.h.b16 %v2272
    %v3031 = vunpack.c.l.b16 %v2273
    %v3032 = vunpack.c.h.b16 %v2273
    %v3033 = vunpack.c.l.b16 %v2274
    %v3034 = vunpack.c.h.b16 %v2274
    %v3035 = vunpack.c.l.b16 %v2275
    %v3036 = vunpack.c.h.b16 %v2275
    %v3037 = vunpack.c.l.b16 %v2276
    %v3038 = vunpack.c.h.b16 %v2276
    %v3039 = vunpack.c.l.b16 %v2277
    %v3040 = vunpack.c.h.b16 %v2277
    %v3041 = vunpack.c.l.b16 %v2278
    %v3042 = vunpack.c.h.b16 %v2278
    %v3043 = vunpack.c.l.b16 %v2279
    %v3044 = vunpack.c.h.b16 %v2279
    %v3045 = vunpack.c.l.b16 %v2280
    %v3046 = vunpack.c.h.b16 %v2280
    %v3047 = vunpack.c.l.b16 %v2281
    %v3048 = vunpack.c.h.b16 %v2281
    %v3049 = vunpack.c.l.b16 %v2282
    %v3050 = vunpack.c.h.b16 %v2282
    %v3051 = vunpack.c.l.b16 %v2283
    %v3052 = vunpack.c.h.b16 %v2283
    %v3053 = vunpack.c.l.b16 %v2284
    %v3054 = vunpack.c.h.b16 %v2284
    %v3055 = vunpack.c.l.b16 %v2285
    %v3056 = vunpack.c.h.b16 %v2285
    %v3057 = vunpack.c.l.b16 %v2286
    %v3058 = vunpack.c.h.b16 %v2286
    %v3059 = vunpack.c.l.b16 %v2287
    %v3060 = vunpack.c.h.b16 %v2287
    %v3061 = vunpack.c.l.b16 %v2288
    %v3062 = vunpack.c.h.b16 %v2288
    %v3063 = vunpack.c.l.b16 %v2289
    %v3064 = vunpack.c.h.b16 %v2289
    %v3065 = vunpack.c.l.b16 %v2290
    %v3066 = vunpack.c.h.b16 %v2290
    %v3067 = vunpack.c.l.b16 %v2291
    %v3068 = vunpack.c.h.b16 %v2291
    %v3069 = vunpack.c.l.b16 %v2292
    %v3070 = vunpack.c.h.b16 %v2292
    %v3071 = vunpack.c.l.b16 %v2293
    %v3072 = vunpack.c.h.b16 %v2293
    %v3073 = vunpack.c.l.b16 %v2294
    %v3074 = vunpack.c.h.b16 %v2294
    %v3075 = vunpack.c.l.b16 %v2295
    %v3076 = vunpack.c.h.b16 %v2295
    %v3077 = vunpack.c.l.b16 %v2296
    %v3078 = vunpack.c.h.b16 %v2296
    %v3079 = vunpack.c.l.b16 %v2297
    %v3080 = vunpack.c.h.b16 %v2297
    %v3081 = vunpack.c.l.b16 %v2298
    %v3082 = vunpack.c.h.b16 %v2298
    %v3083 = vunpack.c.l.b16 %v2299
    %v3084 = vunpack.c.h.b16 %v2299
    %v3085 = vunpack.c.l.b16 %v2300
    %v3086 = vunpack.c.h.b16 %v2300
    %v3087 = vunpack.c.l.b16 %v2301
    %v3088 = vunpack.c.h.b16 %v2301
    %v3089 = vunpack.c.l.b16 %v2302
    %v3090 = vunpack.c.h.b16 %v2302
    %v3091 = vunpack.c.l.b16 %v2303
    %v3092 = vunpack.c.h.b16 %v2303
    %v3093 = vunpack.c.l.b16 %v2304
    %v3094 = vunpack.c.h.b16 %v2304
    %v3095 = vpack.c.b16 %v2587, %v2583
    %v3096 = vpack.c.b16 %v2588, %v2584
    %v3097 = vpack.c.b16 %v2589, %v2585
    %v3098 = vpack.c.b16 %v2590, %v2586
    %v3099 = vpack.c.b16 %v2595, %v2591
    %v3100 = vpack.c.b16 %v2596, %v2592
    %v3101 = vpack.c.b16 %v2597, %v2593
    %v3102 = vpack.c.b16 %v2598, %v2594
    %v3103 = vpack.c.b16 %v2603, %v2599
    %v3104 = vpack.c.b16 %v2604, %v2600
    %v3105 = vpack.c.b16 %v2605, %v2601
    %v3106 = vpack.c.b16 %v2606, %v2602
    %v3107 = vpack.c.b16 %v2611, %v2607
    %v3108 = vpack.c.b16 %v2612, %v2608
    %v3109 = vpack.c.b16 %v2613, %v2609
    %v3110 = vpack.c.b16 %v2614, %v2610
    %v3111 = vpack.c.b16 %v2619, %v2615
    %v3112 = vpack.c.b16 %v2620, %v2616
    %v3113 = vpack.c.b16 %v2621, %v2617
    %v3114 = vpack.c.b16 %v2622, %v2618
    %v3115 = vpack.c.b16 %v2627, %v2623
    %v3116 = vpack.c.b16 %v2628, %v2624
    %v3117 = vpack.c.b16 %v2629, %v2625
    %v3118 = vpack.c.b16 %v2630, %v2626
    %v3119 = vpack.c.b16 %v2635, %v2631
    %v3120 = vpack.c.b16 %v2636, %v2632
    %v3121 = vpack.c.b16 %v2637, %v2633
    %v3122 = vpack.c.b16 %v2638, %v2634
    %v3123 = vpack.c.b16 %v2643, %v2639
    %v3124 = vpack.c.b16 %v2644, %v2640
    %v3125 = vpack.c.b16 %v2645, %v2641
    %v3126 = vpack.c.b16 %v2646, %v2642
    %v3127 = vpack.c.b16 %v2651, %v2647
    %v3128 = vpack.c.b16 %v2652, %v2648
    %v3129 = vpack.c.b16 %v2653, %v2649
    %v3130 = vpack.c.b16 %v2654, %v2650
    %v3131 = vpack.c.b16 %v2659, %v2655
    %v3132 = vpack.c.b16 %v2660, %v2656
    %v3133 = vpack.c.b16 %v2661, %v2657
    %v3134 = vpack.c.b16 %v2662, %v2658
    %v3135 = vpack.c.b16 %v2667, %v2663
    %v3136 = vpack.c.b16 %v2668, %v2664
    %v3137 = vpack.c.b16 %v2669, %v2665
    %v3138 = vpack.c.b16 %v2670, %v2666
    %v3139 = vpack.c.b16 %v2675, %v2671
    %v3140 = vpack.c.b16 %v2676, %v2672
    %v3141 = vpack.c.b16 %v2677, %v2673
    %v3142 = vpack.c.b16 %v2678, %v2674
    %v3143 = vpack.c.b16 %v2683, %v2679
    %v3144 = vpack.c.b16 %v2684, %v2680
    %v3145 = vpack.c.b16 %v2685, %v2681
    %v3146 = vpack.c.b16 %v2686, %v2682
    %v3147 = vpack.c.b16 %v2691, %v2687
    %v3148 = vpack.c.b16 %v2692, %v2688
    %v3149 = vpack.c.b16 %v2693, %v2689
    %v3150 = vpack.c.b16 %v2694, %v2690
    %v3151 = vpack.c.b16 %v2699, %v2695
    %v3152 = vpack.c.b16 %v2700, %v2696
    %v3153 = vpack.c.b16 %v2701, %v2697
    %v3154 = vpack.c.b16 %v2702, %v2698
    %v3155 = vpack.c.b16 %v2707, %v2703
    %v3156 = vpack.c.b16 %v2708, %v2704
    %v3157 = vpack.c.b16 %v2709, %v2705
    %v3158 = vpack.c.b16 %v2710, %v2706
    %v3159 = vpack.c.b16 %v2715, %v2711
    %v3160 = vpack.c.b16 %v2716, %v2712
    %v3161 = vpack.c.b16 %v2717, %v2713
    %v3162 = vpack.c.b16 %v2718, %v2714
    %v3163 = vpack.c.b16 %v2723, %v2719
    %v3164 = vpack.c.b16 %v2724, %v2720
    %v3165 = vpack.c.b16 %v2725, %v2721
    %v3166 = vpack.c.b16 %v2726, %v2722
    %v3167 = vpack.c.b16 %v2731, %v2727
    %v3168 = vpack.c.b16 %v2732, %v2728
    %v3169 = vpack.c.b16 %v2733, %v2729
    %v3170 = vpack.c.b16 %v2734, %v2730
    %v3171 = vpack.c.b16 %v2739, %v2735
    %v3172 = vpack.c.b16 %v2740, %v2736
    %v3173 = vpack.c.b16 %v2741, %v2737
    %v3174 = vpack.c.b16 %v2742, %v2738
    %v3175 = vpack.c.b16 %v2747, %v2743
    %v3176 = vpack.c.b16 %v2748, %v2744
    %v3177 = vpack.c.b16 %v2749, %v2745
    %v3178 = vpack.c.b16 %v2750, %v2746
    %v3179 = vpack.c.b16 %v2755, %v2751
    %v3180 = vpack.c.b16 %v2756, %v2752
    %v3181 = vpack.c.b16 %v2757, %v2753
    %v3182 = vpack.c.b16 %v2758, %v2754
    %v3183 = vpack.c.b16 %v2763, %v2759
    %v3184 = vpack.c.b16 %v2764, %v2760
    %v3185 = vpack.c.b16 %v2765, %v2761
    %v3186 = vpack.c.b16 %v2766, %v2762
    %v3187 = vpack.c.b16 %v2771, %v2767
    %v3188 = vpack.c.b16 %v2772, %v2768
    %v3189 = vpack.c.b16 %v2773, %v2769
    %v3190 = vpack.c.b16 %v2774, %v2770
    %v3191 = vpack.c.b16 %v2779, %v2775
    %v3192 = vpack.c.b16 %v2780, %v2776
    %v3193 = vpack.c.b16 %v2781, %v2777
    %v3194 = vpack.c.b16 %v2782, %v2778
    %v3195 = vpack.c.b16 %v2787, %v2783
    %v3196 = vpack.c.b16 %v2788, %v2784
    %v3197 = vpack.c.b16 %v2789, %v2785
    %v3198 = vpack.c.b16 %v2790, %v2786
    %v3199 = vpack.c.b16 %v2795, %v2791
    %v3200 = vpack.c.b16 %v2796, %v2792
    %v3201 = vpack.c.b16 %v2797, %v2793
    %v3202 = vpack.c.b16 %v2798, %v2794
    %v3203 = vpack.c.b16 %v2803, %v2799
    %v3204 = vpack.c.b16 %v2804, %v2800
    %v3205 = vpack.c.b16 %v2805, %v2801
    %v3206 = vpack.c.b16 %v2806, %v2802
    %v3207 = vpack.c.b16 %v2811, %v2807
    %v3208 = vpack.c.b16 %v2812, %v2808
    %v3209 = vpack.c.b16 %v2813, %v2809
    %v3210 = vpack.c.b16 %v2814, %v2810
    %v3211 = vpack.c.b16 %v2819, %v2815
    %v3212 = vpack.c.b16 %v2820, %v2816
    %v3213 = vpack.c.b16 %v2821, %v2817
    %v3214 = vpack.c.b16 %v2822, %v2818
    %v3215 = vpack.c.b16 %v2827, %v2823
    %v3216 = vpack.c.b16 %v2828, %v2824
    %v3217 = vpack.c.b16 %v2829, %v2825
    %v3218 = vpack.c.b16 %v2830, %v2826
    %v3219 = vpack.c.b16 %v2835, %v2831
    %v3220 = vpack.c.b16 %v2836, %v2832
    %v3221 = vpack.c.b16 %v2837, %v2833
    %v3222 = vpack.c.b16 %v2838, %v2834
    %v3223 = vpack.c.b16 %v2843, %v2839
    %v3224 = vpack.c.b16 %v2844, %v2840
    %v3225 = vpack.c.b16 %v2845, %v2841
    %v3226 = vpack.c.b16 %v2846, %v2842
    %v3227 = vpack.c.b16 %v2851, %v2847
    %v3228 = vpack.c.b16 %v2852, %v2848
    %v3229 = vpack.c.b16 %v2853, %v2849
    %v3230 = vpack.c.b16 %v2854, %v2850
    %v3231 = vpack.c.b16 %v2859, %v2855
    %v3232 = vpack.c.b16 %v2860, %v2856
    %v3233 = vpack.c.b16 %v2861, %v2857
    %v3234 = vpack.c.b16 %v2862, %v2858
    %v3235 = vpack.c.b16 %v2867, %v2863
    %v3236 = vpack.c.b16 %v2868, %v2864
    %v3237 = vpack.c.b16 %v2869, %v2865
    %v3238 = vpack.c.b16 %v2870, %v2866
    %v3239 = vpack.c.b16 %v2875, %v2871
    %v3240 = vpack.c.b16 %v2876, %v2872
    %v3241 = vpack.c.b16 %v2877, %v2873
    %v3242 = vpack.c.b16 %v2878, %v2874
    %v3243 = vpack.c.b16 %v2883, %v2879
    %v3244 = vpack.c.b16 %v2884, %v2880
    %v3245 = vpack.c.b16 %v2885, %v2881
    %v3246 = vpack.c.b16 %v2886, %v2882
    %v3247 = vpack.c.b16 %v2891, %v2887
    %v3248 = vpack.c.b16 %v2892, %v2888
    %v3249 = vpack.c.b16 %v2893, %v2889
    %v3250 = vpack.c.b16 %v2894, %v2890
    %v3251 = vpack.c.b16 %v2899, %v2895
    %v3252 = vpack.c.b16 %v2900, %v2896
    %v3253 = vpack.c.b16 %v2901, %v2897
    %v3254 = vpack.c.b16 %v2902, %v2898
    %v3255 = vpack.c.b16 %v2907, %v2903
    %v3256 = vpack.c.b16 %v2908, %v2904
    %v3257 = vpack.c.b16 %v2909, %v2905
    %v3258 = vpack.c.b16 %v2910, %v2906
    %v3259 = vpack.c.b16 %v2915, %v2911
    %v3260 = vpack.c.b16 %v2916, %v2912
    %v3261 = vpack.c.b16 %v2917, %v2913
    %v3262 = vpack.c.b16 %v2918, %v2914
    %v3263 = vpack.c.b16 %v2923, %v2919
    %v3264 = vpack.c.b16 %v2924, %v2920
    %v3265 = vpack.c.b16 %v2925, %v2921
    %v3266 = vpack.c.b16 %v2926, %v2922
    %v3267 = vpack.c.b16 %v2931, %v2927
    %v3268 = vpack.c.b16 %v2932, %v2928
    %v3269 = vpack.c.b16 %v2933, %v2929
    %v3270 = vpack.c.b16 %v2934, %v2930
    %v3271 = vpack.c.b16 %v2939, %v2935
    %v3272 = vpack.c.b16 %v2940, %v2936
    %v3273 = vpack.c.b16 %v2941, %v2937
    %v3274 = vpack.c.b16 %v2942, %v2938
    %v3275 = vpack.c.b16 %v2947, %v2943
    %v3276 = vpack.c.b16 %v2948, %v2944
    %v3277 = vpack.c.b16 %v2949, %v2945
    %v3278 = vpack.c.b16 %v2950, %v2946
    %v3279 = vpack.c.b16 %v2955, %v2951
    %v3280 = vpack.c.b16 %v2956, %v2952
    %v3281 = vpack.c.b16 %v2957, %v2953
    %v3282 = vpack.c.b16 %v2958, %v2954
    %v3283 = vpack.c.b16 %v2963, %v2959
    %v3284 = vpack.c.b16 %v2964, %v2960
    %v3285 = vpack.c.b16 %v2965, %v2961
    %v3286 = vpack.c.b16 %v2966, %v2962
    %v3287 = vpack.c.b16 %v2971, %v2967
    %v3288 = vpack.c.b16 %v2972, %v2968
    %v3289 = vpack.c.b16 %v2973, %v2969
    %v3290 = vpack.c.b16 %v2974, %v2970
    %v3291 = vpack.c.b16 %v2979, %v2975
    %v3292 = vpack.c.b16 %v2980, %v2976
    %v3293 = vpack.c.b16 %v2981, %v2977
    %v3294 = vpack.c.b16 %v2982, %v2978
    %v3295 = vpack.c.b16 %v2987, %v2983
    %v3296 = vpack.c.b16 %v2988, %v2984
    %v3297 = vpack.c.b16 %v2989, %v2985
    %v3298 = vpack.c.b16 %v2990, %v2986
    %v3299 = vpack.c.b16 %v2995, %v2991
    %v3300 = vpack.c.b16 %v2996, %v2992
    %v3301 = vpack.c.b16 %v2997, %v2993
    %v3302 = vpack.c.b16 %v2998, %v2994
    %v3303 = vpack.c.b16 %v3003, %v2999
    %v3304 = vpack.c.b16 %v3004, %v3000
    %v3305 = vpack.c.b16 %v3005, %v3001
    %v3306 = vpack.c.b16 %v3006, %v3002
    %v3307 = vpack.c.b16 %v3011, %v3007
    %v3308 = vpack.c.b16 %v3012, %v3008
    %v3309 = vpack.c.b16 %v3013, %v3009
    %v3310 = vpack.c.b16 %v3014, %v3010
    %v3311 = vpack.c.b16 %v3019, %v3015
    %v3312 = vpack.c.b16 %v3020, %v3016
    %v3313 = vpack.c.b16 %v3021, %v3017
    %v3314 = vpack.c.b16 %v3022, %v3018
    %v3315 = vpack.c.b16 %v3027, %v3023
    %v3316 = vpack.c.b16 %v3028, %v3024
    %v3317 = vpack.c.b16 %v3029, %v3025
    %v3318 = vpack.c.b16 %v3030, %v3026
    %v3319 = vpack.c.b16 %v3035, %v3031
    %v3320 = vpack.c.b16 %v3036, %v3032
    %v3321 = vpack.c.b16 %v3037, %v3033
    %v3322 = vpack.c.b16 %v3038, %v3034
    %v3323 = vpack.c.b16 %v3043, %v3039
    %v3324 = vpack.c.b16 %v3044, %v3040
    %v3325 = vpack.c.b16 %v3045, %v3041
    %v3326 = vpack.c.b16 %v3046, %v3042
    %v3327 = vpack.c.b16 %v3051, %v3047
    %v3328 = vpack.c.b16 %v3052, %v3048
    %v3329 = vpack.c.b16 %v3053, %v3049
    %v3330 = vpack.c.b16 %v3054, %v3050
    %v3331 = vpack.c.b16 %v3059, %v3055
    %v3332 = vpack.c.b16 %v3060, %v3056
    %v3333 = vpack.c.b16 %v3061, %v3057
    %v3334 = vpack.c.b16 %v3062, %v3058
    %v3335 = vpack.c.b16 %v3067, %v3063
    %v3336 = vpack.c.b16 %v3068, %v3064
    %v3337 = vpack.c.b16 %v3069, %v3065
    %v3338 = vpack.c.b16 %v3070, %v3066
    %v3339 = vpack.c.b16 %v3075, %v3071
    %v3340 = vpack.c.b16 %v3076, %v3072
    %v3341 = vpack.c.b16 %v3077, %v3073
    %v3342 = vpack.c.b16 %v3078, %v3074
    %v3343 = vpack.c.b16 %v3083, %v3079
    %v3344 = vpack.c.b16 %v3084, %v3080
    %v3345 = vpack.c.b16 %v3085, %v3081
    %v3346 = vpack.c.b16 %v3086, %v3082
    %v3347 = vpack.c.b16 %v3091, %v3087
    %v3348 = vpack.c.b16 %v3092, %v3088
    %v3349 = vpack.c.b16 %v3093, %v3089
    %v3350 = vpack.c.b16 %v3094, %v3090
    %3607 = vmatprep.subr.bf16.mxu0 %v3096
    %3608 = vmatpush1.bf16.msra.mxu0 %v3095
    %3609 = vmatprep.subr.bf16.mxu0 %v3100
    %3610 = vmatpush1.bf16.msra.mxu0 %v3099
    %3611 = vmatprep.subr.bf16.mxu0 %v3104
    %3612 = vmatpush1.bf16.msra.mxu0 %v3103
    %3613 = vmatprep.subr.bf16.mxu0 %v3108
    %3614 = vmatpush1.bf16.msra.mxu0 %v3107
    %3615 = vmatprep.subr.bf16.mxu0 %v3112
    %3616 = vmatpush1.bf16.msra.mxu0 %v3111
    %3617 = vmatprep.subr.bf16.mxu0 %v3116
    %3618 = vmatpush1.bf16.msra.mxu0 %v3115
    %3619 = vmatprep.subr.bf16.mxu0 %v3120
    %3620 = vmatpush1.bf16.msra.mxu0 %v3119
    %3621 = vmatprep.subr.bf16.mxu0 %v3124
    %3622 = vmatpush1.bf16.msra.mxu0 %v3123
    %3623 = vmatprep.subr.bf16.mxu0 %v3128
    %3624 = vmatpush1.bf16.msra.mxu0 %v3127
    %3625 = vmatprep.subr.bf16.mxu0 %v3132
    %3626 = vmatpush1.bf16.msra.mxu0 %v3131
    %3627 = vmatprep.subr.bf16.mxu0 %v3136
    %3628 = vmatpush1.bf16.msra.mxu0 %v3135
    %3629 = vmatprep.subr.bf16.mxu0 %v3140
    %3630 = vmatpush1.bf16.msra.mxu0 %v3139
    %3631 = vmatprep.subr.bf16.mxu0 %v3144
    %3632 = vmatpush1.bf16.msra.mxu0 %v3143
    %3633 = vmatprep.subr.bf16.mxu0 %v3148
    %3634 = vmatpush1.bf16.msra.mxu0 %v3147
    %3635 = vmatprep.subr.bf16.mxu0 %v3152
    %3636 = vmatpush1.bf16.msra.mxu0 %v3151
    %3637 = vmatprep.subr.bf16.mxu0 %v3156
    %3638 = vmatpush1.bf16.msra.mxu0 %v3155
    %3639 = vmatprep.mubr.bf16.mxu0 %v2042
    %3640 = vmatmul.mubr.bf16.gmra.mrb[0].mxu0 %v2041
    %v3641 = vpop.f32.mrb[0].mxu0
    %v3642 = vadd.f32 %v2310, %v3641
    %v3643 = vpop.f32.mrb[0].mxu0
    %v3644 = vadd.f32 %v2314, %v3643
    %v3645 = vpop.f32.mrb[0].mxu0
    %v3646 = vpop.f32.mrb[0].mxu0
    %3647 = vdwg.mxu0
    %3648 = vmatprep.subr.bf16.mxu0 %v3160
    %3649 = vmatpush1.bf16.msra.mxu0 %v3159
    %3650 = vmatprep.subr.bf16.mxu0 %v3164
    %3651 = vmatpush1.bf16.msra.mxu0 %v3163
    %3652 = vmatprep.subr.bf16.mxu0 %v3168
    %3653 = vmatpush1.bf16.msra.mxu0 %v3167
    %3654 = vmatprep.subr.bf16.mxu0 %v3172
    %3655 = vmatpush1.bf16.msra.mxu0 %v3171
    %3656 = vmatprep.subr.bf16.mxu0 %v3176
    %3657 = vmatpush1.bf16.msra.mxu0 %v3175
    %3658 = vmatprep.subr.bf16.mxu0 %v3180
    %3659 = vmatpush1.bf16.msra.mxu0 %v3179
    %3660 = vmatprep.subr.bf16.mxu0 %v3184
    %3661 = vmatpush1.bf16.msra.mxu0 %v3183
    %3662 = vmatprep.subr.bf16.mxu0 %v3188
    %3663 = vmatpush1.bf16.msra.mxu0 %v3187
    %3664 = vmatprep.subr.bf16.mxu0 %v3192
    %3665 = vmatpush1.bf16.msra.mxu0 %v3191
    %3666 = vmatprep.subr.bf16.mxu0 %v3196
    %3667 = vmatpush1.bf16.msra.mxu0 %v3195
    %3668 = vmatprep.subr.bf16.mxu0 %v3200
    %3669 = vmatpush1.bf16.msra.mxu0 %v3199
    %3670 = vmatprep.subr.bf16.mxu0 %v3204
    %3671 = vmatpush1.bf16.msra.mxu0 %v3203
    %3672 = vmatprep.subr.bf16.mxu0 %v3208
    %3673 = vmatpush1.bf16.msra.mxu0 %v3207
    %3674 = vmatprep.subr.bf16.mxu0 %v3212
    %3675 = vmatpush1.bf16.msra.mxu0 %v3211
    %3676 = vmatprep.subr.bf16.mxu0 %v3216
    %3677 = vmatpush1.bf16.msra.mxu0 %v3215
    %3678 = vmatprep.subr.bf16.mxu0 %v3220
    %3679 = vmatpush1.bf16.msra.mxu0 %v3219
    %3680 = vmatprep.mubr.bf16.mxu0 %v2044
    %3681 = vmatmul.mubr.bf16.gmra.mrb[0].mxu0 %v2043
    %v3682 = vpop.f32.mrb[0].mxu0
    %v3683 = vadd.f32 %v3642, %v3682
    %v3684 = vpop.f32.mrb[0].mxu0
    %v3685 = vadd.f32 %v3644, %v3684
    %v3686 = vpop.f32.mrb[0].mxu0
    %v3687 = vpop.f32.mrb[0].mxu0
    %3688 = vdwg.mxu0
    %3689 = vmatprep.subr.bf16.mxu0 %v3224
    %3690 = vmatpush1.bf16.msra.mxu0 %v3223
    %3691 = vmatprep.subr.bf16.mxu0 %v3228
    %3692 = vmatpush1.bf16.msra.mxu0 %v3227
    %3693 = vmatprep.subr.bf16.mxu0 %v3232
    %3694 = vmatpush1.bf16.msra.mxu0 %v3231
    %3695 = vmatprep.subr.bf16.mxu0 %v3236
    %3696 = vmatpush1.bf16.msra.mxu0 %v3235
    %3697 = vmatprep.subr.bf16.mxu0 %v3240
    %3698 = vmatpush1.bf16.msra.mxu0 %v3239
    %3699 = vmatprep.subr.bf16.mxu0 %v3244
    %3700 = vmatpush1.bf16.msra.mxu0 %v3243
    %3701 = vmatprep.subr.bf16.mxu0 %v3248
    %3702 = vmatpush1.bf16.msra.mxu0 %v3247
    %3703 = vmatprep.subr.bf16.mxu0 %v3252
    %3704 = vmatpush1.bf16.msra.mxu0 %v3251
    %3705 = vmatprep.subr.bf16.mxu0 %v3256
    %3706 = vmatpush1.bf16.msra.mxu0 %v3255
    %3707 = vmatprep.subr.bf16.mxu0 %v3260
    %3708 = vmatpush1.bf16.msra.mxu0 %v3259
    %3709 = vmatprep.subr.bf16.mxu0 %v3264
    %3710 = vmatpush1.bf16.msra.mxu0 %v3263
    %3711 = vmatprep.subr.bf16.mxu0 %v3268
    %3712 = vmatpush1.bf16.msra.mxu0 %v3267
    %3713 = vmatprep.subr.bf16.mxu0 %v3272
    %3714 = vmatpush1.bf16.msra.mxu0 %v3271
    %3715 = vmatprep.subr.bf16.mxu0 %v3276
    %3716 = vmatpush1.bf16.msra.mxu0 %v3275
    %3717 = vmatprep.subr.bf16.mxu0 %v3280
    %3718 = vmatpush1.bf16.msra.mxu0 %v3279
    %3719 = vmatprep.subr.bf16.mxu0 %v3284
    %3720 = vmatpush1.bf16.msra.mxu0 %v3283
    %3721 = vmatprep.mubr.bf16.mxu0 %v2046
    %3722 = vmatmul.mubr.bf16.gmra.mrb[0].mxu0 %v2045
    %v3723 = vpop.f32.mrb[0].mxu0
    %v3724 = vadd.f32 %v3683, %v3723
    %v3725 = vpop.f32.mrb[0].mxu0
    %v3726 = vadd.f32 %v3685, %v3725
    %v3727 = vpop.f32.mrb[0].mxu0
    %v3728 = vpop.f32.mrb[0].mxu0
    %3729 = vdwg.mxu0
    %3730 = vmatprep.subr.bf16.mxu0 %v3288
    %3731 = vmatpush1.bf16.msra.mxu0 %v3287
    %3732 = vmatprep.subr.bf16.mxu0 %v3292
    %3733 = vmatpush1.bf16.msra.mxu0 %v3291
    %3734 = vmatprep.subr.bf16.mxu0 %v3296
    %3735 = vmatpush1.bf16.msra.mxu0 %v3295
    %3736 = vmatprep.subr.bf16.mxu0 %v3300
    %3737 = vmatpush1.bf16.msra.mxu0 %v3299
    %3738 = vmatprep.subr.bf16.mxu0 %v3304
    %3739 = vmatpush1.bf16.msra.mxu0 %v3303
    %3740 = vmatprep.subr.bf16.mxu0 %v3308
    %3741 = vmatpush1.bf16.msra.mxu0 %v3307
    %3742 = vmatprep.subr.bf16.mxu0 %v3312
    %3743 = vmatpush1.bf16.msra.mxu0 %v3311
    %3744 = vmatprep.subr.bf16.mxu0 %v3316
    %3745 = vmatpush1.bf16.msra.mxu0 %v3315
    %3746 = vmatprep.subr.bf16.mxu0 %v3320
    %3747 = vmatpush1.bf16.msra.mxu0 %v3319
    %3748 = vmatprep.subr.bf16.mxu0 %v3324
    %3749 = vmatpush1.bf16.msra.mxu0 %v3323
    %3750 = vmatprep.subr.bf16.mxu0 %v3328
    %3751 = vmatpush1.bf16.msra.mxu0 %v3327
    %3752 = vmatprep.subr.bf16.mxu0 %v3332
    %3753 = vmatpush1.bf16.msra.mxu0 %v3331
    %3754 = vmatprep.subr.bf16.mxu0 %v3336
    %3755 = vmatpush1.bf16.msra.mxu0 %v3335
    %3756 = vmatprep.subr.bf16.mxu0 %v3340
    %3757 = vmatpush1.bf16.msra.mxu0 %v3339
    %3758 = vmatprep.subr.bf16.mxu0 %v3344
    %3759 = vmatpush1.bf16.msra.mxu0 %v3343
    %3760 = vmatprep.subr.bf16.mxu0 %v3348
    %3761 = vmatpush1.bf16.msra.mxu0 %v3347
    %3762 = vmatprep.mubr.bf16.mxu0 %v2048
    %3763 = vmatmul.mubr.bf16.gmra.mrb[0].mxu0 %v2047
    %v3764 = vpop.f32.mrb[0].mxu0
    %v3765 = vadd.f32 %v3724, %v3764
    %v3766 = vpop.f32.mrb[0].mxu0
    %v3767 = vadd.f32 %v3726, %v3766
    %v3768 = vpop.f32.mrb[0].mxu0
    %v3769 = vpop.f32.mrb[0].mxu0
    %3770 = vdwg.mxu0
    %3771 = vmatprep.subr.bf16.mxu0 %v3098
    %3772 = vmatpush1.bf16.msra.mxu0 %v3097
    %3773 = vmatprep.subr.bf16.mxu0 %v3102
    %3774 = vmatpush1.bf16.msra.mxu0 %v3101
    %3775 = vmatprep.subr.bf16.mxu0 %v3106
    %3776 = vmatpush1.bf16.msra.mxu0 %v3105
    %3777 = vmatprep.subr.bf16.mxu0 %v3110
    %3778 = vmatpush1.bf16.msra.mxu0 %v3109
    %3779 = vmatprep.subr.bf16.mxu0 %v3114
    %3780 = vmatpush1.bf16.msra.mxu0 %v3113
    %3781 = vmatprep.subr.bf16.mxu0 %v3118
    %3782 = vmatpush1.bf16.msra.mxu0 %v3117
    %3783 = vmatprep.subr.bf16.mxu0 %v3122
    %3784 = vmatpush1.bf16.msra.mxu0 %v3121
    %3785 = vmatprep.subr.bf16.mxu0 %v3126
    %3786 = vmatpush1.bf16.msra.mxu0 %v3125
    %3787 = vmatprep.subr.bf16.mxu0 %v3130
    %3788 = vmatpush1.bf16.msra.mxu0 %v3129
    %3789 = vmatprep.subr.bf16.mxu0 %v3134
    %3790 = vmatpush1.bf16.msra.mxu0 %v3133
    %3791 = vmatprep.subr.bf16.mxu0 %v3138
    %3792 = vmatpush1.bf16.msra.mxu0 %v3137
    %3793 = vmatprep.subr.bf16.mxu0 %v3142
    %3794 = vmatpush1.bf16.msra.mxu0 %v3141
    %3795 = vmatprep.subr.bf16.mxu0 %v3146
    %3796 = vmatpush1.bf16.msra.mxu0 %v3145
    %3797 = vmatprep.subr.bf16.mxu0 %v3150
    %3798 = vmatpush1.bf16.msra.mxu0 %v3149
    %3799 = vmatprep.subr.bf16.mxu0 %v3154
    %3800 = vmatpush1.bf16.msra.mxu0 %v3153
    %3801 = vmatprep.subr.bf16.mxu0 %v3158
    %3802 = vmatpush1.bf16.msra.mxu0 %v3157
    %3803 = vmatprep.mubr.bf16.mxu0 %v2042
    %3804 = vmatmul.mubr.bf16.gmra.mrb[0].mxu0 %v2041
    %v3805 = vpop.f32.mrb[0].mxu0
    %v3806 = vadd.f32 %v2318, %v3805
    %v3807 = vpop.f32.mrb[0].mxu0
    %v3808 = vadd.f32 %v2322, %v3807
    %v3809 = vpop.f32.mrb[0].mxu0
    %v3810 = vpop.f32.mrb[0].mxu0
    %3811 = vdwg.mxu0
    %3812 = vmatprep.subr.bf16.mxu0 %v3162
    %3813 = vmatpush1.bf16.msra.mxu0 %v3161
    %3814 = vmatprep.subr.bf16.mxu0 %v3166
    %3815 = vmatpush1.bf16.msra.mxu0 %v3165
    %3816 = vmatprep.subr.bf16.mxu0 %v3170
    %3817 = vmatpush1.bf16.msra.mxu0 %v3169
    %3818 = vmatprep.subr.bf16.mxu0 %v3174
    %3819 = vmatpush1.bf16.msra.mxu0 %v3173
    %3820 = vmatprep.subr.bf16.mxu0 %v3178
    %3821 = vmatpush1.bf16.msra.mxu0 %v3177
    %3822 = vmatprep.subr.bf16.mxu0 %v3182
    %3823 = vmatpush1.bf16.msra.mxu0 %v3181
    %3824 = vmatprep.subr.bf16.mxu0 %v3186
    %3825 = vmatpush1.bf16.msra.mxu0 %v3185
    %3826 = vmatprep.subr.bf16.mxu0 %v3190
    %3827 = vmatpush1.bf16.msra.mxu0 %v3189
    %3828 = vmatprep.subr.bf16.mxu0 %v3194
    %3829 = vmatpush1.bf16.msra.mxu0 %v3193
    %3830 = vmatprep.subr.bf16.mxu0 %v3198
    %3831 = vmatpush1.bf16.msra.mxu0 %v3197
    %3832 = vmatprep.subr.bf16.mxu0 %v3202
    %3833 = vmatpush1.bf16.msra.mxu0 %v3201
    %3834 = vmatprep.subr.bf16.mxu0 %v3206
    %3835 = vmatpush1.bf16.msra.mxu0 %v3205
    %3836 = vmatprep.subr.bf16.mxu0 %v3210
    %3837 = vmatpush1.bf16.msra.mxu0 %v3209
    %3838 = vmatprep.subr.bf16.mxu0 %v3214
    %3839 = vmatpush1.bf16.msra.mxu0 %v3213
    %3840 = vmatprep.subr.bf16.mxu0 %v3218
    %3841 = vmatpush1.bf16.msra.mxu0 %v3217
    %3842 = vmatprep.subr.bf16.mxu0 %v3222
    %3843 = vmatpush1.bf16.msra.mxu0 %v3221
    %3844 = vmatprep.mubr.bf16.mxu0 %v2044
    %3845 = vmatmul.mubr.bf16.gmra.mrb[0].mxu0 %v2043
    %v3846 = vpop.f32.mrb[0].mxu0
    %v3847 = vadd.f32 %v3806, %v3846
    %v3848 = vpop.f32.mrb[0].mxu0
    %v3849 = vadd.f32 %v3808, %v3848
    %v3850 = vpop.f32.mrb[0].mxu0
    %v3851 = vpop.f32.mrb[0].mxu0
    %3852 = vdwg.mxu0
    %3853 = vmatprep.subr.bf16.mxu0 %v3226
    %3854 = vmatpush1.bf16.msra.mxu0 %v3225
    %3855 = vmatprep.subr.bf16.mxu0 %v3230
    %3856 = vmatpush1.bf16.msra.mxu0 %v3229
    %3857 = vmatprep.subr.bf16.mxu0 %v3234
    %3858 = vmatpush1.bf16.msra.mxu0 %v3233
    %3859 = vmatprep.subr.bf16.mxu0 %v3238
    %3860 = vmatpush1.bf16.msra.mxu0 %v3237
    %3861 = vmatprep.subr.bf16.mxu0 %v3242
    %3862 = vmatpush1.bf16.msra.mxu0 %v3241
    %3863 = vmatprep.subr.bf16.mxu0 %v3246
    %3864 = vmatpush1.bf16.msra.mxu0 %v3245
    %3865 = vmatprep.subr.bf16.mxu0 %v3250
    %3866 = vmatpush1.bf16.msra.mxu0 %v3249
    %3867 = vmatprep.subr.bf16.mxu0 %v3254
    %3868 = vmatpush1.bf16.msra.mxu0 %v3253
    %3869 = vmatprep.subr.bf16.mxu0 %v3258
    %3870 = vmatpush1.bf16.msra.mxu0 %v3257
    %3871 = vmatprep.subr.bf16.mxu0 %v3262
    %3872 = vmatpush1.bf16.msra.mxu0 %v3261
    %3873 = vmatprep.subr.bf16.mxu0 %v3266
    %3874 = vmatpush1.bf16.msra.mxu0 %v3265
    %3875 = vmatprep.subr.bf16.mxu0 %v3270
    %3876 = vmatpush1.bf16.msra.mxu0 %v3269
    %3877 = vmatprep.subr.bf16.mxu0 %v3274
    %3878 = vmatpush1.bf16.msra.mxu0 %v3273
    %3879 = vmatprep.subr.bf16.mxu0 %v3278
    %3880 = vmatpush1.bf16.msra.mxu0 %v3277
    %3881 = vmatprep.subr.bf16.mxu0 %v3282
    %3882 = vmatpush1.bf16.msra.mxu0 %v3281
    %3883 = vmatprep.subr.bf16.mxu0 %v3286
    %3884 = vmatpush1.bf16.msra.mxu0 %v3285
    %3885 = vmatprep.mubr.bf16.mxu0 %v2046
    %3886 = vmatmul.mubr.bf16.gmra.mrb[0].mxu0 %v2045
    %v3887 = vpop.f32.mrb[0].mxu0
    %v3888 = vadd.f32 %v3847, %v3887
    %v3889 = vpop.f32.mrb[0].mxu0
    %v3890 = vadd.f32 %v3849, %v3889
    %v3891 = vpop.f32.mrb[0].mxu0
    %v3892 = vpop.f32.mrb[0].mxu0
    %3893 = vdwg.mxu0
    %3894 = vmatprep.subr.bf16.mxu0 %v3290
    %3895 = vmatpush1.bf16.msra.mxu0 %v3289
    %3896 = vmatprep.subr.bf16.mxu0 %v3294
    %3897 = vmatpush1.bf16.msra.mxu0 %v3293
    %3898 = vmatprep.subr.bf16.mxu0 %v3298
    %3899 = vmatpush1.bf16.msra.mxu0 %v3297
    %3900 = vmatprep.subr.bf16.mxu0 %v3302
    %3901 = vmatpush1.bf16.msra.mxu0 %v3301
    %3902 = vmatprep.subr.bf16.mxu0 %v3306
    %3903 = vmatpush1.bf16.msra.mxu0 %v3305
    %3904 = vmatprep.subr.bf16.mxu0 %v3310
    %3905 = vmatpush1.bf16.msra.mxu0 %v3309
    %3906 = vmatprep.subr.bf16.mxu0 %v3314
    %3907 = vmatpush1.bf16.msra.mxu0 %v3313
    %3908 = vmatprep.subr.bf16.mxu0 %v3318
    %3909 = vmatpush1.bf16.msra.mxu0 %v3317
    %3910 = vmatprep.subr.bf16.mxu0 %v3322
    %3911 = vmatpush1.bf16.msra.mxu0 %v3321
    %3912 = vmatprep.subr.bf16.mxu0 %v3326
    %3913 = vmatpush1.bf16.msra.mxu0 %v3325
    %3914 = vmatprep.subr.bf16.mxu0 %v3330
    %3915 = vmatpush1.bf16.msra.mxu0 %v3329
    %3916 = vmatprep.subr.bf16.mxu0 %v3334
    %3917 = vmatpush1.bf16.msra.mxu0 %v3333
    %3918 = vmatprep.subr.bf16.mxu0 %v3338
    %3919 = vmatpush1.bf16.msra.mxu0 %v3337
    %3920 = vmatprep.subr.bf16.mxu0 %v3342
    %3921 = vmatpush1.bf16.msra.mxu0 %v3341
    %3922 = vmatprep.subr.bf16.mxu0 %v3346
    %3923 = vmatpush1.bf16.msra.mxu0 %v3345
    %3924 = vmatprep.subr.bf16.mxu0 %v3350
    %3925 = vmatpush1.bf16.msra.mxu0 %v3349
    %3926 = vmatprep.mubr.bf16.mxu0 %v2048
    %3927 = vmatmul.mubr.bf16.gmra.mrb[0].mxu0 %v2047
    %v3928 = vpop.f32.mrb[0].mxu0
    %v3929 = vadd.f32 %v3888, %v3928
    %v3930 = vpop.f32.mrb[0].mxu0
    %v3931 = vadd.f32 %v3890, %v3930
    %v3932 = vpop.f32.mrb[0].mxu0
    %v3933 = vpop.f32.mrb[0].mxu0
    %3934 = vdwg.mxu0
    %v3935 = vmul.f32 %v3765, 0.2
    %v3936 = vmul.f32 %v3767, 0.2
    %v3937 = vmul.f32 %v3929, 0.2
    %v3938 = vmul.f32 %v3931, 0.2
    %v3939 = vmax.f32 %v3765, %v3935
    %v3940 = vmax.f32 %v3767, %v3936
    %v3941 = vmax.f32 %v3929, %v3937
    %v3942 = vmax.f32 %v3931, %v3938
    %v3943 = vpack.c.bf16 %v3939, %v3939
    %v3944 = vpack.c.bf16 %v3940, %v3940
    %v3945 = vpack.c.bf16 %v3941, %v3941
    %v3946 = vpack.c.bf16 %v3942, %v3942
    %v3947 = vld [vmem:[#allocation9] sm:$0xff]
    %v3948 = vld [vmem:[#allocation9 + $0x8] sm:$0xff]
    %v3949 = vld [vmem:[#allocation9 + $0x10] sm:$0xff]
    %v3950 = vld [vmem:[#allocation9 + $0x18] sm:$0xff]
    %v3951 = vld [vmem:[#allocation9 + $0x20] sm:$0xff]
    %v3952 = vld [vmem:[#allocation9 + $0x28] sm:$0xff]
    %v3953 = vld [vmem:[#allocation9 + $0x30] sm:$0xff]
    %v3954 = vld [vmem:[#allocation9 + $0x38] sm:$0xff]
    %v3955 = vld [vmem:[#allocation9 + $0x40] sm:$0xff]
    %v3956 = vld [vmem:[#allocation9 + $0x48] sm:$0xff]
    %v3957 = vld [vmem:[#allocation9 + $0x50] sm:$0xff]
    %v3958 = vld [vmem:[#allocation9 + $0x58] sm:$0xff]
    %v3959 = vld [vmem:[#allocation9 + $0x60] sm:$0xff]
    %v3960 = vld [vmem:[#allocation9 + $0x68] sm:$0xff]
    %v3961 = vld [vmem:[#allocation9 + $0x70] sm:$0xff]
    %v3962 = vld [vmem:[#allocation9 + $0x78] sm:$0xff]
    %v3963 = vld [vmem:[#allocation9 + $0x80] sm:$0xff]
    %v3964 = vld [vmem:[#allocation9 + $0x88] sm:$0xff]
    %v3965 = vld [vmem:[#allocation9 + $0x90] sm:$0xff]
    %v3966 = vld [vmem:[#allocation9 + $0x98] sm:$0xff]
    %v3967 = vld [vmem:[#allocation9 + $0xa0] sm:$0xff]
    %v3968 = vld [vmem:[#allocation9 + $0xa8] sm:$0xff]
    %v3969 = vld [vmem:[#allocation9 + $0xb0] sm:$0xff]
    %v3970 = vld [vmem:[#allocation9 + $0xb8] sm:$0xff]
    %v3971 = vld [vmem:[#allocation9 + $0xc0] sm:$0xff]
    %v3972 = vld [vmem:[#allocation9 + $0xc8] sm:$0xff]
    %v3973 = vld [vmem:[#allocation9 + $0xd0] sm:$0xff]
    %v3974 = vld [vmem:[#allocation9 + $0xd8] sm:$0xff]
    %v3975 = vld [vmem:[#allocation9 + $0xe0] sm:$0xff]
    %v3976 = vld [vmem:[#allocation9 + $0xe8] sm:$0xff]
    %v3977 = vld [vmem:[#allocation9 + $0xf0] sm:$0xff]
    %v3978 = vld [vmem:[#allocation9 + $0xf8] sm:$0xff]
    %v3979 = vld [vmem:[#allocation9 + $0x100] sm:$0xff]
    %v3980 = vld [vmem:[#allocation9 + $0x108] sm:$0xff]
    %v3981 = vld [vmem:[#allocation9 + $0x110] sm:$0xff]
    %v3982 = vld [vmem:[#allocation9 + $0x118] sm:$0xff]
    %v3983 = vld [vmem:[#allocation9 + $0x120] sm:$0xff]
    %v3984 = vld [vmem:[#allocation9 + $0x128] sm:$0xff]
    %v3985 = vld [vmem:[#allocation9 + $0x130] sm:$0xff]
    %v3986 = vld [vmem:[#allocation9 + $0x138] sm:$0xff]
    %v3987 = vld [vmem:[#allocation9 + $0x140] sm:$0xff]
    %v3988 = vld [vmem:[#allocation9 + $0x148] sm:$0xff]
    %v3989 = vld [vmem:[#allocation9 + $0x150] sm:$0xff]
    %v3990 = vld [vmem:[#allocation9 + $0x158] sm:$0xff]
    %v3991 = vld [vmem:[#allocation9 + $0x160] sm:$0xff]
    %v3992 = vld [vmem:[#allocation9 + $0x168] sm:$0xff]
    %v3993 = vld [vmem:[#allocation9 + $0x170] sm:$0xff]
    %v3994 = vld [vmem:[#allocation9 + $0x178] sm:$0xff]
    %v3995 = vld [vmem:[#allocation9 + $0x180] sm:$0xff]
    %v3996 = vld [vmem:[#allocation9 + $0x188] sm:$0xff]
    %v3997 = vld [vmem:[#allocation9 + $0x190] sm:$0xff]
    %v3998 = vld [vmem:[#allocation9 + $0x198] sm:$0xff]
    %v3999 = vld [vmem:[#allocation9 + $0x1a0] sm:$0xff]
    %v4000 = vld [vmem:[#allocation9 + $0x1a8] sm:$0xff]
    %v4001 = vld [vmem:[#allocation9 + $0x1b0] sm:$0xff]
    %v4002 = vld [vmem:[#allocation9 + $0x1b8] sm:$0xff]
    %v4003 = vld [vmem:[#allocation9 + $0x1c0] sm:$0xff]
    %v4004 = vld [vmem:[#allocation9 + $0x1c8] sm:$0xff]
    %v4005 = vld [vmem:[#allocation9 + $0x1d0] sm:$0xff]
    %v4006 = vld [vmem:[#allocation9 + $0x1d8] sm:$0xff]
    %v4007 = vld [vmem:[#allocation9 + $0x1e0] sm:$0xff]
    %v4008 = vld [vmem:[#allocation9 + $0x1e8] sm:$0xff]
    %v4009 = vld [vmem:[#allocation9 + $0x1f0] sm:$0xff]
    %v4010 = vld [vmem:[#allocation9 + $0x1f8] sm:$0xff]
    %v4011 = vld [vmem:[%s6] sm:$0x3]
    %v4013 = vlaneseq
    %v4014 = vshrl.u32 %v4013, 7
    %v4015 = vsub.s32 0, %v4014
    %v4016 = vrot.slane %v4011, %v4015
    %v4017 = vlaneseq
    %v4018 = vshrl.u32 %v4017, 7
    %v4019 = vsub.s32 1, %v4018
    %v4020 = vrot.slane %v4011, %v4019
    %v4087 = vunpack.c.l.b16 %v3947
    %v4088 = vunpack.c.h.b16 %v3947
    %v4089 = vunpack.c.l.b16 %v3948
    %v4090 = vunpack.c.h.b16 %v3948
    %v4091 = vunpack.c.l.b16 %v3949
    %v4092 = vunpack.c.h.b16 %v3949
    %v4093 = vunpack.c.l.b16 %v3950
    %v4094 = vunpack.c.h.b16 %v3950
    %v4095 = vunpack.c.l.b16 %v3951
    %v4096 = vunpack.c.h.b16 %v3951
    %v4097 = vunpack.c.l.b16 %v3952
    %v4098 = vunpack.c.h.b16 %v3952
    %v4099 = vunpack.c.l.b16 %v3953
    %v4100 = vunpack.c.h.b16 %v3953
    %v4101 = vunpack.c.l.b16 %v3954
    %v4102 = vunpack.c.h.b16 %v3954
    %v4103 = vunpack.c.l.b16 %v3955
    %v4104 = vunpack.c.h.b16 %v3955
    %v4105 = vunpack.c.l.b16 %v3956
    %v4106 = vunpack.c.h.b16 %v3956
    %v4107 = vunpack.c.l.b16 %v3957
    %v4108 = vunpack.c.h.b16 %v3957
    %v4109 = vunpack.c.l.b16 %v3958
    %v4110 = vunpack.c.h.b16 %v3958
    %v4111 = vunpack.c.l.b16 %v3959
    %v4112 = vunpack.c.h.b16 %v3959
    %v4113 = vunpack.c.l.b16 %v3960
    %v4114 = vunpack.c.h.b16 %v3960
    %v4115 = vunpack.c.l.b16 %v3961
    %v4116 = vunpack.c.h.b16 %v3961
    %v4117 = vunpack.c.l.b16 %v3962
    %v4118 = vunpack.c.h.b16 %v3962
    %v4119 = vunpack.c.l.b16 %v3963
    %v4120 = vunpack.c.h.b16 %v3963
    %v4121 = vunpack.c.l.b16 %v3964
    %v4122 = vunpack.c.h.b16 %v3964
    %v4123 = vunpack.c.l.b16 %v3965
    %v4124 = vunpack.c.h.b16 %v3965
    %v4125 = vunpack.c.l.b16 %v3966
    %v4126 = vunpack.c.h.b16 %v3966
    %v4127 = vunpack.c.l.b16 %v3967
    %v4128 = vunpack.c.h.b16 %v3967
    %v4129 = vunpack.c.l.b16 %v3968
    %v4130 = vunpack.c.h.b16 %v3968
    %v4131 = vunpack.c.l.b16 %v3969
    %v4132 = vunpack.c.h.b16 %v3969
    %v4133 = vunpack.c.l.b16 %v3970
    %v4134 = vunpack.c.h.b16 %v3970
    %v4135 = vunpack.c.l.b16 %v3971
    %v4136 = vunpack.c.h.b16 %v3971
    %v4137 = vunpack.c.l.b16 %v3972
    %v4138 = vunpack.c.h.b16 %v3972
    %v4139 = vunpack.c.l.b16 %v3973
    %v4140 = vunpack.c.h.b16 %v3973
    %v4141 = vunpack.c.l.b16 %v3974
    %v4142 = vunpack.c.h.b16 %v3974
    %v4143 = vunpack.c.l.b16 %v3975
    %v4144 = vunpack.c.h.b16 %v3975
    %v4145 = vunpack.c.l.b16 %v3976
    %v4146 = vunpack.c.h.b16 %v3976
    %v4147 = vunpack.c.l.b16 %v3977
    %v4148 = vunpack.c.h.b16 %v3977
    %v4149 = vunpack.c.l.b16 %v3978
    %v4150 = vunpack.c.h.b16 %v3978
    %v4151 = vunpack.c.l.b16 %v3979
    %v4152 = vunpack.c.h.b16 %v3979
    %v4153 = vunpack.c.l.b16 %v3980
    %v4154 = vunpack.c.h.b16 %v3980
    %v4155 = vunpack.c.l.b16 %v3981
    %v4156 = vunpack.c.h.b16 %v3981
    %v4157 = vunpack.c.l.b16 %v3982
    %v4158 = vunpack.c.h.b16 %v3982
    %v4159 = vunpack.c.l.b16 %v3983
    %v4160 = vunpack.c.h.b16 %v3983
    %v4161 = vunpack.c.l.b16 %v3984
    %v4162 = vunpack.c.h.b16 %v3984
    %v4163 = vunpack.c.l.b16 %v3985
    %v4164 = vunpack.c.h.b16 %v3985
    %v4165 = vunpack.c.l.b16 %v3986
    %v4166 = vunpack.c.h.b16 %v3986
    %v4167 = vunpack.c.l.b16 %v3987
    %v4168 = vunpack.c.h.b16 %v3987
    %v4169 = vunpack.c.l.b16 %v3988
    %v4170 = vunpack.c.h.b16 %v3988
    %v4171 = vunpack.c.l.b16 %v3989
    %v4172 = vunpack.c.h.b16 %v3989
    %v4173 = vunpack.c.l.b16 %v3990
    %v4174 = vunpack.c.h.b16 %v3990
    %v4175 = vunpack.c.l.b16 %v3991
    %v4176 = vunpack.c.h.b16 %v3991
    %v4177 = vunpack.c.l.b16 %v3992
    %v4178 = vunpack.c.h.b16 %v3992
    %v4179 = vunpack.c.l.b16 %v3993
    %v4180 = vunpack.c.h.b16 %v3993
    %v4181 = vunpack.c.l.b16 %v3994
    %v4182 = vunpack.c.h.b16 %v3994
    %v4183 = vunpack.c.l.b16 %v3995
    %v4184 = vunpack.c.h.b16 %v3995
    %v4185 = vunpack.c.l.b16 %v3996
    %v4186 = vunpack.c.h.b16 %v3996
    %v4187 = vunpack.c.l.b16 %v3997
    %v4188 = vunpack.c.h.b16 %v3997
    %v4189 = vunpack.c.l.b16 %v3998
    %v4190 = vunpack.c.h.b16 %v3998
    %v4191 = vunpack.c.l.b16 %v3999
    %v4192 = vunpack.c.h.b16 %v3999
    %v4193 = vunpack.c.l.b16 %v4000
    %v4194 = vunpack.c.h.b16 %v4000
    %v4195 = vunpack.c.l.b16 %v4001
    %v4196 = vunpack.c.h.b16 %v4001
    %v4197 = vunpack.c.l.b16 %v4002
    %v4198 = vunpack.c.h.b16 %v4002
    %v4199 = vunpack.c.l.b16 %v4003
    %v4200 = vunpack.c.h.b16 %v4003
    %v4201 = vunpack.c.l.b16 %v4004
    %v4202 = vunpack.c.h.b16 %v4004
    %v4203 = vunpack.c.l.b16 %v4005
    %v4204 = vunpack.c.h.b16 %v4005
    %v4205 = vunpack.c.l.b16 %v4006
    %v4206 = vunpack.c.h.b16 %v4006
    %v4207 = vunpack.c.l.b16 %v4007
    %v4208 = vunpack.c.h.b16 %v4007
    %v4209 = vunpack.c.l.b16 %v4008
    %v4210 = vunpack.c.h.b16 %v4008
    %v4211 = vunpack.c.l.b16 %v4009
    %v4212 = vunpack.c.h.b16 %v4009
    %v4213 = vunpack.c.l.b16 %v4010
    %v4214 = vunpack.c.h.b16 %v4010
    %v4215 = vpack.c.b16 %v4089, %v4087
    %v4216 = vpack.c.b16 %v4090, %v4088
    %v4217 = vpack.c.b16 %v4093, %v4091
    %v4218 = vpack.c.b16 %v4094, %v4092
    %v4219 = vpack.c.b16 %v4097, %v4095
    %v4220 = vpack.c.b16 %v4098, %v4096
    %v4221 = vpack.c.b16 %v4101, %v4099
    %v4222 = vpack.c.b16 %v4102, %v4100
    %v4223 = vpack.c.b16 %v4105, %v4103
    %v4224 = vpack.c.b16 %v4106, %v4104
    %v4225 = vpack.c.b16 %v4109, %v4107
    %v4226 = vpack.c.b16 %v4110, %v4108
    %v4227 = vpack.c.b16 %v4113, %v4111
    %v4228 = vpack.c.b16 %v4114, %v4112
    %v4229 = vpack.c.b16 %v4117, %v4115
    %v4230 = vpack.c.b16 %v4118, %v4116
    %v4231 = vpack.c.b16 %v4121, %v4119
    %v4232 = vpack.c.b16 %v4122, %v4120
    %v4233 = vpack.c.b16 %v4125, %v4123
    %v4234 = vpack.c.b16 %v4126, %v4124
    %v4235 = vpack.c.b16 %v4129, %v4127
    %v4236 = vpack.c.b16 %v4130, %v4128
    %v4237 = vpack.c.b16 %v4133, %v4131
    %v4238 = vpack.c.b16 %v4134, %v4132
    %v4239 = vpack.c.b16 %v4137, %v4135
    %v4240 = vpack.c.b16 %v4138, %v4136
    %v4241 = vpack.c.b16 %v4141, %v4139
    %v4242 = vpack.c.b16 %v4142, %v4140
    %v4243 = vpack.c.b16 %v4145, %v4143
    %v4244 = vpack.c.b16 %v4146, %v4144
    %v4245 = vpack.c.b16 %v4149, %v4147
    %v4246 = vpack.c.b16 %v4150, %v4148
    %v4247 = vpack.c.b16 %v4153, %v4151
    %v4248 = vpack.c.b16 %v4154, %v4152
    %v4249 = vpack.c.b16 %v4157, %v4155
    %v4250 = vpack.c.b16 %v4158, %v4156
    %v4251 = vpack.c.b16 %v4161, %v4159
    %v4252 = vpack.c.b16 %v4162, %v4160
    %v4253 = vpack.c.b16 %v4165, %v4163
    %v4254 = vpack.c.b16 %v4166, %v4164
    %v4255 = vpack.c.b16 %v4169, %v4167
    %v4256 = vpack.c.b16 %v4170, %v4168
    %v4257 = vpack.c.b16 %v4173, %v4171
    %v4258 = vpack.c.b16 %v4174, %v4172
    %v4259 = vpack.c.b16 %v4177, %v4175
    %v4260 = vpack.c.b16 %v4178, %v4176
    %v4261 = vpack.c.b16 %v4181, %v4179
    %v4262 = vpack.c.b16 %v4182, %v4180
    %v4263 = vpack.c.b16 %v4185, %v4183
    %v4264 = vpack.c.b16 %v4186, %v4184
    %v4265 = vpack.c.b16 %v4189, %v4187
    %v4266 = vpack.c.b16 %v4190, %v4188
    %v4267 = vpack.c.b16 %v4193, %v4191
    %v4268 = vpack.c.b16 %v4194, %v4192
    %v4269 = vpack.c.b16 %v4197, %v4195
    %v4270 = vpack.c.b16 %v4198, %v4196
    %v4271 = vpack.c.b16 %v4201, %v4199
    %v4272 = vpack.c.b16 %v4202, %v4200
    %v4273 = vpack.c.b16 %v4205, %v4203
    %v4274 = vpack.c.b16 %v4206, %v4204
    %v4275 = vpack.c.b16 %v4209, %v4207
    %v4276 = vpack.c.b16 %v4210, %v4208
    %v4277 = vpack.c.b16 %v4213, %v4211
    %v4278 = vpack.c.b16 %v4214, %v4212
    %4343 = vmatprep.subr.bf16.mxu0 %v4216
    %4344 = vmatpush1.bf16.msra.mxu0 %v4215
    %4345 = vmatprep.subr.bf16.mxu0 %v4218
    %4346 = vmatpush1.bf16.msra.mxu0 %v4217
    %4347 = vmatprep.subr.bf16.mxu0 %v4220
    %4348 = vmatpush1.bf16.msra.mxu0 %v4219
    %4349 = vmatprep.subr.bf16.mxu0 %v4222
    %4350 = vmatpush1.bf16.msra.mxu0 %v4221
    %4351 = vmatprep.subr.bf16.mxu0 %v4224
    %4352 = vmatpush1.bf16.msra.mxu0 %v4223
    %4353 = vmatprep.subr.bf16.mxu0 %v4226
    %4354 = vmatpush1.bf16.msra.mxu0 %v4225
    %4355 = vmatprep.subr.bf16.mxu0 %v4228
    %4356 = vmatpush1.bf16.msra.mxu0 %v4227
    %4357 = vmatprep.subr.bf16.mxu0 %v4230
    %4358 = vmatpush1.bf16.msra.mxu0 %v4229
    %4359 = vmatprep.subr.bf16.mxu0 %v4232
    %4360 = vmatpush1.bf16.msra.mxu0 %v4231
    %4361 = vmatprep.subr.bf16.mxu0 %v4234
    %4362 = vmatpush1.bf16.msra.mxu0 %v4233
    %4363 = vmatprep.subr.bf16.mxu0 %v4236
    %4364 = vmatpush1.bf16.msra.mxu0 %v4235
    %4365 = vmatprep.subr.bf16.mxu0 %v4238
    %4366 = vmatpush1.bf16.msra.mxu0 %v4237
    %4367 = vmatprep.subr.bf16.mxu0 %v4240
    %4368 = vmatpush1.bf16.msra.mxu0 %v4239
    %4369 = vmatprep.subr.bf16.mxu0 %v4242
    %4370 = vmatpush1.bf16.msra.mxu0 %v4241
    %4371 = vmatprep.subr.bf16.mxu0 %v4244
    %4372 = vmatpush1.bf16.msra.mxu0 %v4243
    %4373 = vmatprep.subr.bf16.mxu0 %v4246
    %4374 = vmatpush1.bf16.msra.mxu0 %v4245
    %4375 = vmatprep.mubr.bf16.mxu0 %v3944
    %4376 = vmatmul.mubr.bf16.gmra.mrb[0].mxu0 %v3943
    %v4377 = vpop.f32.mrb[0].mxu0
    %v4378 = vadd.f32 %v4016, %v4377
    %v4379 = vpop.f32.mrb[0].mxu0
    %v4380 = vadd.f32 %v4020, %v4379
    %v4381 = vpop.f32.mrb[0].mxu0
    %v4382 = vpop.f32.mrb[0].mxu0
    %4383 = vdwg.mxu0
    %4384 = vmatprep.subr.bf16.mxu0 %v4248
    %4385 = vmatpush1.bf16.msra.mxu0 %v4247
    %4386 = vmatprep.subr.bf16.mxu0 %v4250
    %4387 = vmatpush1.bf16.msra.mxu0 %v4249
    %4388 = vmatprep.subr.bf16.mxu0 %v4252
    %4389 = vmatpush1.bf16.msra.mxu0 %v4251
    %4390 = vmatprep.subr.bf16.mxu0 %v4254
    %4391 = vmatpush1.bf16.msra.mxu0 %v4253
    %4392 = vmatprep.subr.bf16.mxu0 %v4256
    %4393 = vmatpush1.bf16.msra.mxu0 %v4255
    %4394 = vmatprep.subr.bf16.mxu0 %v4258
    %4395 = vmatpush1.bf16.msra.mxu0 %v4257
    %4396 = vmatprep.subr.bf16.mxu0 %v4260
    %4397 = vmatpush1.bf16.msra.mxu0 %v4259
    %4398 = vmatprep.subr.bf16.mxu0 %v4262
    %4399 = vmatpush1.bf16.msra.mxu0 %v4261
    %4400 = vmatprep.subr.bf16.mxu0 %v4264
    %4401 = vmatpush1.bf16.msra.mxu0 %v4263
    %4402 = vmatprep.subr.bf16.mxu0 %v4266
    %4403 = vmatpush1.bf16.msra.mxu0 %v4265
    %4404 = vmatprep.subr.bf16.mxu0 %v4268
    %4405 = vmatpush1.bf16.msra.mxu0 %v4267
    %4406 = vmatprep.subr.bf16.mxu0 %v4270
    %4407 = vmatpush1.bf16.msra.mxu0 %v4269
    %4408 = vmatprep.subr.bf16.mxu0 %v4272
    %4409 = vmatpush1.bf16.msra.mxu0 %v4271
    %4410 = vmatprep.subr.bf16.mxu0 %v4274
    %4411 = vmatpush1.bf16.msra.mxu0 %v4273
    %4412 = vmatprep.subr.bf16.mxu0 %v4276
    %4413 = vmatpush1.bf16.msra.mxu0 %v4275
    %4414 = vmatprep.subr.bf16.mxu0 %v4278
    %4415 = vmatpush1.bf16.msra.mxu0 %v4277
    %4416 = vmatprep.mubr.bf16.mxu0 %v3946
    %4417 = vmatmul.mubr.bf16.gmra.mrb[0].mxu0 %v3945
    %v4418 = vpop.f32.mrb[0].mxu0
    %v4419 = vadd.f32 %v4378, %v4418
    %v4420 = vpop.f32.mrb[0].mxu0
    %v4421 = vadd.f32 %v4380, %v4420
    %v4422 = vpop.f32.mrb[0].mxu0
    %v4423 = vpop.f32.mrb[0].mxu0
    %4424 = vdwg.mxu0
    %v4425 = vmul.f32 %v4419, 0.2
    %v4426 = vmul.f32 %v4421, 0.2
    %v4427 = vmax.f32 %v4419, %v4425
    %v4428 = vmax.f32 %v4421, %v4426
    %v4429 = vpack.c.bf16 %v4427, %v4427
    %v4430 = vpack.c.bf16 %v4428, %v4428
    %v4431 = vld [vmem:[#allocation10] sm:$0xf]
    %v4432 = vld [vmem:[#allocation10 + $0x4] sm:$0xf]
    %v4433 = vld [vmem:[#allocation10 + $0x8] sm:$0xf]
    %v4434 = vld [vmem:[#allocation10 + $0xc] sm:$0xf]
    %v4435 = vld [vmem:[#allocation10 + $0x10] sm:$0xf]
    %v4436 = vld [vmem:[#allocation10 + $0x14] sm:$0xf]
    %v4437 = vld [vmem:[#allocation10 + $0x18] sm:$0xf]
    %v4438 = vld [vmem:[#allocation10 + $0x1c] sm:$0xf]
    %v4439 = vld [vmem:[#allocation10 + $0x20] sm:$0xf]
    %v4440 = vld [vmem:[#allocation10 + $0x24] sm:$0xf]
    %v4441 = vld [vmem:[#allocation10 + $0x28] sm:$0xf]
    %v4442 = vld [vmem:[#allocation10 + $0x2c] sm:$0xf]
    %v4443 = vld [vmem:[#allocation10 + $0x30] sm:$0xf]
    %v4444 = vld [vmem:[#allocation10 + $0x34] sm:$0xf]
    %v4445 = vld [vmem:[#allocation10 + $0x38] sm:$0xf]
    %v4446 = vld [vmem:[#allocation10 + $0x3c] sm:$0xf]
    %v4447 = vld [vmem:[#allocation10 + $0x40] sm:$0xf]
    %v4448 = vld [vmem:[#allocation10 + $0x44] sm:$0xf]
    %v4449 = vld [vmem:[#allocation10 + $0x48] sm:$0xf]
    %v4450 = vld [vmem:[#allocation10 + $0x4c] sm:$0xf]
    %v4451 = vld [vmem:[#allocation10 + $0x50] sm:$0xf]
    %v4452 = vld [vmem:[#allocation10 + $0x54] sm:$0xf]
    %v4453 = vld [vmem:[#allocation10 + $0x58] sm:$0xf]
    %v4454 = vld [vmem:[#allocation10 + $0x5c] sm:$0xf]
    %v4455 = vld [vmem:[#allocation10 + $0x60] sm:$0xf]
    %v4456 = vld [vmem:[#allocation10 + $0x64] sm:$0xf]
    %v4457 = vld [vmem:[#allocation10 + $0x68] sm:$0xf]
    %v4458 = vld [vmem:[#allocation10 + $0x6c] sm:$0xf]
    %v4459 = vld [vmem:[#allocation10 + $0x70] sm:$0xf]
    %v4460 = vld [vmem:[#allocation10 + $0x74] sm:$0xf]
    %v4461 = vld [vmem:[#allocation10 + $0x78] sm:$0xf]
    %v4462 = vld [vmem:[#allocation10 + $0x7c] sm:$0xf]
    %v4463 = vld [vmem:[%s8] sm:$0x1]
    %v4465 = vlaneseq
    %v4466 = vshrl.u32 %v4465, 7
    %v4467 = vsub.s32 0, %v4466
    %v4468 = vrot.slane %v4463, %v4467
    %v4502 = vunpack.c.l.b16 %v4431
    %v4503 = vunpack.c.l.b16 %v4432
    %v4504 = vunpack.c.l.b16 %v4433
    %v4505 = vunpack.c.l.b16 %v4434
    %v4506 = vunpack.c.l.b16 %v4435
    %v4507 = vunpack.c.l.b16 %v4436
    %v4508 = vunpack.c.l.b16 %v4437
    %v4509 = vunpack.c.l.b16 %v4438
    %v4510 = vunpack.c.l.b16 %v4439
    %v4511 = vunpack.c.l.b16 %v4440
    %v4512 = vunpack.c.l.b16 %v4441
    %v4513 = vunpack.c.l.b16 %v4442
    %v4514 = vunpack.c.l.b16 %v4443
    %v4515 = vunpack.c.l.b16 %v4444
    %v4516 = vunpack.c.l.b16 %v4445
    %v4517 = vunpack.c.l.b16 %v4446
    %v4518 = vunpack.c.l.b16 %v4447
    %v4519 = vunpack.c.l.b16 %v4448
    %v4520 = vunpack.c.l.b16 %v4449
    %v4521 = vunpack.c.l.b16 %v4450
    %v4522 = vunpack.c.l.b16 %v4451
    %v4523 = vunpack.c.l.b16 %v4452
    %v4524 = vunpack.c.l.b16 %v4453
    %v4525 = vunpack.c.l.b16 %v4454
    %v4526 = vunpack.c.l.b16 %v4455
    %v4527 = vunpack.c.l.b16 %v4456
    %v4528 = vunpack.c.l.b16 %v4457
    %v4529 = vunpack.c.l.b16 %v4458
    %v4530 = vunpack.c.l.b16 %v4459
    %v4531 = vunpack.c.l.b16 %v4460
    %v4532 = vunpack.c.l.b16 %v4461
    %v4533 = vunpack.c.l.b16 %v4462
    %v4534 = vpack.c.b16 %v4503, %v4502
    %v4535 = vpack.c.b16 %v4505, %v4504
    %v4536 = vpack.c.b16 %v4507, %v4506
    %v4537 = vpack.c.b16 %v4509, %v4508
    %v4538 = vpack.c.b16 %v4511, %v4510
    %v4539 = vpack.c.b16 %v4513, %v4512
    %v4540 = vpack.c.b16 %v4515, %v4514
    %v4541 = vpack.c.b16 %v4517, %v4516
    %v4542 = vpack.c.b16 %v4519, %v4518
    %v4543 = vpack.c.b16 %v4521, %v4520
    %v4544 = vpack.c.b16 %v4523, %v4522
    %v4545 = vpack.c.b16 %v4525, %v4524
    %v4546 = vpack.c.b16 %v4527, %v4526
    %v4547 = vpack.c.b16 %v4529, %v4528
    %v4548 = vpack.c.b16 %v4531, %v4530
    %v4549 = vpack.c.b16 %v4533, %v4532
    %4566 = vmatprep.subr.bf16.mxu0 0
    %4567 = vmatpush1.bf16.msra.mxu0 %v4534
    %4568 = vmatprep.subr.bf16.mxu0 0
    %4569 = vmatpush1.bf16.msra.mxu0 %v4535
    %4570 = vmatprep.subr.bf16.mxu0 0
    %4571 = vmatpush1.bf16.msra.mxu0 %v4536
    %4572 = vmatprep.subr.bf16.mxu0 0
    %4573 = vmatpush1.bf16.msra.mxu0 %v4537
    %4574 = vmatprep.subr.bf16.mxu0 0
    %4575 = vmatpush1.bf16.msra.mxu0 %v4538
    %4576 = vmatprep.subr.bf16.mxu0 0
    %4577 = vmatpush1.bf16.msra.mxu0 %v4539
    %4578 = vmatprep.subr.bf16.mxu0 0
    %4579 = vmatpush1.bf16.msra.mxu0 %v4540
    %4580 = vmatprep.subr.bf16.mxu0 0
    %4581 = vmatpush1.bf16.msra.mxu0 %v4541
    %4582 = vmatprep.subr.bf16.mxu0 0
    %4583 = vmatpush1.bf16.msra.mxu0 %v4542
    %4584 = vmatprep.subr.bf16.mxu0 0
    %4585 = vmatpush1.bf16.msra.mxu0 %v4543
    %4586 = vmatprep.subr.bf16.mxu0 0
    %4587 = vmatpush1.bf16.msra.mxu0 %v4544
    %4588 = vmatprep.subr.bf16.mxu0 0
    %4589 = vmatpush1.bf16.msra.mxu0 %v4545
    %4590 = vmatprep.subr.bf16.mxu0 0
    %4591 = vmatpush1.bf16.msra.mxu0 %v4546
    %4592 = vmatprep.subr.bf16.mxu0 0
    %4593 = vmatpush1.bf16.msra.mxu0 %v4547
    %4594 = vmatprep.subr.bf16.mxu0 0
    %4595 = vmatpush1.bf16.msra.mxu0 %v4548
    %4596 = vmatprep.subr.bf16.mxu0 0
    %4597 = vmatpush1.bf16.msra.mxu0 %v4549
    %4598 = vmatprep.mubr.bf16.mxu0 %v4430
    %4599 = vmatmul.mubr.bf16.gmra.mrb[0].mxu0 %v4429
    %v4600 = vpop.f32.mrb[0].mxu0
    %v4601 = vadd.f32 %v4468, %v4600
    %v4602 = vpop.f32.mrb[0].mxu0
    %v4603 = vpop.f32.mrb[0].mxu0
    %v4604 = vpop.f32.mrb[0].mxu0
    %4605 = vdwg.mxu0
    %v4606 = vmul.f32 %v4601, 0.5
    %v4607 = vtanh.pop %v4606
    %v4608 = vadd.f32 %v4607, 1.0
    %v4609 = vmul.f32 %v4608, 0.5
    %4610 = vst [vmem:[%s9] sm:$0xff] %v4609
    // Predicated region
    $region62: #{discriminator_forward.1} parent=1 // pred_check
      _
    $region63: #{discriminator_forward.1} parent=1 // pred_check_branch
      %4612 = sbr.rel (0) target = $region65
    $region64: #{discriminator_forward.1} parent=1 // pred_region
      _
    $region65: #{discriminator_forward.1} parent=1 // pred_fallthru
      _
    // Predicated region
    $region66: #{discriminator_forward.1} parent=1 // pred_check
      _
    $region67: #{discriminator_forward.1} parent=1 // pred_check_branch
      %4614 = sbr.rel (0) target = $region69
    $region68: #{discriminator_forward.1} parent=1 // pred_region
      _
    $region69: #{discriminator_forward.1} parent=1 // pred_fallthru
      _
    %4615 = vsyncpa [#allocation3], 1
    %4616 = vsyncpa [#allocation5], 1
    %4617 = vsyncpa [#allocation8], 1
    %4618 = vsyncpa [#allocation11], 1

</llo_original>
